<compile_context>
chip_gen: v5e
topology: v5e:2x2
jax: 0.10.0
libtpu: 0.0.40
codegen_flags: <defaults>
</compile_context>

<pallas_src>
import functools

import jax
import jax.numpy as jnp
from jax import lax
from jax.experimental import pallas as pl
from jax.experimental.pallas import tpu as pltpu

LN_EPS = 1e-5  # torch.nn.LayerNorm default


# ----------------------------------------------------------------------------
# In-kernel math helpers
# ----------------------------------------------------------------------------
def _gelu_tanh(x):
    # tanh-approximation GELU (~1e-3 rel. error vs exact-erf torch GELU);
    # tanh executes on the EUP slot instead of saturating the VALU.
    c = 0.7978845608028654  # sqrt(2/pi)
    return 0.5 * x * (1.0 + jnp.tanh(c * (x + 0.044715 * (x * x * x))))


def _layernorm(x, w, b):
    mu = jnp.mean(x, axis=-1, keepdims=True)
    var = jnp.mean((x - mu) ** 2, axis=-1, keepdims=True)
    return (x - mu) * lax.rsqrt(var + LN_EPS) * w + b


# ----------------------------------------------------------------------------
# Fused ViT kernel: grid = (num_layers,), activations live in an f32 VMEM carry
# ----------------------------------------------------------------------------
def _vit_fused_kernel(num_heads, batch, n_tokens,
                      # inputs
                      patches_ref, pw_ref, pb_ref, pos_ref, cls_ref,
                      ln1w_ref, ln1b_ref, qw_ref, kw_ref, vw_ref,
                      ow_ref, ob_ref, ln2w_ref, ln2b_ref,
                      w1_ref, b1_ref, w2_ref, b2_ref,
                      lnfw_ref, lnfb_ref, hw_ref, hb_ref,
                      # outputs
                      hid_ref, logits_ref,
                      # scratch
                      h_ref):
    layer = pl.program_id(0)
    n_layers = pl.num_programs(0)

    B, N, H = batch, n_tokens, num_heads
    NP = N - 1
    M = B * N
    D = pw_ref.shape[1]
    hd = D // H

    # ---------- prologue (layer 0): patch embedding + cls prepend ----------
    @pl.when(layer == 0)
    def _():
        tok = jnp.dot(patches_ref[...], pw_ref[...],
                      preferred_element_type=jnp.float32)               # (B*NP, D)
        tok = tok + pb_ref[...].astype(jnp.float32)
        pos = pos_ref[...].astype(jnp.float32)                          # (NP, D)
        cls = cls_ref[...].astype(jnp.float32)                          # (1, D)
        # cls token gets no positional embedding (pos-emb is added to patch
        # tokens before the cls concat, matching the reference MyViT).
        for b in range(B):                                              # static unroll
            h_ref[pl.ds(b * N, 1), :] = cls
            h_ref[pl.ds(b * N + 1, NP), :] = tok[b * NP:(b + 1) * NP, :] + pos

    x = h_ref[...]                                                      # (M, D) f32 carry

    # ------------------ pre-LN multi-head self-attention -------------------
    xn = _layernorm(x, ln1w_ref[0], ln1b_ref[0])
    # Head-major weights (H, D, hd) packed at trace time, 1/sqrt(hd) folded
    # into q: three lane-aligned head-batched matmuls produce q/k/v directly in
    # the layout the score einsums need (no misaligned column slicing, no
    # explicit head-split swapaxes).
    xb = jnp.broadcast_to(xn[None], (H, M, D))
    q = jnp.einsum('hmd,hde->hme', xb, qw_ref[0],
                   preferred_element_type=jnp.float32)                  # (H, M, hd)
    k = jnp.einsum('hmd,hde->hme', xb, kw_ref[0],
                   preferred_element_type=jnp.float32)
    v = jnp.einsum('hmd,hde->hme', xb, vw_ref[0],
                   preferred_element_type=jnp.float32)
    # split batch back out of the M rows; (head, batch) fold into one batch axis
    q = q.reshape(H * B, N, hd)
    k = k.reshape(H * B, N, hd)
    v = v.reshape(H * B, N, hd)
    s = jnp.einsum('zqe,zke->zqk', q, k,
                   preferred_element_type=jnp.float32)                  # (H*B, N, N)
    s = s - jnp.max(s, axis=-1, keepdims=True)
    e = jnp.exp(s)
    a = e * pl.reciprocal(jnp.sum(e, axis=-1, keepdims=True), approx=True)
    o = jnp.einsum('zqk,zke->zqe', a, v,
                   preferred_element_type=jnp.float32)                  # (H*B, N, hd)
    o = o.reshape(H, M, hd)
    # Output projection against (H, hd, D) weights: the head concat is implicit
    # in the reduction over heads (no transpose back to (M, D)).
    attn = jnp.einsum('hme,hed->hmd', o, ow_ref[0],
                      preferred_element_type=jnp.float32)               # (H, M, D)
    x = x + jnp.sum(attn, axis=0) + ob_ref[0]

    # --------------------------------- MLP ---------------------------------
    xn2 = _layernorm(x, ln2w_ref[0], ln2b_ref[0])
    h1 = jnp.dot(xn2, w1_ref[0], preferred_element_type=jnp.float32) + b1_ref[0]
    h2 = jnp.dot(_gelu_tanh(h1), w2_ref[0],
                 preferred_element_type=jnp.float32) + b2_ref[0]
    x = x + h2

    h_ref[...] = x
    # TODO(synk): at real ViT sizes emit hidden states bf16 with a lane-dense
    # last dim (D multiple of 128) so this per-layer writeback is an unmasked vst.
    hid_ref[0] = x.astype(hid_ref.dtype)

    # ------ epilogue (last layer): final LN + Linear + Sigmoid on cls ------
    @pl.when(layer == n_layers - 1)
    def _():
        cls_rows = x.reshape(B, N, D)[:, 0, :]                          # (B, D)
        cls_n = _layernorm(cls_rows, lnfw_ref[...], lnfb_ref[...])
        logits = jnp.dot(cls_n, hw_ref[...],
                         preferred_element_type=jnp.float32) + hb_ref[...]
        logits_ref[...] = jax.nn.sigmoid(logits).astype(logits_ref.dtype)


# ----------------------------------------------------------------------------
# Pallas wrapper
# ----------------------------------------------------------------------------
def vit_fused(patches2d, pk, *, num_heads, batch, n_patches):
    """patches2d: (B*NP, C*p*p) im2col patches.  pk: packed parameter dict.

    Returns (hidden, logits) with hidden of shape (L, B*N, D)."""
    BNP, P = patches2d.shape
    NP = n_patches
    B = batch
    N = NP + 1
    M = B * N
    D = pk["patch_w"].shape[1]
    H = num_heads
    hd = D // H
    L = pk["q_w"].shape[0]
    F = pk["w1"].shape[2]
    C = pk["head_w"].shape[1]

    def wspec(*dims):
        # per-layer weight slab, fetched once per layer (grid is layers only)
        zeros = (0,) * len(dims)
        return pl.BlockSpec((1,) + dims, lambda l: (l,) + zeros)

    def cspec(*dims):
        # constant (layer-invariant) block: DMA'd once, resident for the grid
        zeros = (0,) * len(dims)
        return pl.BlockSpec(dims, lambda l: zeros)

    kernel = functools.partial(_vit_fused_kernel, H, B, N)

    hidden, logits = pl.pallas_call(
        kernel,
        grid=(L,),
        in_specs=[
            cspec(BNP, P),                                       # patches
            cspec(P, D),                                         # patch embed weight
            cspec(1, D),                                         # patch embed bias
            cspec(NP, D),                                        # positional embedding
            cspec(1, D),                                         # cls token
            wspec(1, D), wspec(1, D),                            # ln1 w, b
            wspec(H, D, hd), wspec(H, D, hd), wspec(H, D, hd),   # q, k, v (head-major)
            wspec(H, hd, D), wspec(1, D),                        # attn out proj w, b
            wspec(1, D), wspec(1, D),                            # ln2 w, b
            wspec(D, F), wspec(1, F),                            # mlp fc1 w, b
            wspec(F, D), wspec(1, D),                            # mlp fc2 w, b
            cspec(1, D), cspec(1, D),                            # final LN w, b
            cspec(D, C), cspec(1, C),                            # head w, b
        ],
        out_specs=(
            pl.BlockSpec((1, M, D), lambda l: (l, 0, 0)),        # per-layer hidden
            pl.BlockSpec((B, C), lambda l: (0, 0)),              # logits (resident)
        ),
        out_shape=(
            jax.ShapeDtypeStruct((L, M, D), patches2d.dtype),
            jax.ShapeDtypeStruct((B, C), patches2d.dtype),
        ),
        scratch_shapes=[pltpu.VMEM((M, D), jnp.float32)],        # layer-to-layer carry
        compiler_params=pltpu.CompilerParams(
            dimension_semantics=("arbitrary",),
            vmem_limit_bytes=32 * 1024 * 1024,
        ),
    )(patches2d, pk["patch_w"], pk["patch_b"], pk["pos_emb"], pk["cls_token"],
      pk["ln1_w"], pk["ln1_b"], pk["q_w"], pk["k_w"], pk["v_w"],
      pk["out_w"], pk["out_b"], pk["ln2_w"], pk["ln2_b"],
      pk["w1"], pk["b1"], pk["w2"], pk["b2"],
      pk["ln_w"], pk["ln_b"], pk["head_w"], pk["head_b"])
    return hidden, logits


# ----------------------------------------------------------------------------
# Glue (plain JAX): patch extraction, weight packing, orchestration
# ----------------------------------------------------------------------------
def extract_patches(x, patch_size):
    # x: (B, C, H, W) NCHW; equivalent to Conv2d(kernel=stride=patch_size) im2col.
    B, C, Hh, Ww = x.shape
    p = patch_size
    x = x.reshape(B, C, Hh // p, p, Ww // p, p)
    x = x.transpose(0, 2, 4, 1, 3, 5)                   # (B, H/p, W/p, C, p, p)
    return x.reshape(B, (Hh // p) * (Ww // p), C * p * p)


def pack_params(params, num_heads):
    """Stack per-layer weights along a layer axis and repack attention weights
    head-major; fold the 1/sqrt(head_dim) scale into the q weights."""
    D = params["patch_w"].shape[1]
    H = num_heads
    hd = D // H
    scale = float(hd) ** -0.5
    blocks = params["blocks"]

    def stack(name):
        return jnp.stack([blk[name] for blk in blocks], axis=0)

    qkv = stack("qkv_w")                                  # (L, D, 3D)
    q_w = qkv[:, :, 0 * D:1 * D] * scale                  # fold attention scale
    k_w = qkv[:, :, 1 * D:2 * D]
    v_w = qkv[:, :, 2 * D:3 * D]

    def head_major(w):                                    # (L, D, D) -> (L, H, D, hd)
        return jnp.transpose(w.reshape(w.shape[0], D, H, hd), (0, 2, 1, 3))

    return {
        "patch_w": params["patch_w"], "patch_b": params["patch_b"],
        "pos_emb": params["pos_emb"][0],                  # (NP, D)
        "cls_token": params["cls_token"][0],              # (1, D)
        "ln1_w": stack("ln1_w"), "ln1_b": stack("ln1_b"),
        "q_w": head_major(q_w), "k_w": head_major(k_w), "v_w": head_major(v_w),
        "out_w": stack("out_w").reshape(-1, H, hd, D),    # (L, H, hd, D)
        "out_b": stack("out_b"),
        "ln2_w": stack("ln2_w"), "ln2_b": stack("ln2_b"),
        "w1": stack("w1"), "b1": stack("b1"),
        "w2": stack("w2"), "b2": stack("b2"),
        "ln_w": params["ln_w"], "ln_b": params["ln_b"],
        "head_w": params["head_w"], "head_b": params["head_b"],
    }


def my_vit_forward(x, params, num_heads):
    patches = extract_patches(x, params["patch_size"])    # (B, NP, C*p*p)
    B, NP, P = patches.shape
    D = params["patch_w"].shape[1]
    N = NP + 1

    pk = pack_params(params, num_heads)
    hidden_flat, logits = vit_fused(patches.reshape(B * NP, P), pk,
                                    num_heads=num_heads, batch=B, n_patches=NP)
    hidden = hidden_flat.reshape(-1, B, N, D)              # (L, B, N, D)
    hidden_states_out = [hidden[l] for l in range(hidden.shape[0])]
    return logits, hidden_states_out


# ----------------------------------------------------------------------------
# Deterministic synthetic parameters + pure-JAX reference (for self-check)
# ----------------------------------------------------------------------------
def init_params(key, in_channels, img_size, patch_size, hidden, mlp_dim,
                num_layers, num_classes, dtype=jnp.float32):
    Hh, Ww = img_size
    n_patches = (Hh // patch_size) * (Ww // patch_size)
    P = in_channels * patch_size * patch_size

    def normal(k, shape, scale=0.02):
        return (scale * jax.random.normal(k, shape, jnp.float32)).astype(dtype)

    keys = iter(jax.random.split(key, 3 + 4 * num_layers))
    params = {
        "patch_size": patch_size,
        "patch_w": normal(next(keys), (P, hidden)),        # flattened conv weight
        "patch_b": jnp.zeros((1, hidden), dtype),
        "pos_emb": normal(next(keys), (1, n_patches, hidden)),
        "cls_token": jnp.zeros((1, 1, hidden), dtype),     # nn.Parameter(zeros)
        "ln_w": jnp.ones((1, hidden), dtype),
        "ln_b": jnp.zeros((1, hidden), dtype),
        "head_w": normal(next(keys), (hidden, num_classes)),
        "head_b": jnp.zeros((1, num_classes), dtype),
        "blocks": [],
    }
    for _ in range(num_layers):
        params["blocks"].append({
            "ln1_w": jnp.ones((1, hidden), dtype),
            "ln1_b": jnp.zeros((1, hidden), dtype),
            "qkv_w": normal(next(keys), (hidden, 3 * hidden)),   # qkv_bias=False
            "out_w": normal(next(keys), (hidden, hidden)),
            "out_b": jnp.zeros((1, hidden), dtype),
            "ln2_w": jnp.ones((1, hidden), dtype),
            "ln2_b": jnp.zeros((1, hidden), dtype),
            "w1": normal(next(keys), (hidden, mlp_dim)),
            "b1": jnp.zeros((1, mlp_dim), dtype),
            "w2": normal(next(keys), (mlp_dim, hidden)),
            "b2": jnp.zeros((1, hidden), dtype),
        })
    return params


def reference_forward(x, params, num_heads):
    patches = extract_patches(x, params["patch_size"])
    B, NP, P = patches.shape
    D = params["patch_w"].shape[1]
    H = num_heads
    hd = D // H
    tok = patches.reshape(B * NP, P) @ params["patch_w"] + params["patch_b"]
    tok = tok.reshape(B, NP, D) + params["pos_emb"]
    cls = jnp.broadcast_to(params["cls_token"], (B, 1, D))
    h = jnp.concatenate([cls, tok], axis=1)
    hidden_states = []
    for blk in params["blocks"]:
        xn = _layernorm(h, blk["ln1_w"], blk["ln1_b"])
        q, k, v = jnp.split(xn @ blk["qkv_w"], 3, axis=-1)
        q = q.reshape(B, -1, H, hd).transpose(0, 2, 1, 3) * hd ** -0.5
        k = k.reshape(B, -1, H, hd).transpose(0, 2, 1, 3)
        v = v.reshape(B, -1, H, hd).transpose(0, 2, 1, 3)
        a = jax.nn.softmax(jnp.einsum('bhqe,bhke->bhqk', q, k), axis=-1)
        o = jnp.einsum('bhqk,bhke->bhqe', a, v).transpose(0, 2, 1, 3).reshape(B, -1, D)
        h = h + o @ blk["out_w"] + blk["out_b"]
        xn2 = _layernorm(h, blk["ln2_w"], blk["ln2_b"])
        h = h + _gelu_tanh(xn2 @ blk["w1"] + blk["b1"]) @ blk["w2"] + blk["b2"]
        hidden_states.append(h)
    hn = _layernorm(h, params["ln_w"], params["ln_b"])
    logits = jax.nn.sigmoid(hn[:, 0] @ params["head_w"] + params["head_b"])
    return logits, hidden_states


# ----------------------------------------------------------------------------
if __name__ == "__main__":
    # Small config consistent with the module: spatial_dims=2, in_channels=4,
    # img_size=16, patch_size=8, hidden_size=64, mlp_dim=128, num_layers=2,
    # num_heads=4, classification=True (Sigmoid head), num_classes=2,
    # dropout_rate=0.0, qkv_bias=False, mode_classification='cls'.
    B, Cin, Him, Wim = 2, 4, 16, 16
    patch_size = 8
    hidden, mlp_dim, num_layers, num_heads, num_classes = 64, 128, 2, 4, 2

    key = jax.random.PRNGKey(0)
    kx, kp = jax.random.split(key)
    x = jax.random.normal(kx, (B, Cin, Him, Wim), jnp.float32)
    params = init_params(kp, Cin, (Him, Wim), patch_size, hidden, mlp_dim,
                         num_layers, num_classes)

    out, hidden_states = my_vit_forward(x, params, num_heads)
    out, hidden_states = jax.block_until_ready((out, hidden_states))

    n_patches = (Him // patch_size) * (Wim // patch_size)
    assert out.shape == (B, num_classes)
    assert len(hidden_states) == num_layers
    assert all(h.shape == (B, n_patches + 1, hidden) for h in hidden_states)
    assert bool(jnp.all(jnp.isfinite(out)))

    # Numerical self-check against a pure-JAX reference (tolerance covers the
    # approx-reciprocal softmax denominator).
    ref_out, ref_hidden = reference_forward(x, params, num_heads)
    assert bool(jnp.allclose(out, ref_out, atol=2e-2, rtol=2e-2))
    for hk, hr in zip(hidden_states, ref_hidden):
        assert bool(jnp.allclose(hk, hr, atol=2e-2, rtol=2e-2))

    print("KERNEL_OK")
</pallas_src>

<mosaic_0001>
module attributes {stable_mosaic.version = 11 : i64} {
  func.func @_vit_fused_kernel(%arg0: i32, %arg1: memref<8x256xf32, #tpu.memory_space<vmem>>, %arg2: memref<256x64xf32, #tpu.memory_space<vmem>>, %arg3: memref<1x64xf32, #tpu.memory_space<vmem>>, %arg4: memref<4x64xf32, #tpu.memory_space<vmem>>, %arg5: memref<1x64xf32, #tpu.memory_space<vmem>>, %arg6: memref<1x1x64xf32, #tpu.memory_space<vmem>>, %arg7: memref<1x1x64xf32, #tpu.memory_space<vmem>>, %arg8: memref<1x4x64x16xf32, #tpu.memory_space<vmem>>, %arg9: memref<1x4x64x16xf32, #tpu.memory_space<vmem>>, %arg10: memref<1x4x64x16xf32, #tpu.memory_space<vmem>>, %arg11: memref<1x4x16x64xf32, #tpu.memory_space<vmem>>, %arg12: memref<1x1x64xf32, #tpu.memory_space<vmem>>, %arg13: memref<1x1x64xf32, #tpu.memory_space<vmem>>, %arg14: memref<1x1x64xf32, #tpu.memory_space<vmem>>, %arg15: memref<1x64x128xf32, #tpu.memory_space<vmem>>, %arg16: memref<1x1x128xf32, #tpu.memory_space<vmem>>, %arg17: memref<1x128x64xf32, #tpu.memory_space<vmem>>, %arg18: memref<1x1x64xf32, #tpu.memory_space<vmem>>, %arg19: memref<1x64xf32, #tpu.memory_space<vmem>>, %arg20: memref<1x64xf32, #tpu.memory_space<vmem>>, %arg21: memref<64x2xf32, #tpu.memory_space<vmem>>, %arg22: memref<1x2xf32, #tpu.memory_space<vmem>>, %arg23: memref<1x10x64xf32, #tpu.memory_space<vmem>>, %arg24: memref<2x2xf32, #tpu.memory_space<vmem>>, %arg25: memref<10x64xf32, #tpu.memory_space<vmem>>) attributes {dimension_semantics = [#tpu.dimension_semantics<arbitrary>], iteration_bounds = array<i64: 2>, scalar_prefetch = 0 : i64, scratch_operands = 1 : i64, tpu.core_type = #tpu.core_type<tc>, window_params = [{pipeline_mode = #tpu.pipeline_mode<synchronous>, transform_indices = @transform_0, window_bounds = array<i64: 8, 256>}, {pipeline_mode = #tpu.pipeline_mode<synchronous>, transform_indices = @transform_1, window_bounds = array<i64: 256, 64>}, {pipeline_mode = #tpu.pipeline_mode<synchronous>, transform_indices = @transform_2, window_bounds = array<i64: 1, 64>}, {pipeline_mode = #tpu.pipeline_mode<synchronous>, transform_indices = @transform_3, window_bounds = array<i64: 4, 64>}, {pipeline_mode = #tpu.pipeline_mode<synchronous>, transform_indices = @transform_4, window_bounds = array<i64: 1, 64>}, {transform_indices = @transform_5, window_bounds = array<i64: 1, 1, 64>}, {transform_indices = @transform_6, window_bounds = array<i64: 1, 1, 64>}, {transform_indices = @transform_7, window_bounds = array<i64: 1, 4, 64, 16>}, {transform_indices = @transform_8, window_bounds = array<i64: 1, 4, 64, 16>}, {transform_indices = @transform_9, window_bounds = array<i64: 1, 4, 64, 16>}, {transform_indices = @transform_10, window_bounds = array<i64: 1, 4, 16, 64>}, {transform_indices = @transform_11, window_bounds = array<i64: 1, 1, 64>}, {transform_indices = @transform_12, window_bounds = array<i64: 1, 1, 64>}, {transform_indices = @transform_13, window_bounds = array<i64: 1, 1, 64>}, {transform_indices = @transform_14, window_bounds = array<i64: 1, 64, 128>}, {transform_indices = @transform_15, window_bounds = array<i64: 1, 1, 128>}, {transform_indices = @transform_16, window_bounds = array<i64: 1, 128, 64>}, {transform_indices = @transform_17, window_bounds = array<i64: 1, 1, 64>}, {pipeline_mode = #tpu.pipeline_mode<synchronous>, transform_indices = @transform_18, window_bounds = array<i64: 1, 64>}, {pipeline_mode = #tpu.pipeline_mode<synchronous>, transform_indices = @transform_19, window_bounds = array<i64: 1, 64>}, {pipeline_mode = #tpu.pipeline_mode<synchronous>, transform_indices = @transform_20, window_bounds = array<i64: 64, 2>}, {pipeline_mode = #tpu.pipeline_mode<synchronous>, transform_indices = @transform_21, window_bounds = array<i64: 1, 2>}, {transform_indices = @transform_22, window_bounds = array<i64: 1, 10, 64>}, {pipeline_mode = #tpu.pipeline_mode<synchronous>, transform_indices = @transform_23, window_bounds = array<i64: 2, 2>}]} {
    %c0_i32 = arith.constant 0 : i32
    %0 = arith.cmpi eq, %arg0, %c0_i32 : i32
    %1 = arith.extui %0 : i1 to i32
    %c0_i32_0 = arith.constant 0 : i32
    %2 = arith.cmpi ne, %1, %c0_i32_0 : i32
    scf.if %2 {
      %c0_75 = arith.constant 0 : index
      %c0_76 = arith.constant 0 : index
      %128 = vector.load %arg1[%c0_75, %c0_76] : memref<8x256xf32, #tpu.memory_space<vmem>>, vector<8x256xf32>
      %c0_77 = arith.constant 0 : index
      %c0_78 = arith.constant 0 : index
      %129 = vector.load %arg2[%c0_77, %c0_78] : memref<256x64xf32, #tpu.memory_space<vmem>>, vector<256x64xf32>
      %cst_79 = arith.constant dense<0.000000e+00> : vector<8x64xf32>
      %130 = tpu.matmul %128, %129, %cst_79 {dimension_numbers = #tpu.dot_dimension_numbers<[1], [0], [0], [1], [0, 0, 1, 1], [], []>} : vector<8x256xf32>, vector<256x64xf32>, vector<8x64xf32> -> vector<8x64xf32>
      %c0_80 = arith.constant 0 : index
      %c0_81 = arith.constant 0 : index
      %131 = vector.load %arg3[%c0_80, %c0_81] : memref<1x64xf32, #tpu.memory_space<vmem>>, vector<1x64xf32>
      %132 = vector.broadcast %131 : vector<1x64xf32> to vector<8x64xf32>
      %133 = arith.addf %130, %132 : vector<8x64xf32>
      %c0_82 = arith.constant 0 : index
      %c0_83 = arith.constant 0 : index
      %134 = vector.load %arg4[%c0_82, %c0_83] : memref<4x64xf32, #tpu.memory_space<vmem>>, vector<4x64xf32>
      %c0_84 = arith.constant 0 : index
      %c0_85 = arith.constant 0 : index
      %135 = vector.load %arg5[%c0_84, %c0_85] : memref<1x64xf32, #tpu.memory_space<vmem>>, vector<1x64xf32>
      %c0_86 = arith.constant 0 : index
      %c0_87 = arith.constant 0 : index
      %136 = vector.load %arg25[%c0_86, %c0_87] : memref<10x64xf32, #tpu.memory_space<vmem>>, vector<1x64xf32>
      tpu.vector_store %arg25[%c0_86, %c0_87], %135 {strides = array<i32>} : memref<10x64xf32, #tpu.memory_space<vmem>>, vector<1x64xf32>,
      %137 = vector.extract_strided_slice %133 {offsets = [0, 0], sizes = [4, 64], strides = [1, 1]} : vector<8x64xf32> to vector<4x64xf32>
      %138 = arith.addf %137, %134 : vector<4x64xf32>
      %c1 = arith.constant 1 : index
      %c0_88 = arith.constant 0 : index
      %139 = vector.load %arg25[%c1, %c0_88] : memref<10x64xf32, #tpu.memory_space<vmem>>, vector<4x64xf32>
      tpu.vector_store %arg25[%c1, %c0_88], %138 {strides = array<i32>} : memref<10x64xf32, #tpu.memory_space<vmem>>, vector<4x64xf32>,
      %c5 = arith.constant 5 : index
      %c0_89 = arith.constant 0 : index
      %140 = vector.load %arg25[%c5, %c0_89] : memref<10x64xf32, #tpu.memory_space<vmem>>, vector<1x64xf32>
      tpu.vector_store %arg25[%c5, %c0_89], %135 {strides = array<i32>} : memref<10x64xf32, #tpu.memory_space<vmem>>, vector<1x64xf32>,
      %141 = vector.extract_strided_slice %133 {offsets = [4, 0], sizes = [4, 64], strides = [1, 1]} : vector<8x64xf32> to vector<4x64xf32>
      %142 = arith.addf %141, %134 : vector<4x64xf32>
      %c6 = arith.constant 6 : index
      %c0_90 = arith.constant 0 : index
      %143 = vector.load %arg25[%c6, %c0_90] : memref<10x64xf32, #tpu.memory_space<vmem>>, vector<4x64xf32>
      tpu.vector_store %arg25[%c6, %c0_90], %142 {strides = array<i32>} : memref<10x64xf32, #tpu.memory_space<vmem>>, vector<4x64xf32>,
    } else {
    }
    %c0 = arith.constant 0 : index
    %c0_1 = arith.constant 0 : index
    %3 = vector.load %arg25[%c0, %c0_1] : memref<10x64xf32, #tpu.memory_space<vmem>>, vector<10x64xf32>
    %c0_2 = arith.constant 0 : index
    %c0_3 = arith.constant 0 : index
    %c0_4 = arith.constant 0 : index
    %4 = vector.load %arg6[%c0_2, %c0_3, %c0_4] : memref<1x1x64xf32, #tpu.memory_space<vmem>>, vector<1x1x64xf32>
    %5 = vector.shape_cast %4 : vector<1x1x64xf32> to vector<1x64xf32>
    %c0_5 = arith.constant 0 : index
    %c0_6 = arith.constant 0 : index
    %c0_7 = arith.constant 0 : index
    %6 = vector.load %arg7[%c0_5, %c0_6, %c0_7] : memref<1x1x64xf32, #tpu.memory_space<vmem>>, vector<1x1x64xf32>
    %7 = vector.shape_cast %6 : vector<1x1x64xf32> to vector<1x64xf32>
    %cst = arith.constant dense<0.000000e+00> : vector<10xf32>
    %8 = vector.multi_reduction <add>, %3, %cst [1] : vector<10x64xf32> to vector<10xf32>
    %9 = vector.shape_cast %8 : vector<10xf32> to vector<10x1xf32>
    %cst_8 = arith.constant 6.400000e+01 : f32
    %10 = vector.broadcast %cst_8 : f32 to vector<10x1xf32>
    %11 = arith.divf %9, %10 : vector<10x1xf32>
    %12 = vector.broadcast %11 : vector<10x1xf32> to vector<10x64xf32>
    %13 = arith.subf %3, %12 : vector<10x64xf32>
    %14 = arith.mulf %13, %13 : vector<10x64xf32>
    %cst_9 = arith.constant dense<0.000000e+00> : vector<10xf32>
    %15 = vector.multi_reduction <add>, %14, %cst_9 [1] : vector<10x64xf32> to vector<10xf32>
    %16 = vector.shape_cast %15 : vector<10xf32> to vector<10x1xf32>
    %cst_10 = arith.constant 6.400000e+01 : f32
    %17 = vector.broadcast %cst_10 : f32 to vector<10x1xf32>
    %18 = arith.divf %16, %17 : vector<10x1xf32>
    %19 = vector.broadcast %11 : vector<10x1xf32> to vector<10x64xf32>
    %20 = arith.subf %3, %19 : vector<10x64xf32>
    %cst_11 = arith.constant 9.99999974E-6 : f32
    %21 = vector.broadcast %cst_11 : f32 to vector<10x1xf32>
    %22 = arith.addf %18, %21 : vector<10x1xf32>
    %23 = math.rsqrt %22 : vector<10x1xf32>
    %24 = vector.broadcast %23 : vector<10x1xf32> to vector<10x64xf32>
    %25 = arith.mulf %20, %24 : vector<10x64xf32>
    %26 = vector.broadcast %5 : vector<1x64xf32> to vector<10x64xf32>
    %27 = arith.mulf %25, %26 : vector<10x64xf32>
    %28 = vector.broadcast %7 : vector<1x64xf32> to vector<10x64xf32>
    %29 = arith.addf %27, %28 : vector<10x64xf32>
    %30 = vector.shape_cast %29 : vector<10x64xf32> to vector<1x10x64xf32>
    %31 = vector.shape_cast %30 : vector<1x10x64xf32> to vector<1x10x64xf32>
    %32 = vector.broadcast %31 : vector<1x10x64xf32> to vector<4x10x64xf32>
    %c0_12 = arith.constant 0 : index
    %c0_13 = arith.constant 0 : index
    %c0_14 = arith.constant 0 : index
    %c0_15 = arith.constant 0 : index
    %33 = vector.load %arg8[%c0_12, %c0_13, %c0_14, %c0_15] : memref<1x4x64x16xf32, #tpu.memory_space<vmem>>, vector<1x4x64x16xf32>
    %34 = vector.shape_cast %33 : vector<1x4x64x16xf32> to vector<4x64x16xf32>
    "tpu.trace_start"() <{level = 10 : i32, message = "hmd,hde->hme"}> : () -> ()
    %cst_16 = arith.constant dense<0.000000e+00> : vector<4x10x16xf32>
    %35 = tpu.matmul %32, %34, %cst_16 {dimension_numbers = #tpu.dot_dimension_numbers<[2], [1], [1], [2], [0, 0, 0, 1, 1, 2], [0], [0]>} : vector<4x10x64xf32>, vector<4x64x16xf32>, vector<4x10x16xf32> -> vector<4x10x16xf32>
    "tpu.trace_stop"() : () -> ()
    %c0_17 = arith.constant 0 : index
    %c0_18 = arith.constant 0 : index
    %c0_19 = arith.constant 0 : index
    %c0_20 = arith.constant 0 : index
    %36 = vector.load %arg9[%c0_17, %c0_18, %c0_19, %c0_20] : memref<1x4x64x16xf32, #tpu.memory_space<vmem>>, vector<1x4x64x16xf32>
    %37 = vector.shape_cast %36 : vector<1x4x64x16xf32> to vector<4x64x16xf32>
    "tpu.trace_start"() <{level = 10 : i32, message = "hmd,hde->hme"}> : () -> ()
    %cst_21 = arith.constant dense<0.000000e+00> : vector<4x10x16xf32>
    %38 = tpu.matmul %32, %37, %cst_21 {dimension_numbers = #tpu.dot_dimension_numbers<[2], [1], [1], [2], [0, 0, 0, 1, 1, 2], [0], [0]>} : vector<4x10x64xf32>, vector<4x64x16xf32>, vector<4x10x16xf32> -> vector<4x10x16xf32>
    "tpu.trace_stop"() : () -> ()
    %c0_22 = arith.constant 0 : index
    %c0_23 = arith.constant 0 : index
    %c0_24 = arith.constant 0 : index
    %c0_25 = arith.constant 0 : index
    %39 = vector.load %arg10[%c0_22, %c0_23, %c0_24, %c0_25] : memref<1x4x64x16xf32, #tpu.memory_space<vmem>>, vector<1x4x64x16xf32>
    %40 = vector.shape_cast %39 : vector<1x4x64x16xf32> to vector<4x64x16xf32>
    "tpu.trace_start"() <{level = 10 : i32, message = "hmd,hde->hme"}> : () -> ()
    %cst_26 = arith.constant dense<0.000000e+00> : vector<4x10x16xf32>
    %41 = tpu.matmul %32, %40, %cst_26 {dimension_numbers = #tpu.dot_dimension_numbers<[2], [1], [1], [2], [0, 0, 0, 1, 1, 2], [0], [0]>} : vector<4x10x64xf32>, vector<4x64x16xf32>, vector<4x10x16xf32> -> vector<4x10x16xf32>
    "tpu.trace_stop"() : () -> ()
    %42 = vector.shape_cast %35 : vector<4x10x16xf32> to vector<8x5x16xf32>
    %43 = vector.shape_cast %38 : vector<4x10x16xf32> to vector<8x5x16xf32>
    %44 = vector.shape_cast %41 : vector<4x10x16xf32> to vector<8x5x16xf32>
    "tpu.trace_start"() <{level = 10 : i32, message = "zqe,zke->zqk"}> : () -> ()
    %cst_27 = arith.constant dense<0.000000e+00> : vector<8x5x5xf32>
    %45 = tpu.matmul %42, %43, %cst_27 {dimension_numbers = #tpu.dot_dimension_numbers<[2], [2], [1], [1], [0, 0, 0, 1, 1, 1], [0], [0]>} : vector<8x5x16xf32>, vector<8x5x16xf32>, vector<8x5x5xf32> -> vector<8x5x5xf32>
    "tpu.trace_stop"() : () -> ()
    %cst_28 = arith.constant dense<0xFF800000> : vector<8x5xf32>
    %46 = vector.multi_reduction <maximumf>, %45, %cst_28 [2] : vector<8x5x5xf32> to vector<8x5xf32>
    %47 = vector.shape_cast %46 : vector<8x5xf32> to vector<8x5x1xf32>
    %48 = vector.broadcast %47 : vector<8x5x1xf32> to vector<8x5x5xf32>
    %49 = arith.subf %45, %48 : vector<8x5x5xf32>
    %50 = math.exp %49 : vector<8x5x5xf32>
    %cst_29 = arith.constant dense<0.000000e+00> : vector<8x5xf32>
    %51 = vector.multi_reduction <add>, %50, %cst_29 [2] : vector<8x5x5xf32> to vector<8x5xf32>
    %52 = vector.shape_cast %51 : vector<8x5xf32> to vector<8x5x1xf32>
    %53 = tpu.reciprocal %52 {approx = true} : vector<8x5x1xf32> -> vector<8x5x1xf32>
    %54 = vector.broadcast %53 : vector<8x5x1xf32> to vector<8x5x5xf32>
    %55 = arith.mulf %50, %54 : vector<8x5x5xf32>
    "tpu.trace_start"() <{level = 10 : i32, message = "zqk,zke->zqe"}> : () -> ()
    %cst_30 = arith.constant dense<0.000000e+00> : vector<8x5x16xf32>
    %56 = tpu.matmul %55, %44, %cst_30 {dimension_numbers = #tpu.dot_dimension_numbers<[2], [1], [1], [2], [0, 0, 0, 1, 1, 2], [0], [0]>} : vector<8x5x5xf32>, vector<8x5x16xf32>, vector<8x5x16xf32> -> vector<8x5x16xf32>
    "tpu.trace_stop"() : () -> ()
    %57 = vector.shape_cast %56 : vector<8x5x16xf32> to vector<4x10x16xf32>
    %c0_31 = arith.constant 0 : index
    %c0_32 = arith.constant 0 : index
    %c0_33 = arith.constant 0 : index
    %c0_34 = arith.constant 0 : index
    %58 = vector.load %arg11[%c0_31, %c0_32, %c0_33, %c0_34] : memref<1x4x16x64xf32, #tpu.memory_space<vmem>>, vector<1x4x16x64xf32>
    %59 = vector.shape_cast %58 : vector<1x4x16x64xf32> to vector<4x16x64xf32>
    "tpu.trace_start"() <{level = 10 : i32, message = "hme,hed->hmd"}> : () -> ()
    %cst_35 = arith.constant dense<0.000000e+00> : vector<4x10x64xf32>
    %60 = tpu.matmul %57, %59, %cst_35 {dimension_numbers = #tpu.dot_dimension_numbers<[2], [1], [1], [2], [0, 0, 0, 1, 1, 2], [0], [0]>} : vector<4x10x16xf32>, vector<4x16x64xf32>, vector<4x10x64xf32> -> vector<4x10x64xf32>
    "tpu.trace_stop"() : () -> ()
    %cst_36 = arith.constant dense<0.000000e+00> : vector<10x64xf32>
    %61 = vector.multi_reduction <add>, %60, %cst_36 [0] : vector<4x10x64xf32> to vector<10x64xf32>
    %62 = arith.addf %3, %61 : vector<10x64xf32>
    %c0_37 = arith.constant 0 : index
    %c0_38 = arith.constant 0 : index
    %c0_39 = arith.constant 0 : index
    %63 = vector.load %arg12[%c0_37, %c0_38, %c0_39] : memref<1x1x64xf32, #tpu.memory_space<vmem>>, vector<1x1x64xf32>
    %64 = vector.shape_cast %63 : vector<1x1x64xf32> to vector<1x64xf32>
    %65 = vector.broadcast %64 : vector<1x64xf32> to vector<10x64xf32>
    %66 = arith.addf %62, %65 : vector<10x64xf32>
    %c0_40 = arith.constant 0 : index
    %c0_41 = arith.constant 0 : index
    %c0_42 = arith.constant 0 : index
    %67 = vector.load %arg13[%c0_40, %c0_41, %c0_42] : memref<1x1x64xf32, #tpu.memory_space<vmem>>, vector<1x1x64xf32>
    %68 = vector.shape_cast %67 : vector<1x1x64xf32> to vector<1x64xf32>
    %c0_43 = arith.constant 0 : index
    %c0_44 = arith.constant 0 : index
    %c0_45 = arith.constant 0 : index
    %69 = vector.load %arg14[%c0_43, %c0_44, %c0_45] : memref<1x1x64xf32, #tpu.memory_space<vmem>>, vector<1x1x64xf32>
    %70 = vector.shape_cast %69 : vector<1x1x64xf32> to vector<1x64xf32>
    %cst_46 = arith.constant dense<0.000000e+00> : vector<10xf32>
    %71 = vector.multi_reduction <add>, %66, %cst_46 [1] : vector<10x64xf32> to vector<10xf32>
    %72 = vector.shape_cast %71 : vector<10xf32> to vector<10x1xf32>
    %cst_47 = arith.constant 6.400000e+01 : f32
    %73 = vector.broadcast %cst_47 : f32 to vector<10x1xf32>
    %74 = arith.divf %72, %73 : vector<10x1xf32>
    %75 = vector.broadcast %74 : vector<10x1xf32> to vector<10x64xf32>
    %76 = arith.subf %66, %75 : vector<10x64xf32>
    %77 = arith.mulf %76, %76 : vector<10x64xf32>
    %cst_48 = arith.constant dense<0.000000e+00> : vector<10xf32>
    %78 = vector.multi_reduction <add>, %77, %cst_48 [1] : vector<10x64xf32> to vector<10xf32>
    %79 = vector.shape_cast %78 : vector<10xf32> to vector<10x1xf32>
    %cst_49 = arith.constant 6.400000e+01 : f32
    %80 = vector.broadcast %cst_49 : f32 to vector<10x1xf32>
    %81 = arith.divf %79, %80 : vector<10x1xf32>
    %82 = vector.broadcast %74 : vector<10x1xf32> to vector<10x64xf32>
    %83 = arith.subf %66, %82 : vector<10x64xf32>
    %cst_50 = arith.constant 9.99999974E-6 : f32
    %84 = vector.broadcast %cst_50 : f32 to vector<10x1xf32>
    %85 = arith.addf %81, %84 : vector<10x1xf32>
    %86 = math.rsqrt %85 : vector<10x1xf32>
    %87 = vector.broadcast %86 : vector<10x1xf32> to vector<10x64xf32>
    %88 = arith.mulf %83, %87 : vector<10x64xf32>
    %89 = vector.broadcast %68 : vector<1x64xf32> to vector<10x64xf32>
    %90 = arith.mulf %88, %89 : vector<10x64xf32>
    %91 = vector.broadcast %70 : vector<1x64xf32> to vector<10x64xf32>
    %92 = arith.addf %90, %91 : vector<10x64xf32>
    %c0_51 = arith.constant 0 : index
    %c0_52 = arith.constant 0 : index
    %c0_53 = arith.constant 0 : index
    %93 = vector.load %arg15[%c0_51, %c0_52, %c0_53] : memref<1x64x128xf32, #tpu.memory_space<vmem>>, vector<1x64x128xf32>
    %94 = vector.shape_cast %93 : vector<1x64x128xf32> to vector<64x128xf32>
    %cst_54 = arith.constant dense<0.000000e+00> : vector<10x128xf32>
    %95 = tpu.matmul %92, %94, %cst_54 {dimension_numbers = #tpu.dot_dimension_numbers<[1], [0], [0], [1], [0, 0, 1, 1], [], []>} : vector<10x64xf32>, vector<64x128xf32>, vector<10x128xf32> -> vector<10x128xf32>
    %c0_55 = arith.constant 0 : index
    %c0_56 = arith.constant 0 : index
    %c0_57 = arith.constant 0 : index
    %96 = vector.load %arg16[%c0_55, %c0_56, %c0_57] : memref<1x1x128xf32, #tpu.memory_space<vmem>>, vector<1x1x128xf32>
    %97 = vector.shape_cast %96 : vector<1x1x128xf32> to vector<1x128xf32>
    %98 = vector.broadcast %97 : vector<1x128xf32> to vector<10x128xf32>
    %99 = arith.addf %95, %98 : vector<10x128xf32>
    %cst_58 = arith.constant 5.000000e-01 : f32
    %100 = vector.broadcast %cst_58 : f32 to vector<10x128xf32>
    %101 = arith.mulf %100, %99 : vector<10x128xf32>
    %102 = arith.mulf %99, %99 : vector<10x128xf32>
    %103 = arith.mulf %102, %99 : vector<10x128xf32>
    %cst_59 = arith.constant 4.471500e-02 : f32
    %104 = vector.broadcast %cst_59 : f32 to vector<10x128xf32>
    %105 = arith.mulf %104, %103 : vector<10x128xf32>
    %106 = arith.addf %99, %105 : vector<10x128xf32>
    %cst_60 = arith.constant 0.797884583 : f32
    %107 = vector.broadcast %cst_60 : f32 to vector<10x128xf32>
    %108 = arith.mulf %107, %106 : vector<10x128xf32>
    %109 = math.tanh %108 : vector<10x128xf32>
    %cst_61 = arith.constant 1.000000e+00 : f32
    %110 = vector.broadcast %cst_61 : f32 to vector<10x128xf32>
    %111 = arith.addf %110, %109 : vector<10x128xf32>
    %112 = arith.mulf %101, %111 : vector<10x128xf32>
    %c0_62 = arith.constant 0 : index
    %c0_63 = arith.constant 0 : index
    %c0_64 = arith.constant 0 : index
    %113 = vector.load %arg17[%c0_62, %c0_63, %c0_64] : memref<1x128x64xf32, #tpu.memory_space<vmem>>, vector<1x128x64xf32>
    %114 = vector.shape_cast %113 : vector<1x128x64xf32> to vector<128x64xf32>
    %cst_65 = arith.constant dense<0.000000e+00> : vector<10x64xf32>
    %115 = tpu.matmul %112, %114, %cst_65 {dimension_numbers = #tpu.dot_dimension_numbers<[1], [0], [0], [1], [0, 0, 1, 1], [], []>} : vector<10x128xf32>, vector<128x64xf32>, vector<10x64xf32> -> vector<10x64xf32>
    %c0_66 = arith.constant 0 : index
    %c0_67 = arith.constant 0 : index
    %c0_68 = arith.constant 0 : index
    %116 = vector.load %arg18[%c0_66, %c0_67, %c0_68] : memref<1x1x64xf32, #tpu.memory_space<vmem>>, vector<1x1x64xf32>
    %117 = vector.shape_cast %116 : vector<1x1x64xf32> to vector<1x64xf32>
    %118 = vector.broadcast %117 : vector<1x64xf32> to vector<10x64xf32>
    %119 = arith.addf %115, %118 : vector<10x64xf32>
    %120 = arith.addf %66, %119 : vector<10x64xf32>
    %c0_69 = arith.constant 0 : index
    %c0_70 = arith.constant 0 : index
    %121 = vector.load %arg25[%c0_69, %c0_70] : memref<10x64xf32, #tpu.memory_space<vmem>>, vector<10x64xf32>
    tpu.vector_store %arg25[%c0_69, %c0_70], %120 {strides = array<i32>} : memref<10x64xf32, #tpu.memory_space<vmem>>, vector<10x64xf32>,
    %c0_71 = arith.constant 0 : index
    %c0_72 = arith.constant 0 : index
    %c0_73 = arith.constant 0 : index
    %122 = vector.load %arg23[%c0_71, %c0_72, %c0_73] : memref<1x10x64xf32, #tpu.memory_space<vmem>>, vector<1x10x64xf32>
    %123 = vector.shape_cast %122 : vector<1x10x64xf32> to vector<10x64xf32>
    %124 = vector.shape_cast %120 : vector<10x64xf32> to vector<1x10x64xf32>
    tpu.vector_store %arg23[%c0_71, %c0_72, %c0_73], %124 {strides = array<i32>} : memref<1x10x64xf32, #tpu.memory_space<vmem>>, vector<1x10x64xf32>,
    %c1_i32 = arith.constant 1 : i32
    %125 = arith.cmpi eq, %arg0, %c1_i32 : i32
    %126 = arith.extui %125 : i1 to i32
    %c0_i32_74 = arith.constant 0 : i32
    %127 = arith.cmpi ne, %126, %c0_i32_74 : i32
    scf.if %127 {
      %128 = vector.shape_cast %120 : vector<10x64xf32> to vector<2x5x64xf32>
      %129 = vector.extract_strided_slice %128 {offsets = [0, 0, 0], sizes = [2, 1, 64], strides = [1, 1, 1]} : vector<2x5x64xf32> to vector<2x1x64xf32>
      %130 = vector.shape_cast %129 : vector<2x1x64xf32> to vector<2x64xf32>
      %c0_75 = arith.constant 0 : index
      %c0_76 = arith.constant 0 : index
      %131 = vector.load %arg19[%c0_75, %c0_76] : memref<1x64xf32, #tpu.memory_space<vmem>>, vector<1x64xf32>
      %c0_77 = arith.constant 0 : index
      %c0_78 = arith.constant 0 : index
      %132 = vector.load %arg20[%c0_77, %c0_78] : memref<1x64xf32, #tpu.memory_space<vmem>>, vector<1x64xf32>
      %cst_79 = arith.constant dense<0.000000e+00> : vector<2xf32>
      %133 = vector.multi_reduction <add>, %130, %cst_79 [1] : vector<2x64xf32> to vector<2xf32>
      %134 = vector.shape_cast %133 : vector<2xf32> to vector<2x1xf32>
      %cst_80 = arith.constant 6.400000e+01 : f32
      %135 = vector.broadcast %cst_80 : f32 to vector<2x1xf32>
      %136 = arith.divf %134, %135 : vector<2x1xf32>
      %137 = vector.broadcast %136 : vector<2x1xf32> to vector<2x64xf32>
      %138 = arith.subf %130, %137 : vector<2x64xf32>
      %139 = arith.mulf %138, %138 : vector<2x64xf32>
      %cst_81 = arith.constant dense<0.000000e+00> : vector<2xf32>
      %140 = vector.multi_reduction <add>, %139, %cst_81 [1] : vector<2x64xf32> to vector<2xf32>
      %141 = vector.shape_cast %140 : vector<2xf32> to vector<2x1xf32>
      %cst_82 = arith.constant 6.400000e+01 : f32
      %142 = vector.broadcast %cst_82 : f32 to vector<2x1xf32>
      %143 = arith.divf %141, %142 : vector<2x1xf32>
      %144 = vector.broadcast %136 : vector<2x1xf32> to vector<2x64xf32>
      %145 = arith.subf %130, %144 : vector<2x64xf32>
      %cst_83 = arith.constant 9.99999974E-6 : f32
      %146 = vector.broadcast %cst_83 : f32 to vector<2x1xf32>
      %147 = arith.addf %143, %146 : vector<2x1xf32>
      %148 = math.rsqrt %147 : vector<2x1xf32>
      %149 = vector.broadcast %148 : vector<2x1xf32> to vector<2x64xf32>
      %150 = arith.mulf %145, %149 : vector<2x64xf32>
      %151 = vector.broadcast %131 : vector<1x64xf32> to vector<2x64xf32>
      %152 = arith.mulf %150, %151 : vector<2x64xf32>
      %153 = vector.broadcast %132 : vector<1x64xf32> to vector<2x64xf32>
      %154 = arith.addf %152, %153 : vector<2x64xf32>
      %c0_84 = arith.constant 0 : index
      %c0_85 = arith.constant 0 : index
      %155 = vector.load %arg21[%c0_84, %c0_85] : memref<64x2xf32, #tpu.memory_space<vmem>>, vector<64x2xf32>
      %cst_86 = arith.constant dense<0.000000e+00> : vector<2x2xf32>
      %156 = tpu.matmul %154, %155, %cst_86 {dimension_numbers = #tpu.dot_dimension_numbers<[1], [0], [0], [1], [0, 0, 1, 1], [], []>} : vector<2x64xf32>, vector<64x2xf32>, vector<2x2xf32> -> vector<2x2xf32>
      %c0_87 = arith.constant 0 : index
      %c0_88 = arith.constant 0 : index
      %157 = vector.load %arg22[%c0_87, %c0_88] : memref<1x2xf32, #tpu.memory_space<vmem>>, vector<1x2xf32>
      %158 = vector.broadcast %157 : vector<1x2xf32> to vector<2x2xf32>
      %159 = arith.addf %156, %158 : vector<2x2xf32>
      %160 = arith.negf %159 : vector<2x2xf32>
      %161 = math.exp %160 : vector<2x2xf32>
      %cst_89 = arith.constant 1.000000e+00 : f32
      %162 = vector.broadcast %cst_89 : f32 to vector<2x2xf32>
      %163 = arith.addf %162, %161 : vector<2x2xf32>
      %164 = arith.divf %162, %163 : vector<2x2xf32>
      %c0_90 = arith.constant 0 : index
      %c0_91 = arith.constant 0 : index
      %165 = vector.load %arg24[%c0_90, %c0_91] : memref<2x2xf32, #tpu.memory_space<vmem>>, vector<2x2xf32>
      tpu.vector_store %arg24[%c0_90, %c0_91], %164 {strides = array<i32>} : memref<2x2xf32, #tpu.memory_space<vmem>>, vector<2x2xf32>,
    } else {
    }
    return
  }
  func.func @transform_0(%arg0: i32) -> (i32, i32) {
    %c0_i32 = arith.constant 0 : i32
    %c0_i32_0 = arith.constant 0 : i32
    %c0_i32_1 = arith.constant 0 : i32
    return %c0_i32, %c0_i32_0 : i32, i32
  }
  func.func @transform_1(%arg0: i32) -> (i32, i32) {
    %c0_i32 = arith.constant 0 : i32
    %c0_i32_0 = arith.constant 0 : i32
    %c0_i32_1 = arith.constant 0 : i32
    return %c0_i32, %c0_i32_0 : i32, i32
  }
  func.func @transform_2(%arg0: i32) -> (i32, i32) {
    %c0_i32 = arith.constant 0 : i32
    %c0_i32_0 = arith.constant 0 : i32
    %c0_i32_1 = arith.constant 0 : i32
    return %c0_i32, %c0_i32_0 : i32, i32
  }
  func.func @transform_3(%arg0: i32) -> (i32, i32) {
    %c0_i32 = arith.constant 0 : i32
    %c0_i32_0 = arith.constant 0 : i32
    %c0_i32_1 = arith.constant 0 : i32
    return %c0_i32, %c0_i32_0 : i32, i32
  }
  func.func @transform_4(%arg0: i32) -> (i32, i32) {
    %c0_i32 = arith.constant 0 : i32
    %c0_i32_0 = arith.constant 0 : i32
    %c0_i32_1 = arith.constant 0 : i32
    return %c0_i32, %c0_i32_0 : i32, i32
  }
  func.func @transform_5(%arg0: i32) -> (i32, i32, i32) {
    %c0_i32 = arith.constant 0 : i32
    %c0_i32_0 = arith.constant 0 : i32
    %c0_i32_1 = arith.constant 0 : i32
    return %arg0, %c0_i32, %c0_i32_0 : i32, i32, i32
  }
  func.func @transform_6(%arg0: i32) -> (i32, i32, i32) {
    %c0_i32 = arith.constant 0 : i32
    %c0_i32_0 = arith.constant 0 : i32
    %c0_i32_1 = arith.constant 0 : i32
    return %arg0, %c0_i32, %c0_i32_0 : i32, i32, i32
  }
  func.func @transform_7(%arg0: i32) -> (i32, i32, i32, i32) {
    %c0_i32 = arith.constant 0 : i32
    %c0_i32_0 = arith.constant 0 : i32
    %c0_i32_1 = arith.constant 0 : i32
    %c0_i32_2 = arith.constant 0 : i32
    return %arg0, %c0_i32, %c0_i32_0, %c0_i32_1 : i32, i32, i32, i32
  }
  func.func @transform_8(%arg0: i32) -> (i32, i32, i32, i32) {
    %c0_i32 = arith.constant 0 : i32
    %c0_i32_0 = arith.constant 0 : i32
    %c0_i32_1 = arith.constant 0 : i32
    %c0_i32_2 = arith.constant 0 : i32
    return %arg0, %c0_i32, %c0_i32_0, %c0_i32_1 : i32, i32, i32, i32
  }
  func.func @transform_9(%arg0: i32) -> (i32, i32, i32, i32) {
    %c0_i32 = arith.constant 0 : i32
    %c0_i32_0 = arith.constant 0 : i32
    %c0_i32_1 = arith.constant 0 : i32
    %c0_i32_2 = arith.constant 0 : i32
    return %arg0, %c0_i32, %c0_i32_0, %c0_i32_1 : i32, i32, i32, i32
  }
  func.func @transform_10(%arg0: i32) -> (i32, i32, i32, i32) {
    %c0_i32 = arith.constant 0 : i32
    %c0_i32_0 = arith.constant 0 : i32
    %c0_i32_1 = arith.constant 0 : i32
    %c0_i32_2 = arith.constant 0 : i32
    return %arg0, %c0_i32, %c0_i32_0, %c0_i32_1 : i32, i32, i32, i32
  }
  func.func @transform_11(%arg0: i32) -> (i32, i32, i32) {
    %c0_i32 = arith.constant 0 : i32
    %c0_i32_0 = arith.constant 0 : i32
    %c0_i32_1 = arith.constant 0 : i32
    return %arg0, %c0_i32, %c0_i32_0 : i32, i32, i32
  }
  func.func @transform_12(%arg0: i32) -> (i32, i32, i32) {
    %c0_i32 = arith.constant 0 : i32
    %c0_i32_0 = arith.constant 0 : i32
    %c0_i32_1 = arith.constant 0 : i32
    return %arg0, %c0_i32, %c0_i32_0 : i32, i32, i32
  }
  func.func @transform_13(%arg0: i32) -> (i32, i32, i32) {
    %c0_i32 = arith.constant 0 : i32
    %c0_i32_0 = arith.constant 0 : i32
    %c0_i32_1 = arith.constant 0 : i32
    return %arg0, %c0_i32, %c0_i32_0 : i32, i32, i32
  }
  func.func @transform_14(%arg0: i32) -> (i32, i32, i32) {
    %c0_i32 = arith.constant 0 : i32
    %c0_i32_0 = arith.constant 0 : i32
    %c0_i32_1 = arith.constant 0 : i32
    return %arg0, %c0_i32, %c0_i32_0 : i32, i32, i32
  }
  func.func @transform_15(%arg0: i32) -> (i32, i32, i32) {
    %c0_i32 = arith.constant 0 : i32
    %c0_i32_0 = arith.constant 0 : i32
    %c0_i32_1 = arith.constant 0 : i32
    return %arg0, %c0_i32, %c0_i32_0 : i32, i32, i32
  }
  func.func @transform_16(%arg0: i32) -> (i32, i32, i32) {
    %c0_i32 = arith.constant 0 : i32
    %c0_i32_0 = arith.constant 0 : i32
    %c0_i32_1 = arith.constant 0 : i32
    return %arg0, %c0_i32, %c0_i32_0 : i32, i32, i32
  }
  func.func @transform_17(%arg0: i32) -> (i32, i32, i32) {
    %c0_i32 = arith.constant 0 : i32
    %c0_i32_0 = arith.constant 0 : i32
    %c0_i32_1 = arith.constant 0 : i32
    return %arg0, %c0_i32, %c0_i32_0 : i32, i32, i32
  }
  func.func @transform_18(%arg0: i32) -> (i32, i32) {
    %c0_i32 = arith.constant 0 : i32
    %c0_i32_0 = arith.constant 0 : i32
    %c0_i32_1 = arith.constant 0 : i32
    return %c0_i32, %c0_i32_0 : i32, i32
  }
  func.func @transform_19(%arg0: i32) -> (i32, i32) {
    %c0_i32 = arith.constant 0 : i32
    %c0_i32_0 = arith.constant 0 : i32
    %c0_i32_1 = arith.constant 0 : i32
    return %c0_i32, %c0_i32_0 : i32, i32
  }
  func.func @transform_20(%arg0: i32) -> (i32, i32) {
    %c0_i32 = arith.constant 0 : i32
    %c0_i32_0 = arith.constant 0 : i32
    %c0_i32_1 = arith.constant 0 : i32
    return %c0_i32, %c0_i32_0 : i32, i32
  }
  func.func @transform_21(%arg0: i32) -> (i32, i32) {
    %c0_i32 = arith.constant 0 : i32
    %c0_i32_0 = arith.constant 0 : i32
    %c0_i32_1 = arith.constant 0 : i32
    return %c0_i32, %c0_i32_0 : i32, i32
  }
  func.func @transform_22(%arg0: i32) -> (i32, i32, i32) {
    %c0_i32 = arith.constant 0 : i32
    %c0_i32_0 = arith.constant 0 : i32
    %c0_i32_1 = arith.constant 0 : i32
    return %arg0, %c0_i32, %c0_i32_0 : i32, i32, i32
  }
  func.func @transform_23(%arg0: i32) -> (i32, i32) {
    %c0_i32 = arith.constant 0 : i32
    %c0_i32_0 = arith.constant 0 : i32
    %c0_i32_1 = arith.constant 0 : i32
    return %c0_i32, %c0_i32_0 : i32, i32
  }
}

</mosaic_0001>

<llo_original>
// kernel: tpu_custom_call.1
$region0: #{tpu_custom_call.1}
  #allocation0 [shape = 'u32[]', space=smem, size = 0x4, offset = 0x4, fixed_abs, tag = 'smem constant byte address 0x4 - core index']
  #allocation1 [shape = 'u32[72,128]{1,0:T(1,128)}', space=vmem, size = 0x9000, scoped, tag = 'internal scratch']
  #allocation2 [shape = 'f32[10,64]{1,0:T(8,128)}', space=vmem, size = 0x2000, scoped, tag = 'scratch operand']
  %s0 = inlined_call_operand.vmem [shape: f32[8,256], index: 0, kind: input, shape index: {}]
  %s1 = inlined_call_operand.vmem [shape: f32[256,64], index: 1, kind: input, shape index: {}]
  %s2 = inlined_call_operand.vmem [shape: f32[1,64], index: 2, kind: input, shape index: {}]
  %s3 = inlined_call_operand.vmem [shape: f32[4,64], index: 3, kind: input, shape index: {}]
  %s4 = inlined_call_operand.vmem [shape: f32[1,64], index: 4, kind: input, shape index: {}]
  %s5 = inlined_call_operand.vmem [shape: f32[2,1,64], index: 5, kind: input, shape index: {}]
  %s6 = inlined_call_operand.vmem [shape: f32[2,1,64], index: 6, kind: input, shape index: {}]
  %s7 = inlined_call_operand.vmem [shape: f32[2,4,64,16], index: 7, kind: input, shape index: {}]
  %s8 = inlined_call_operand.vmem [shape: f32[2,4,64,16], index: 8, kind: input, shape index: {}]
  %s9 = inlined_call_operand.vmem [shape: f32[2,4,64,16], index: 9, kind: input, shape index: {}]
  %s10 = inlined_call_operand.vmem [shape: f32[2,4,16,64], index: 10, kind: input, shape index: {}]
  %s11 = inlined_call_operand.vmem [shape: f32[2,1,64], index: 11, kind: input, shape index: {}]
  %s12 = inlined_call_operand.vmem [shape: f32[2,1,64], index: 12, kind: input, shape index: {}]
  %s13 = inlined_call_operand.vmem [shape: f32[2,1,64], index: 13, kind: input, shape index: {}]
  %s14 = inlined_call_operand.vmem [shape: f32[2,64,128], index: 14, kind: input, shape index: {}]
  %s15 = inlined_call_operand.vmem [shape: f32[2,1,128], index: 15, kind: input, shape index: {}]
  %s16 = inlined_call_operand.vmem [shape: f32[2,128,64], index: 16, kind: input, shape index: {}]
  %s17 = inlined_call_operand.vmem [shape: f32[2,1,64], index: 17, kind: input, shape index: {}]
  %s18 = inlined_call_operand.vmem [shape: f32[1,64], index: 18, kind: input, shape index: {}]
  %s19 = inlined_call_operand.vmem [shape: f32[1,64], index: 19, kind: input, shape index: {}]
  %s20 = inlined_call_operand.vmem [shape: f32[64,2], index: 20, kind: input, shape index: {}]
  %s21 = inlined_call_operand.vmem [shape: f32[1,2], index: 21, kind: input, shape index: {}]
  %s22 = inlined_call_operand.vmem [shape: f32[2,10,64], index: 22, kind: output, shape index: {0}]
  %s23 = inlined_call_operand.hbm [shape: f32[2,2], index: 23, kind: output, shape index: {1}]
  %24 = xla_tuple %s22, %s23
  %s25 = sld [smem:[#allocation0]]
  $region137: #{tpu_custom_call.1} parent=0
    _
  %s27 = ssub.s32 1, %s25
  %s28 = scalar_select 0, %s27, %s25
  $region1: #{tpu_custom_call.1} parent=0
    #allocation3 [shape = 'u8[1024]{0}', space=vmem, size = 0x400, scoped, tag = 'output window, operand 1, single buffered']
    #allocation4 [shape = 's32[2]{0}', space=sflag, size = 0x8, scoped, tag = 'scoped memory for tpu_custom_call.1']
    %29 = vsyncpa [#allocation4], 0
    loop: start=0, step=1, limit=4
    $region2: #{tpu_custom_call.1} parent=1 // loop_pre_header
      _
    $region3: #{tpu_custom_call.1} parent=1 // loop_header
      %s31 = sphi 0, %s35
      %p32 = scmp.ge.s32.totalorder %s31, 4
      %s39 = sphi 0, %s39
      %s41 = sphi 0, %s39
      %s42 = sphi 0, %s41
      %s56 = sphi 0, %s42
      %s60 = sphi 0, %s60
      %s62 = sphi 0, %s60
      %s63 = sphi 0, %s62
      %s77 = sphi 0, %s63
      %s81 = sphi 0, %s81
      %s83 = sphi 0, %s81
      %s84 = sphi 0, %s83
      %s98 = sphi 0, %s84
      %s102 = sphi 0, %s102
      %s104 = sphi 0, %s102
      %s105 = sphi 0, %s104
      %s119 = sphi 0, %s105
      %s123 = sphi 0, %s123
      %s125 = sphi 0, %s123
      %s126 = sphi 0, %s125
      %s140 = sphi 0, %s126
      %s146 = sphi 0, %s148
      %s149 = sphi 0, %s146
      %s150 = sphi 0, %s149
      %s166 = sphi 0, %s150
      %s172 = sphi 0, %s174
      %s175 = sphi 0, %s172
      %s176 = sphi 0, %s175
      %s192 = sphi 0, %s176
      %s198 = sphi 0, %s200
      %s201 = sphi 0, %s198
      %s202 = sphi 0, %s201
      %s218 = sphi 0, %s202
      %s224 = sphi 0, %s226
      %s227 = sphi 0, %s224
      %s228 = sphi 0, %s227
      %s244 = sphi 0, %s228
      %s250 = sphi 0, %s252
      %s253 = sphi 0, %s250
      %s254 = sphi 0, %s253
      %s270 = sphi 0, %s254
      %s276 = sphi 0, %s278
      %s279 = sphi 0, %s276
      %s280 = sphi 0, %s279
      %s296 = sphi 0, %s280
      %s302 = sphi 0, %s304
      %s305 = sphi 0, %s302
      %s306 = sphi 0, %s305
      %s322 = sphi 0, %s306
      %s328 = sphi 0, %s330
      %s331 = sphi 0, %s328
      %s332 = sphi 0, %s331
      %s348 = sphi 0, %s332
      %s354 = sphi 0, %s356
      %s357 = sphi 0, %s354
      %s358 = sphi 0, %s357
      %s374 = sphi 0, %s358
      %s380 = sphi 0, %s382
      %s383 = sphi 0, %s380
      %s384 = sphi 0, %s383
      %s400 = sphi 0, %s384
      %s406 = sphi 0, %s408
      %s409 = sphi 0, %s406
      %s410 = sphi 0, %s409
      %s426 = sphi 0, %s410
      %s432 = sphi 0, %s434
      %s435 = sphi 0, %s432
      %s436 = sphi 0, %s435
      %s452 = sphi 0, %s436
      %s458 = sphi 0, %s460
      %s461 = sphi 0, %s458
      %s462 = sphi 0, %s461
      %s478 = sphi 0, %s462
      %s482 = sphi 0, %s482
      %s484 = sphi 0, %s482
      %s485 = sphi 0, %s484
      %s499 = sphi 0, %s485
      %s503 = sphi 0, %s503
      %s505 = sphi 0, %s503
      %s506 = sphi 0, %s505
      %s520 = sphi 0, %s506
      %s524 = sphi 0, %s524
      %s526 = sphi 0, %s524
      %s527 = sphi 0, %s526
      %s541 = sphi 0, %s527
      %s545 = sphi 0, %s545
      %s547 = sphi 0, %s545
      %s548 = sphi 0, %s547
      %s562 = sphi 0, %s548
      %s568 = sphi 0, %s570
      %s571 = sphi 0, %s568
      %s572 = sphi 0, %s571
      %s588 = sphi 0, %s572
      %s592 = sphi 0, %s592
      %s594 = sphi 0, %s592
      %s595 = sphi 0, %s594
      %s609 = sphi 0, %s595
    $region4: #{tpu_custom_call.1} parent=1 // loop_header_branch
      %34 = sbr.rel (%p32) target = $region8
    $region5: #{tpu_custom_call.1} parent=1 // loop_body
      %s36 = ssub.s32 %s31, 1
      %s37 = ssub.s32 %s31, 2
      %s38 = sadd.s32 %s31, 1
      %s40 = sadd.s32 %s39, 1
      %p43 = scmp.eq.s32.totalorder %s31, 1
      %p44 = scmp.ne.s32.totalorder %s39, %s41
      %p45 = scmp.eq.s32.totalorder %s31, 0
      %p46 = por %p44, %p45
      %p47 = scmp.ne.s32.totalorder %s39, %s41
      %p48 = scmp.eq.s32.totalorder %s36, 1
      %p49 = por %p47, %p48
      %p50 = scmp.ne.s32.totalorder %s41, %s42
      %p51 = scmp.eq.s32.totalorder %s36, 0
      %p52 = por %p50, %p51
      %p53 = scmp.ne.s32.totalorder %s41, %s42
      %p54 = scmp.eq.s32.totalorder %s37, 1
      %p55 = por %p53, %p54
      %p57 = scmp.ne.s32.totalorder %s42, %s56
      %p58 = scmp.eq.s32.totalorder %s37, 0
      %p59 = por %p57, %p58
      %s61 = sadd.s32 %s60, 1
      %p64 = scmp.eq.s32.totalorder %s31, 1
      %p65 = scmp.ne.s32.totalorder %s60, %s62
      %p66 = scmp.eq.s32.totalorder %s31, 0
      %p67 = por %p65, %p66
      %p68 = scmp.ne.s32.totalorder %s60, %s62
      %p69 = scmp.eq.s32.totalorder %s36, 1
      %p70 = por %p68, %p69
      %p71 = scmp.ne.s32.totalorder %s62, %s63
      %p72 = scmp.eq.s32.totalorder %s36, 0
      %p73 = por %p71, %p72
      %p74 = scmp.ne.s32.totalorder %s62, %s63
      %p75 = scmp.eq.s32.totalorder %s37, 1
      %p76 = por %p74, %p75
      %p78 = scmp.ne.s32.totalorder %s63, %s77
      %p79 = scmp.eq.s32.totalorder %s37, 0
      %p80 = por %p78, %p79
      %s82 = sadd.s32 %s81, 1
      %p85 = scmp.eq.s32.totalorder %s31, 1
      %p86 = scmp.ne.s32.totalorder %s81, %s83
      %p87 = scmp.eq.s32.totalorder %s31, 0
      %p88 = por %p86, %p87
      %p89 = scmp.ne.s32.totalorder %s81, %s83
      %p90 = scmp.eq.s32.totalorder %s36, 1
      %p91 = por %p89, %p90
      %p92 = scmp.ne.s32.totalorder %s83, %s84
      %p93 = scmp.eq.s32.totalorder %s36, 0
      %p94 = por %p92, %p93
      %p95 = scmp.ne.s32.totalorder %s83, %s84
      %p96 = scmp.eq.s32.totalorder %s37, 1
      %p97 = por %p95, %p96
      %p99 = scmp.ne.s32.totalorder %s84, %s98
      %p100 = scmp.eq.s32.totalorder %s37, 0
      %p101 = por %p99, %p100
      %s103 = sadd.s32 %s102, 1
      %p106 = scmp.eq.s32.totalorder %s31, 1
      %p107 = scmp.ne.s32.totalorder %s102, %s104
      %p108 = scmp.eq.s32.totalorder %s31, 0
      %p109 = por %p107, %p108
      %p110 = scmp.ne.s32.totalorder %s102, %s104
      %p111 = scmp.eq.s32.totalorder %s36, 1
      %p112 = por %p110, %p111
      %p113 = scmp.ne.s32.totalorder %s104, %s105
      %p114 = scmp.eq.s32.totalorder %s36, 0
      %p115 = por %p113, %p114
      %p116 = scmp.ne.s32.totalorder %s104, %s105
      %p117 = scmp.eq.s32.totalorder %s37, 1
      %p118 = por %p116, %p117
      %p120 = scmp.ne.s32.totalorder %s105, %s119
      %p121 = scmp.eq.s32.totalorder %s37, 0
      %p122 = por %p120, %p121
      %s124 = sadd.s32 %s123, 1
      %p127 = scmp.eq.s32.totalorder %s31, 1
      %p128 = scmp.ne.s32.totalorder %s123, %s125
      %p129 = scmp.eq.s32.totalorder %s31, 0
      %p130 = por %p128, %p129
      %p131 = scmp.ne.s32.totalorder %s123, %s125
      %p132 = scmp.eq.s32.totalorder %s36, 1
      %p133 = por %p131, %p132
      %p134 = scmp.ne.s32.totalorder %s125, %s126
      %p135 = scmp.eq.s32.totalorder %s36, 0
      %p136 = por %p134, %p135
      %p137 = scmp.ne.s32.totalorder %s125, %s126
      %p138 = scmp.eq.s32.totalorder %s37, 1
      %p139 = por %p137, %p138
      %p141 = scmp.ne.s32.totalorder %s126, %s140
      %p142 = scmp.eq.s32.totalorder %s37, 0
      %p143 = por %p141, %p142
      %s144 = ssub.s32 %s31, %s38
      %p145 = scmp.eq.s32.totalorder %s144, 0
      %s147 = sadd.s32 %s146, 1
      %s148 = scalar_select %p145, %s146, %s147
      %p151 = pneg %p145
      %p152 = scmp.eq.s32.totalorder %s31, 1
      %p153 = por %p151, %p152
      %p154 = scmp.ne.s32.totalorder %s146, %s149
      %p155 = scmp.eq.s32.totalorder %s31, 0
      %p156 = por %p154, %p155
      %p157 = scmp.ne.s32.totalorder %s146, %s149
      %p158 = scmp.eq.s32.totalorder %s36, 1
      %p159 = por %p157, %p158
      %p160 = scmp.ne.s32.totalorder %s149, %s150
      %p161 = scmp.eq.s32.totalorder %s36, 0
      %p162 = por %p160, %p161
      %p163 = scmp.ne.s32.totalorder %s149, %s150
      %p164 = scmp.eq.s32.totalorder %s37, 1
      %p165 = por %p163, %p164
      %p167 = scmp.ne.s32.totalorder %s150, %s166
      %p168 = scmp.eq.s32.totalorder %s37, 0
      %p169 = por %p167, %p168
      %s170 = ssub.s32 %s31, %s38
      %p171 = scmp.eq.s32.totalorder %s170, 0
      %s173 = sadd.s32 %s172, 1
      %s174 = scalar_select %p171, %s172, %s173
      %p177 = pneg %p171
      %p178 = scmp.eq.s32.totalorder %s31, 1
      %p179 = por %p177, %p178
      %p180 = scmp.ne.s32.totalorder %s172, %s175
      %p181 = scmp.eq.s32.totalorder %s31, 0
      %p182 = por %p180, %p181
      %p183 = scmp.ne.s32.totalorder %s172, %s175
      %p184 = scmp.eq.s32.totalorder %s36, 1
      %p185 = por %p183, %p184
      %p186 = scmp.ne.s32.totalorder %s175, %s176
      %p187 = scmp.eq.s32.totalorder %s36, 0
      %p188 = por %p186, %p187
      %p189 = scmp.ne.s32.totalorder %s175, %s176
      %p190 = scmp.eq.s32.totalorder %s37, 1
      %p191 = por %p189, %p190
      %p193 = scmp.ne.s32.totalorder %s176, %s192
      %p194 = scmp.eq.s32.totalorder %s37, 0
      %p195 = por %p193, %p194
      %s196 = ssub.s32 %s31, %s38
      %p197 = scmp.eq.s32.totalorder %s196, 0
      %s199 = sadd.s32 %s198, 1
      %s200 = scalar_select %p197, %s198, %s199
      %p203 = pneg %p197
      %p204 = scmp.eq.s32.totalorder %s31, 1
      %p205 = por %p203, %p204
      %p206 = scmp.ne.s32.totalorder %s198, %s201
      %p207 = scmp.eq.s32.totalorder %s31, 0
      %p208 = por %p206, %p207
      %p209 = scmp.ne.s32.totalorder %s198, %s201
      %p210 = scmp.eq.s32.totalorder %s36, 1
      %p211 = por %p209, %p210
      %p212 = scmp.ne.s32.totalorder %s201, %s202
      %p213 = scmp.eq.s32.totalorder %s36, 0
      %p214 = por %p212, %p213
      %p215 = scmp.ne.s32.totalorder %s201, %s202
      %p216 = scmp.eq.s32.totalorder %s37, 1
      %p217 = por %p215, %p216
      %p219 = scmp.ne.s32.totalorder %s202, %s218
      %p220 = scmp.eq.s32.totalorder %s37, 0
      %p221 = por %p219, %p220
      %s222 = ssub.s32 %s31, %s38
      %p223 = scmp.eq.s32.totalorder %s222, 0
      %s225 = sadd.s32 %s224, 1
      %s226 = scalar_select %p223, %s224, %s225
      %p229 = pneg %p223
      %p230 = scmp.eq.s32.totalorder %s31, 1
      %p231 = por %p229, %p230
      %p232 = scmp.ne.s32.totalorder %s224, %s227
      %p233 = scmp.eq.s32.totalorder %s31, 0
      %p234 = por %p232, %p233
      %p235 = scmp.ne.s32.totalorder %s224, %s227
      %p236 = scmp.eq.s32.totalorder %s36, 1
      %p237 = por %p235, %p236
      %p238 = scmp.ne.s32.totalorder %s227, %s228
      %p239 = scmp.eq.s32.totalorder %s36, 0
      %p240 = por %p238, %p239
      %p241 = scmp.ne.s32.totalorder %s227, %s228
      %p242 = scmp.eq.s32.totalorder %s37, 1
      %p243 = por %p241, %p242
      %p245 = scmp.ne.s32.totalorder %s228, %s244
      %p246 = scmp.eq.s32.totalorder %s37, 0
      %p247 = por %p245, %p246
      %s248 = ssub.s32 %s31, %s38
      %p249 = scmp.eq.s32.totalorder %s248, 0
      %s251 = sadd.s32 %s250, 1
      %s252 = scalar_select %p249, %s250, %s251
      %p255 = pneg %p249
      %p256 = scmp.eq.s32.totalorder %s31, 1
      %p257 = por %p255, %p256
      %p258 = scmp.ne.s32.totalorder %s250, %s253
      %p259 = scmp.eq.s32.totalorder %s31, 0
      %p260 = por %p258, %p259
      %p261 = scmp.ne.s32.totalorder %s250, %s253
      %p262 = scmp.eq.s32.totalorder %s36, 1
      %p263 = por %p261, %p262
      %p264 = scmp.ne.s32.totalorder %s253, %s254
      %p265 = scmp.eq.s32.totalorder %s36, 0
      %p266 = por %p264, %p265
      %p267 = scmp.ne.s32.totalorder %s253, %s254
      %p268 = scmp.eq.s32.totalorder %s37, 1
      %p269 = por %p267, %p268
      %p271 = scmp.ne.s32.totalorder %s254, %s270
      %p272 = scmp.eq.s32.totalorder %s37, 0
      %p273 = por %p271, %p272
      %s274 = ssub.s32 %s31, %s38
      %p275 = scmp.eq.s32.totalorder %s274, 0
      %s277 = sadd.s32 %s276, 1
      %s278 = scalar_select %p275, %s276, %s277
      %p281 = pneg %p275
      %p282 = scmp.eq.s32.totalorder %s31, 1
      %p283 = por %p281, %p282
      %p284 = scmp.ne.s32.totalorder %s276, %s279
      %p285 = scmp.eq.s32.totalorder %s31, 0
      %p286 = por %p284, %p285
      %p287 = scmp.ne.s32.totalorder %s276, %s279
      %p288 = scmp.eq.s32.totalorder %s36, 1
      %p289 = por %p287, %p288
      %p290 = scmp.ne.s32.totalorder %s279, %s280
      %p291 = scmp.eq.s32.totalorder %s36, 0
      %p292 = por %p290, %p291
      %p293 = scmp.ne.s32.totalorder %s279, %s280
      %p294 = scmp.eq.s32.totalorder %s37, 1
      %p295 = por %p293, %p294
      %p297 = scmp.ne.s32.totalorder %s280, %s296
      %p298 = scmp.eq.s32.totalorder %s37, 0
      %p299 = por %p297, %p298
      %s300 = ssub.s32 %s31, %s38
      %p301 = scmp.eq.s32.totalorder %s300, 0
      %s303 = sadd.s32 %s302, 1
      %s304 = scalar_select %p301, %s302, %s303
      %p307 = pneg %p301
      %p308 = scmp.eq.s32.totalorder %s31, 1
      %p309 = por %p307, %p308
      %p310 = scmp.ne.s32.totalorder %s302, %s305
      %p311 = scmp.eq.s32.totalorder %s31, 0
      %p312 = por %p310, %p311
      %p313 = scmp.ne.s32.totalorder %s302, %s305
      %p314 = scmp.eq.s32.totalorder %s36, 1
      %p315 = por %p313, %p314
      %p316 = scmp.ne.s32.totalorder %s305, %s306
      %p317 = scmp.eq.s32.totalorder %s36, 0
      %p318 = por %p316, %p317
      %p319 = scmp.ne.s32.totalorder %s305, %s306
      %p320 = scmp.eq.s32.totalorder %s37, 1
      %p321 = por %p319, %p320
      %p323 = scmp.ne.s32.totalorder %s306, %s322
      %p324 = scmp.eq.s32.totalorder %s37, 0
      %p325 = por %p323, %p324
      %s326 = ssub.s32 %s31, %s38
      %p327 = scmp.eq.s32.totalorder %s326, 0
      %s329 = sadd.s32 %s328, 1
      %s330 = scalar_select %p327, %s328, %s329
      %p333 = pneg %p327
      %p334 = scmp.eq.s32.totalorder %s31, 1
      %p335 = por %p333, %p334
      %p336 = scmp.ne.s32.totalorder %s328, %s331
      %p337 = scmp.eq.s32.totalorder %s31, 0
      %p338 = por %p336, %p337
      %p339 = scmp.ne.s32.totalorder %s328, %s331
      %p340 = scmp.eq.s32.totalorder %s36, 1
      %p341 = por %p339, %p340
      %p342 = scmp.ne.s32.totalorder %s331, %s332
      %p343 = scmp.eq.s32.totalorder %s36, 0
      %p344 = por %p342, %p343
      %p345 = scmp.ne.s32.totalorder %s331, %s332
      %p346 = scmp.eq.s32.totalorder %s37, 1
      %p347 = por %p345, %p346
      %p349 = scmp.ne.s32.totalorder %s332, %s348
      %p350 = scmp.eq.s32.totalorder %s37, 0
      %p351 = por %p349, %p350
      %s352 = ssub.s32 %s31, %s38
      %p353 = scmp.eq.s32.totalorder %s352, 0
      %s355 = sadd.s32 %s354, 1
      %s356 = scalar_select %p353, %s354, %s355
      %p359 = pneg %p353
      %p360 = scmp.eq.s32.totalorder %s31, 1
      %p361 = por %p359, %p360
      %p362 = scmp.ne.s32.totalorder %s354, %s357
      %p363 = scmp.eq.s32.totalorder %s31, 0
      %p364 = por %p362, %p363
      %p365 = scmp.ne.s32.totalorder %s354, %s357
      %p366 = scmp.eq.s32.totalorder %s36, 1
      %p367 = por %p365, %p366
      %p368 = scmp.ne.s32.totalorder %s357, %s358
      %p369 = scmp.eq.s32.totalorder %s36, 0
      %p370 = por %p368, %p369
      %p371 = scmp.ne.s32.totalorder %s357, %s358
      %p372 = scmp.eq.s32.totalorder %s37, 1
      %p373 = por %p371, %p372
      %p375 = scmp.ne.s32.totalorder %s358, %s374
      %p376 = scmp.eq.s32.totalorder %s37, 0
      %p377 = por %p375, %p376
      %s378 = ssub.s32 %s31, %s38
      %p379 = scmp.eq.s32.totalorder %s378, 0
      %s381 = sadd.s32 %s380, 1
      %s382 = scalar_select %p379, %s380, %s381
      %p385 = pneg %p379
      %p386 = scmp.eq.s32.totalorder %s31, 1
      %p387 = por %p385, %p386
      %p388 = scmp.ne.s32.totalorder %s380, %s383
      %p389 = scmp.eq.s32.totalorder %s31, 0
      %p390 = por %p388, %p389
      %p391 = scmp.ne.s32.totalorder %s380, %s383
      %p392 = scmp.eq.s32.totalorder %s36, 1
      %p393 = por %p391, %p392
      %p394 = scmp.ne.s32.totalorder %s383, %s384
      %p395 = scmp.eq.s32.totalorder %s36, 0
      %p396 = por %p394, %p395
      %p397 = scmp.ne.s32.totalorder %s383, %s384
      %p398 = scmp.eq.s32.totalorder %s37, 1
      %p399 = por %p397, %p398
      %p401 = scmp.ne.s32.totalorder %s384, %s400
      %p402 = scmp.eq.s32.totalorder %s37, 0
      %p403 = por %p401, %p402
      %s404 = ssub.s32 %s31, %s38
      %p405 = scmp.eq.s32.totalorder %s404, 0
      %s407 = sadd.s32 %s406, 1
      %s408 = scalar_select %p405, %s406, %s407
      %p411 = pneg %p405
      %p412 = scmp.eq.s32.totalorder %s31, 1
      %p413 = por %p411, %p412
      %p414 = scmp.ne.s32.totalorder %s406, %s409
      %p415 = scmp.eq.s32.totalorder %s31, 0
      %p416 = por %p414, %p415
      %p417 = scmp.ne.s32.totalorder %s406, %s409
      %p418 = scmp.eq.s32.totalorder %s36, 1
      %p419 = por %p417, %p418
      %p420 = scmp.ne.s32.totalorder %s409, %s410
      %p421 = scmp.eq.s32.totalorder %s36, 0
      %p422 = por %p420, %p421
      %p423 = scmp.ne.s32.totalorder %s409, %s410
      %p424 = scmp.eq.s32.totalorder %s37, 1
      %p425 = por %p423, %p424
      %p427 = scmp.ne.s32.totalorder %s410, %s426
      %p428 = scmp.eq.s32.totalorder %s37, 0
      %p429 = por %p427, %p428
      %s430 = ssub.s32 %s31, %s38
      %p431 = scmp.eq.s32.totalorder %s430, 0
      %s433 = sadd.s32 %s432, 1
      %s434 = scalar_select %p431, %s432, %s433
      %p437 = pneg %p431
      %p438 = scmp.eq.s32.totalorder %s31, 1
      %p439 = por %p437, %p438
      %p440 = scmp.ne.s32.totalorder %s432, %s435
      %p441 = scmp.eq.s32.totalorder %s31, 0
      %p442 = por %p440, %p441
      %p443 = scmp.ne.s32.totalorder %s432, %s435
      %p444 = scmp.eq.s32.totalorder %s36, 1
      %p445 = por %p443, %p444
      %p446 = scmp.ne.s32.totalorder %s435, %s436
      %p447 = scmp.eq.s32.totalorder %s36, 0
      %p448 = por %p446, %p447
      %p449 = scmp.ne.s32.totalorder %s435, %s436
      %p450 = scmp.eq.s32.totalorder %s37, 1
      %p451 = por %p449, %p450
      %p453 = scmp.ne.s32.totalorder %s436, %s452
      %p454 = scmp.eq.s32.totalorder %s37, 0
      %p455 = por %p453, %p454
      %s456 = ssub.s32 %s31, %s38
      %p457 = scmp.eq.s32.totalorder %s456, 0
      %s459 = sadd.s32 %s458, 1
      %s460 = scalar_select %p457, %s458, %s459
      %p463 = pneg %p457
      %p464 = scmp.eq.s32.totalorder %s31, 1
      %p465 = por %p463, %p464
      %p466 = scmp.ne.s32.totalorder %s458, %s461
      %p467 = scmp.eq.s32.totalorder %s31, 0
      %p468 = por %p466, %p467
      %p469 = scmp.ne.s32.totalorder %s458, %s461
      %p470 = scmp.eq.s32.totalorder %s36, 1
      %p471 = por %p469, %p470
      %p472 = scmp.ne.s32.totalorder %s461, %s462
      %p473 = scmp.eq.s32.totalorder %s36, 0
      %p474 = por %p472, %p473
      %p475 = scmp.ne.s32.totalorder %s461, %s462
      %p476 = scmp.eq.s32.totalorder %s37, 1
      %p477 = por %p475, %p476
      %p479 = scmp.ne.s32.totalorder %s462, %s478
      %p480 = scmp.eq.s32.totalorder %s37, 0
      %p481 = por %p479, %p480
      %s483 = sadd.s32 %s482, 1
      %p486 = scmp.eq.s32.totalorder %s31, 1
      %p487 = scmp.ne.s32.totalorder %s482, %s484
      %p488 = scmp.eq.s32.totalorder %s31, 0
      %p489 = por %p487, %p488
      %p490 = scmp.ne.s32.totalorder %s482, %s484
      %p491 = scmp.eq.s32.totalorder %s36, 1
      %p492 = por %p490, %p491
      %p493 = scmp.ne.s32.totalorder %s484, %s485
      %p494 = scmp.eq.s32.totalorder %s36, 0
      %p495 = por %p493, %p494
      %p496 = scmp.ne.s32.totalorder %s484, %s485
      %p497 = scmp.eq.s32.totalorder %s37, 1
      %p498 = por %p496, %p497
      %p500 = scmp.ne.s32.totalorder %s485, %s499
      %p501 = scmp.eq.s32.totalorder %s37, 0
      %p502 = por %p500, %p501
      %s504 = sadd.s32 %s503, 1
      %p507 = scmp.eq.s32.totalorder %s31, 1
      %p508 = scmp.ne.s32.totalorder %s503, %s505
      %p509 = scmp.eq.s32.totalorder %s31, 0
      %p510 = por %p508, %p509
      %p511 = scmp.ne.s32.totalorder %s503, %s505
      %p512 = scmp.eq.s32.totalorder %s36, 1
      %p513 = por %p511, %p512
      %p514 = scmp.ne.s32.totalorder %s505, %s506
      %p515 = scmp.eq.s32.totalorder %s36, 0
      %p516 = por %p514, %p515
      %p517 = scmp.ne.s32.totalorder %s505, %s506
      %p518 = scmp.eq.s32.totalorder %s37, 1
      %p519 = por %p517, %p518
      %p521 = scmp.ne.s32.totalorder %s506, %s520
      %p522 = scmp.eq.s32.totalorder %s37, 0
      %p523 = por %p521, %p522
      %s525 = sadd.s32 %s524, 1
      %p528 = scmp.eq.s32.totalorder %s31, 1
      %p529 = scmp.ne.s32.totalorder %s524, %s526
      %p530 = scmp.eq.s32.totalorder %s31, 0
      %p531 = por %p529, %p530
      %p532 = scmp.ne.s32.totalorder %s524, %s526
      %p533 = scmp.eq.s32.totalorder %s36, 1
      %p534 = por %p532, %p533
      %p535 = scmp.ne.s32.totalorder %s526, %s527
      %p536 = scmp.eq.s32.totalorder %s36, 0
      %p537 = por %p535, %p536
      %p538 = scmp.ne.s32.totalorder %s526, %s527
      %p539 = scmp.eq.s32.totalorder %s37, 1
      %p540 = por %p538, %p539
      %p542 = scmp.ne.s32.totalorder %s527, %s541
      %p543 = scmp.eq.s32.totalorder %s37, 0
      %p544 = por %p542, %p543
      %s546 = sadd.s32 %s545, 1
      %p549 = scmp.eq.s32.totalorder %s31, 1
      %p550 = scmp.ne.s32.totalorder %s545, %s547
      %p551 = scmp.eq.s32.totalorder %s31, 0
      %p552 = por %p550, %p551
      %p553 = scmp.ne.s32.totalorder %s545, %s547
      %p554 = scmp.eq.s32.totalorder %s36, 1
      %p555 = por %p553, %p554
      %p556 = scmp.ne.s32.totalorder %s547, %s548
      %p557 = scmp.eq.s32.totalorder %s36, 0
      %p558 = por %p556, %p557
      %p559 = scmp.ne.s32.totalorder %s547, %s548
      %p560 = scmp.eq.s32.totalorder %s37, 1
      %p561 = por %p559, %p560
      %p563 = scmp.ne.s32.totalorder %s548, %s562
      %p564 = scmp.eq.s32.totalorder %s37, 0
      %p565 = por %p563, %p564
      %s566 = ssub.s32 %s31, %s38
      %p567 = scmp.eq.s32.totalorder %s566, 0
      %s569 = sadd.s32 %s568, 1
      %s570 = scalar_select %p567, %s568, %s569
      %p573 = pneg %p567
      %p574 = scmp.eq.s32.totalorder %s31, 1
      %p575 = por %p573, %p574
      %p576 = scmp.ne.s32.totalorder %s568, %s571
      %p577 = scmp.eq.s32.totalorder %s31, 0
      %p578 = por %p576, %p577
      %p579 = scmp.ne.s32.totalorder %s568, %s571
      %p580 = scmp.eq.s32.totalorder %s36, 1
      %p581 = por %p579, %p580
      %p582 = scmp.ne.s32.totalorder %s571, %s572
      %p583 = scmp.eq.s32.totalorder %s36, 0
      %p584 = por %p582, %p583
      %p585 = scmp.ne.s32.totalorder %s571, %s572
      %p586 = scmp.eq.s32.totalorder %s37, 1
      %p587 = por %p585, %p586
      %p589 = scmp.ne.s32.totalorder %s572, %s588
      %p590 = scmp.eq.s32.totalorder %s37, 0
      %p591 = por %p589, %p590
      %s593 = sadd.s32 %s592, 1
      %p596 = scmp.eq.s32.totalorder %s31, 1
      %p597 = scmp.ne.s32.totalorder %s592, %s594
      %p598 = scmp.eq.s32.totalorder %s31, 0
      %p599 = por %p597, %p598
      %p600 = scmp.ne.s32.totalorder %s592, %s594
      %p601 = scmp.eq.s32.totalorder %s36, 1
      %p602 = por %p600, %p601
      %p603 = scmp.ne.s32.totalorder %s594, %s595
      %p604 = scmp.eq.s32.totalorder %s36, 0
      %p605 = por %p603, %p604
      %p606 = scmp.ne.s32.totalorder %s594, %s595
      %p607 = scmp.eq.s32.totalorder %s37, 1
      %p608 = por %p606, %p607
      %p610 = scmp.ne.s32.totalorder %s595, %s609
      %p611 = scmp.eq.s32.totalorder %s37, 0
      %p612 = por %p610, %p611
      %p613 = scmp.le.s32.totalorder 1, %s31
      %p614 = scmp.lt.s32.totalorder %s31, 3
      %p615 = pnand %p613, %p614
      %p616 = pneg %p615
      // Predicated region
      $region9: #{tpu_custom_call.1} parent=5 // pred_check
        _
      $region10: #{tpu_custom_call.1} parent=5 // pred_check_branch
        %618 = sbr.rel (%p615) target = $region12
      $region11: #{tpu_custom_call.1} parent=5 // pred_region
        %s619 = ssub.s32 %s31, 1
        // Predicated region
        $region13: #{tpu_custom_call.1} parent=11 // pred_check
          %p620 = pneg %p52
        $region14: #{tpu_custom_call.1} parent=11 // pred_check_branch
          %622 = sbr.rel (%p620) target = $region16
        $region15: #{tpu_custom_call.1} parent=11 // pred_region
          _
        $region16: #{tpu_custom_call.1} parent=11 // pred_fallthru
          _
        // Predicated region
        $region17: #{tpu_custom_call.1} parent=11 // pred_check
          %p623 = pneg %p73
        $region18: #{tpu_custom_call.1} parent=11 // pred_check_branch
          %625 = sbr.rel (%p623) target = $region20
        $region19: #{tpu_custom_call.1} parent=11 // pred_region
          _
        $region20: #{tpu_custom_call.1} parent=11 // pred_fallthru
          _
        // Predicated region
        $region21: #{tpu_custom_call.1} parent=11 // pred_check
          %p626 = pneg %p94
        $region22: #{tpu_custom_call.1} parent=11 // pred_check_branch
          %628 = sbr.rel (%p626) target = $region24
        $region23: #{tpu_custom_call.1} parent=11 // pred_region
          _
        $region24: #{tpu_custom_call.1} parent=11 // pred_fallthru
          _
        // Predicated region
        $region25: #{tpu_custom_call.1} parent=11 // pred_check
          %p629 = pneg %p115
        $region26: #{tpu_custom_call.1} parent=11 // pred_check_branch
          %631 = sbr.rel (%p629) target = $region28
        $region27: #{tpu_custom_call.1} parent=11 // pred_region
          _
        $region28: #{tpu_custom_call.1} parent=11 // pred_fallthru
          _
        // Predicated region
        $region29: #{tpu_custom_call.1} parent=11 // pred_check
          %p632 = pneg %p136
        $region30: #{tpu_custom_call.1} parent=11 // pred_check_branch
          %634 = sbr.rel (%p632) target = $region32
        $region31: #{tpu_custom_call.1} parent=11 // pred_region
          _
        $region32: #{tpu_custom_call.1} parent=11 // pred_fallthru
          _
        // Predicated region
        $region33: #{tpu_custom_call.1} parent=11 // pred_check
          %p635 = pneg %p495
        $region34: #{tpu_custom_call.1} parent=11 // pred_check_branch
          %637 = sbr.rel (%p635) target = $region36
        $region35: #{tpu_custom_call.1} parent=11 // pred_region
          _
        $region36: #{tpu_custom_call.1} parent=11 // pred_fallthru
          _
        // Predicated region
        $region37: #{tpu_custom_call.1} parent=11 // pred_check
          %p638 = pneg %p516
        $region38: #{tpu_custom_call.1} parent=11 // pred_check_branch
          %640 = sbr.rel (%p638) target = $region40
        $region39: #{tpu_custom_call.1} parent=11 // pred_region
          _
        $region40: #{tpu_custom_call.1} parent=11 // pred_fallthru
          _
        // Predicated region
        $region41: #{tpu_custom_call.1} parent=11 // pred_check
          %p641 = pneg %p537
        $region42: #{tpu_custom_call.1} parent=11 // pred_check_branch
          %643 = sbr.rel (%p641) target = $region44
        $region43: #{tpu_custom_call.1} parent=11 // pred_region
          _
        $region44: #{tpu_custom_call.1} parent=11 // pred_fallthru
          _
        // Predicated region
        $region45: #{tpu_custom_call.1} parent=11 // pred_check
          %p644 = pneg %p558
        $region46: #{tpu_custom_call.1} parent=11 // pred_check_branch
          %646 = sbr.rel (%p644) target = $region48
        $region47: #{tpu_custom_call.1} parent=11 // pred_region
          _
        $region48: #{tpu_custom_call.1} parent=11 // pred_fallthru
          _
      $region12: #{tpu_custom_call.1} parent=5 // pred_fallthru
        _
      %p647 = scmp.lt.s32.totalorder %s31, 2
      // Predicated region
      $region49: #{tpu_custom_call.1} parent=5 // pred_check
        %p648 = pneg %p647
      $region50: #{tpu_custom_call.1} parent=5 // pred_check_branch
        %650 = sbr.rel (%p648) target = $region52
      $region51: #{tpu_custom_call.1} parent=5 // pred_region
        // Predicated region
        $region53: #{tpu_custom_call.1} parent=51 // pred_check
          %p651 = pneg %p156
        $region54: #{tpu_custom_call.1} parent=51 // pred_check_branch
          %653 = sbr.rel (%p651) target = $region56
        $region55: #{tpu_custom_call.1} parent=51 // pred_region
          %p654 = scmp.lt.s32.totalorder %s31, 1
          %s655 = scalar_select %p654, %s31, 1
          %s656 = scalar_lea.vmem %s5, %s655
        $region56: #{tpu_custom_call.1} parent=51 // pred_fallthru
          _
        // Predicated region
        $region57: #{tpu_custom_call.1} parent=51 // pred_check
          %p657 = pneg %p182
        $region58: #{tpu_custom_call.1} parent=51 // pred_check_branch
          %659 = sbr.rel (%p657) target = $region60
        $region59: #{tpu_custom_call.1} parent=51 // pred_region
          %p660 = scmp.lt.s32.totalorder %s31, 1
          %s661 = scalar_select %p660, %s31, 1
          %s662 = scalar_lea.vmem %s6, %s661
        $region60: #{tpu_custom_call.1} parent=51 // pred_fallthru
          _
        // Predicated region
        $region61: #{tpu_custom_call.1} parent=51 // pred_check
          %p663 = pneg %p208
        $region62: #{tpu_custom_call.1} parent=51 // pred_check_branch
          %665 = sbr.rel (%p663) target = $region64
        $region63: #{tpu_custom_call.1} parent=51 // pred_region
          %p666 = scmp.lt.s32.totalorder %s31, 1
          %s667 = scalar_select %p666, %s31, 1
          %s668 = smul.addr %s667, 32
          %s669 = smul.addr %s668, 8
          %s670 = scalar_lea.vmem %s7, %s669
        $region64: #{tpu_custom_call.1} parent=51 // pred_fallthru
          _
        // Predicated region
        $region65: #{tpu_custom_call.1} parent=51 // pred_check
          %p671 = pneg %p234
        $region66: #{tpu_custom_call.1} parent=51 // pred_check_branch
          %673 = sbr.rel (%p671) target = $region68
        $region67: #{tpu_custom_call.1} parent=51 // pred_region
          %p674 = scmp.lt.s32.totalorder %s31, 1
          %s675 = scalar_select %p674, %s31, 1
          %s676 = smul.addr %s675, 32
          %s677 = smul.addr %s676, 8
          %s678 = scalar_lea.vmem %s8, %s677
        $region68: #{tpu_custom_call.1} parent=51 // pred_fallthru
          _
        // Predicated region
        $region69: #{tpu_custom_call.1} parent=51 // pred_check
          %p679 = pneg %p260
        $region70: #{tpu_custom_call.1} parent=51 // pred_check_branch
          %681 = sbr.rel (%p679) target = $region72
        $region71: #{tpu_custom_call.1} parent=51 // pred_region
          %p682 = scmp.lt.s32.totalorder %s31, 1
          %s683 = scalar_select %p682, %s31, 1
          %s684 = smul.addr %s683, 32
          %s685 = smul.addr %s684, 8
          %s686 = scalar_lea.vmem %s9, %s685
        $region72: #{tpu_custom_call.1} parent=51 // pred_fallthru
          _
        // Predicated region
        $region73: #{tpu_custom_call.1} parent=51 // pred_check
          %p687 = pneg %p286
        $region74: #{tpu_custom_call.1} parent=51 // pred_check_branch
          %689 = sbr.rel (%p687) target = $region76
        $region75: #{tpu_custom_call.1} parent=51 // pred_region
          %p690 = scmp.lt.s32.totalorder %s31, 1
          %s691 = scalar_select %p690, %s31, 1
          %s692 = smul.addr %s691, 8
          %s693 = smul.addr %s692, 8
          %s694 = scalar_lea.vmem %s10, %s693
        $region76: #{tpu_custom_call.1} parent=51 // pred_fallthru
          _
        // Predicated region
        $region77: #{tpu_custom_call.1} parent=51 // pred_check
          %p695 = pneg %p312
        $region78: #{tpu_custom_call.1} parent=51 // pred_check_branch
          %697 = sbr.rel (%p695) target = $region80
        $region79: #{tpu_custom_call.1} parent=51 // pred_region
          %p698 = scmp.lt.s32.totalorder %s31, 1
          %s699 = scalar_select %p698, %s31, 1
          %s700 = scalar_lea.vmem %s11, %s699
        $region80: #{tpu_custom_call.1} parent=51 // pred_fallthru
          _
        // Predicated region
        $region81: #{tpu_custom_call.1} parent=51 // pred_check
          %p701 = pneg %p338
        $region82: #{tpu_custom_call.1} parent=51 // pred_check_branch
          %703 = sbr.rel (%p701) target = $region84
        $region83: #{tpu_custom_call.1} parent=51 // pred_region
          %p704 = scmp.lt.s32.totalorder %s31, 1
          %s705 = scalar_select %p704, %s31, 1
          %s706 = scalar_lea.vmem %s12, %s705
        $region84: #{tpu_custom_call.1} parent=51 // pred_fallthru
          _
        // Predicated region
        $region85: #{tpu_custom_call.1} parent=51 // pred_check
          %p707 = pneg %p364
        $region86: #{tpu_custom_call.1} parent=51 // pred_check_branch
          %709 = sbr.rel (%p707) target = $region88
        $region87: #{tpu_custom_call.1} parent=51 // pred_region
          %p710 = scmp.lt.s32.totalorder %s31, 1
          %s711 = scalar_select %p710, %s31, 1
          %s712 = scalar_lea.vmem %s13, %s711
        $region88: #{tpu_custom_call.1} parent=51 // pred_fallthru
          _
        // Predicated region
        $region89: #{tpu_custom_call.1} parent=51 // pred_check
          %p713 = pneg %p390
        $region90: #{tpu_custom_call.1} parent=51 // pred_check_branch
          %715 = sbr.rel (%p713) target = $region92
        $region91: #{tpu_custom_call.1} parent=51 // pred_region
          %p716 = scmp.lt.s32.totalorder %s31, 1
          %s717 = scalar_select %p716, %s31, 1
          %s718 = smul.addr %s717, 8
          %s719 = smul.addr %s718, 8
          %s720 = scalar_lea.vmem %s14, %s719
        $region92: #{tpu_custom_call.1} parent=51 // pred_fallthru
          _
        // Predicated region
        $region93: #{tpu_custom_call.1} parent=51 // pred_check
          %p721 = pneg %p416
        $region94: #{tpu_custom_call.1} parent=51 // pred_check_branch
          %723 = sbr.rel (%p721) target = $region96
        $region95: #{tpu_custom_call.1} parent=51 // pred_region
          %p724 = scmp.lt.s32.totalorder %s31, 1
          %s725 = scalar_select %p724, %s31, 1
          %s726 = scalar_lea.vmem %s15, %s725
        $region96: #{tpu_custom_call.1} parent=51 // pred_fallthru
          _
        // Predicated region
        $region97: #{tpu_custom_call.1} parent=51 // pred_check
          %p727 = pneg %p442
        $region98: #{tpu_custom_call.1} parent=51 // pred_check_branch
          %729 = sbr.rel (%p727) target = $region100
        $region99: #{tpu_custom_call.1} parent=51 // pred_region
          %p730 = scmp.lt.s32.totalorder %s31, 1
          %s731 = scalar_select %p730, %s31, 1
          %s732 = smul.addr %s731, 16
          %s733 = smul.addr %s732, 8
          %s734 = scalar_lea.vmem %s16, %s733
        $region100: #{tpu_custom_call.1} parent=51 // pred_fallthru
          _
        // Predicated region
        $region101: #{tpu_custom_call.1} parent=51 // pred_check
          %p735 = pneg %p468
        $region102: #{tpu_custom_call.1} parent=51 // pred_check_branch
          %737 = sbr.rel (%p735) target = $region104
        $region103: #{tpu_custom_call.1} parent=51 // pred_region
          %p738 = scmp.lt.s32.totalorder %s31, 1
          %s739 = scalar_select %p738, %s31, 1
          %s740 = scalar_lea.vmem %s17, %s739
        $region104: #{tpu_custom_call.1} parent=51 // pred_fallthru
          _
      $region52: #{tpu_custom_call.1} parent=5 // pred_fallthru
        _
      %p741 = scmp.le.s32.totalorder 1, %s31
      %p742 = scmp.lt.s32.totalorder %s31, 3
      %p743 = pnand %p741, %p742
      %p744 = pneg %p743
      // Predicated region
      $region105: #{tpu_custom_call.1} parent=5 // pred_check
        _
      $region106: #{tpu_custom_call.1} parent=5 // pred_check_branch
        %746 = sbr.rel (%p743) target = $region108
      $region107: #{tpu_custom_call.1} parent=5 // pred_region
        %s747 = ssub.s32 %s31, 1
        %p748 = pneg %p52
        %p749 = pneg %p49
        %p750 = pneg %p73
        %p751 = pneg %p70
        %p752 = pneg %p94
        %p753 = pneg %p91
        %p754 = pneg %p115
        %p755 = pneg %p112
        %p756 = pneg %p136
        %p757 = pneg %p133
        %p758 = scmp.lt.s32.totalorder %s36, 1
        %s759 = scalar_select %p758, %s36, 1
        %s760 = scalar_lea.vmem %s5, %s759
        %p761 = pneg %p162
        %p762 = pneg %p159
        %p763 = scmp.lt.s32.totalorder %s36, 1
        %s764 = scalar_select %p763, %s36, 1
        %s765 = scalar_lea.vmem %s6, %s764
        %p766 = pneg %p188
        %p767 = pneg %p185
        %p768 = scmp.lt.s32.totalorder %s36, 1
        %s769 = scalar_select %p768, %s36, 1
        %s770 = smul.addr %s769, 32
        %s771 = smul.addr %s770, 8
        %s772 = scalar_lea.vmem %s7, %s771
        %p773 = pneg %p214
        %p774 = pneg %p211
        %p775 = scmp.lt.s32.totalorder %s36, 1
        %s776 = scalar_select %p775, %s36, 1
        %s777 = smul.addr %s776, 32
        %s778 = smul.addr %s777, 8
        %s779 = scalar_lea.vmem %s8, %s778
        %p780 = pneg %p240
        %p781 = pneg %p237
        %p782 = scmp.lt.s32.totalorder %s36, 1
        %s783 = scalar_select %p782, %s36, 1
        %s784 = smul.addr %s783, 32
        %s785 = smul.addr %s784, 8
        %s786 = scalar_lea.vmem %s9, %s785
        %p787 = pneg %p266
        %p788 = pneg %p263
        %p789 = scmp.lt.s32.totalorder %s36, 1
        %s790 = scalar_select %p789, %s36, 1
        %s791 = smul.addr %s790, 8
        %s792 = smul.addr %s791, 8
        %s793 = scalar_lea.vmem %s10, %s792
        %p794 = pneg %p292
        %p795 = pneg %p289
        %p796 = scmp.lt.s32.totalorder %s36, 1
        %s797 = scalar_select %p796, %s36, 1
        %s798 = scalar_lea.vmem %s11, %s797
        %p799 = pneg %p318
        %p800 = pneg %p315
        %p801 = scmp.lt.s32.totalorder %s36, 1
        %s802 = scalar_select %p801, %s36, 1
        %s803 = scalar_lea.vmem %s12, %s802
        %p804 = pneg %p344
        %p805 = pneg %p341
        %p806 = scmp.lt.s32.totalorder %s36, 1
        %s807 = scalar_select %p806, %s36, 1
        %s808 = scalar_lea.vmem %s13, %s807
        %p809 = pneg %p370
        %p810 = pneg %p367
        %p811 = scmp.lt.s32.totalorder %s36, 1
        %s812 = scalar_select %p811, %s36, 1
        %s813 = smul.addr %s812, 8
        %s814 = smul.addr %s813, 8
        %s815 = scalar_lea.vmem %s14, %s814
        %p816 = pneg %p396
        %p817 = pneg %p393
        %p818 = scmp.lt.s32.totalorder %s36, 1
        %s819 = scalar_select %p818, %s36, 1
        %s820 = scalar_lea.vmem %s15, %s819
        %p821 = pneg %p422
        %p822 = pneg %p419
        %p823 = scmp.lt.s32.totalorder %s36, 1
        %s824 = scalar_select %p823, %s36, 1
        %s825 = smul.addr %s824, 16
        %s826 = smul.addr %s825, 8
        %s827 = scalar_lea.vmem %s16, %s826
        %p828 = pneg %p448
        %p829 = pneg %p445
        %p830 = scmp.lt.s32.totalorder %s36, 1
        %s831 = scalar_select %p830, %s36, 1
        %s832 = scalar_lea.vmem %s17, %s831
        %p833 = pneg %p474
        %p834 = pneg %p471
        %p835 = pneg %p495
        %p836 = pneg %p492
        %p837 = pneg %p516
        %p838 = pneg %p513
        %p839 = pneg %p537
        %p840 = pneg %p534
        %p841 = pneg %p558
        %p842 = pneg %p555
        %p843 = pneg %p584
        %p844 = pneg %p581
        %p845 = scmp.lt.s32.totalorder %s36, 1
        %s846 = scalar_select %p845, %s36, 1
        %s847 = smul.addr %s846, 2
        %s848 = smul.addr %s847, 8
        %s849 = scalar_lea.vmem %s22, %s848
        %p850 = pneg %p605
        %p851 = pneg %p602
        %p852 = scmp.lt.s32.totalorder %s36, 1
        %s853 = scalar_select %p852, %s36, 1
        %s854 = scalar_lea.vmem %s5, %s853
        %p855 = scmp.lt.s32.totalorder %s36, 1
        %s856 = scalar_select %p855, %s36, 1
        %s857 = scalar_lea.vmem %s6, %s856
        %p858 = scmp.lt.s32.totalorder %s36, 1
        %s859 = scalar_select %p858, %s36, 1
        %s860 = smul.addr %s859, 32
        %s861 = smul.addr %s860, 8
        %s862 = scalar_lea.vmem %s7, %s861
        %p863 = scmp.lt.s32.totalorder %s36, 1
        %s864 = scalar_select %p863, %s36, 1
        %s865 = smul.addr %s864, 32
        %s866 = smul.addr %s865, 8
        %s867 = scalar_lea.vmem %s8, %s866
        %p868 = scmp.lt.s32.totalorder %s36, 1
        %s869 = scalar_select %p868, %s36, 1
        %s870 = smul.addr %s869, 32
        %s871 = smul.addr %s870, 8
        %s872 = scalar_lea.vmem %s9, %s871
        %p873 = scmp.lt.s32.totalorder %s36, 1
        %s874 = scalar_select %p873, %s36, 1
        %s875 = smul.addr %s874, 8
        %s876 = smul.addr %s875, 8
        %s877 = scalar_lea.vmem %s10, %s876
        %p878 = scmp.lt.s32.totalorder %s36, 1
        %s879 = scalar_select %p878, %s36, 1
        %s880 = scalar_lea.vmem %s11, %s879
        %p881 = scmp.lt.s32.totalorder %s36, 1
        %s882 = scalar_select %p881, %s36, 1
        %s883 = scalar_lea.vmem %s12, %s882
        %p884 = scmp.lt.s32.totalorder %s36, 1
        %s885 = scalar_select %p884, %s36, 1
        %s886 = scalar_lea.vmem %s13, %s885
        %p887 = scmp.lt.s32.totalorder %s36, 1
        %s888 = scalar_select %p887, %s36, 1
        %s889 = smul.addr %s888, 8
        %s890 = smul.addr %s889, 8
        %s891 = scalar_lea.vmem %s14, %s890
        %p892 = scmp.lt.s32.totalorder %s36, 1
        %s893 = scalar_select %p892, %s36, 1
        %s894 = scalar_lea.vmem %s15, %s893
        %p895 = scmp.lt.s32.totalorder %s36, 1
        %s896 = scalar_select %p895, %s36, 1
        %s897 = smul.addr %s896, 16
        %s898 = smul.addr %s897, 8
        %s899 = scalar_lea.vmem %s16, %s898
        %p900 = scmp.lt.s32.totalorder %s36, 1
        %s901 = scalar_select %p900, %s36, 1
        %s902 = scalar_lea.vmem %s17, %s901
        %p903 = scmp.lt.s32.totalorder %s36, 1
        %s904 = scalar_select %p903, %s36, 1
        %s905 = smul.addr %s904, 2
        %s906 = smul.addr %s905, 8
        %s907 = scalar_lea.vmem %s22, %s906
        %p908 = scmp.eq.s32.totalorder %s36, 0
        // Predicated region
        $region109: #{tpu_custom_call.1} parent=107 // pred_check
          %p909 = pneg %p908
        $region110: #{tpu_custom_call.1} parent=107 // pred_check_branch
          %911 = sbr.rel (%p909) target = $region112
        $region111: #{tpu_custom_call.1} parent=107 // pred_region
          %v912 = vld [vmem:[%s0] sm:$0xff]
          %v913 = vld [vmem:[%s0 + $0x8] sm:$0xff]
          %v914 = vld [vmem:[%s1] sm:$0xff]
          %v915 = vld [vmem:[%s1 + $0x8] sm:$0xff]
          %v916 = vld [vmem:[%s1 + $0x10] sm:$0xff]
          %v917 = vld [vmem:[%s1 + $0x18] sm:$0xff]
          %v918 = vld [vmem:[%s1 + $0x20] sm:$0xff]
          %v919 = vld [vmem:[%s1 + $0x28] sm:$0xff]
          %v920 = vld [vmem:[%s1 + $0x30] sm:$0xff]
          %v921 = vld [vmem:[%s1 + $0x38] sm:$0xff]
          %v922 = vld [vmem:[%s1 + $0x40] sm:$0xff]
          %v923 = vld [vmem:[%s1 + $0x48] sm:$0xff]
          %v924 = vld [vmem:[%s1 + $0x50] sm:$0xff]
          %v925 = vld [vmem:[%s1 + $0x58] sm:$0xff]
          %v926 = vld [vmem:[%s1 + $0x60] sm:$0xff]
          %v927 = vld [vmem:[%s1 + $0x68] sm:$0xff]
          %v928 = vld [vmem:[%s1 + $0x70] sm:$0xff]
          %v929 = vld [vmem:[%s1 + $0x78] sm:$0xff]
          %v930 = vld [vmem:[%s1 + $0x80] sm:$0xff]
          %v931 = vld [vmem:[%s1 + $0x88] sm:$0xff]
          %v932 = vld [vmem:[%s1 + $0x90] sm:$0xff]
          %v933 = vld [vmem:[%s1 + $0x98] sm:$0xff]
          %v934 = vld [vmem:[%s1 + $0xa0] sm:$0xff]
          %v935 = vld [vmem:[%s1 + $0xa8] sm:$0xff]
          %v936 = vld [vmem:[%s1 + $0xb0] sm:$0xff]
          %v937 = vld [vmem:[%s1 + $0xb8] sm:$0xff]
          %v938 = vld [vmem:[%s1 + $0xc0] sm:$0xff]
          %v939 = vld [vmem:[%s1 + $0xc8] sm:$0xff]
          %v940 = vld [vmem:[%s1 + $0xd0] sm:$0xff]
          %v941 = vld [vmem:[%s1 + $0xd8] sm:$0xff]
          %v942 = vld [vmem:[%s1 + $0xe0] sm:$0xff]
          %v943 = vld [vmem:[%s1 + $0xe8] sm:$0xff]
          %v944 = vld [vmem:[%s1 + $0xf0] sm:$0xff]
          %v945 = vld [vmem:[%s1 + $0xf8] sm:$0xff]
          %v946 = vld [vmem:[%s2] sm:$0x1]
          %v948 = vperm.slane %v946, 0
          %950 = vmatpush.msra.mxu0 %v929
          %951 = vmatpush.msra.mxu0 %v928
          %952 = vmatpush.msra.mxu0 %v927
          %953 = vmatpush.msra.mxu0 %v926
          %954 = vmatpush.msra.mxu0 %v925
          %955 = vmatpush.msra.mxu0 %v924
          %956 = vmatpush.msra.mxu0 %v923
          %957 = vmatpush.msra.mxu0 %v922
          %958 = vmatpush.msra.mxu0 %v921
          %959 = vmatpush.msra.mxu0 %v920
          %960 = vmatpush.msra.mxu0 %v919
          %961 = vmatpush.msra.mxu0 %v918
          %962 = vmatpush.msra.mxu0 %v917
          %963 = vmatpush.msra.mxu0 %v916
          %964 = vmatpush.msra.mxu0 %v915
          %965 = vmatpush.msra.mxu0 %v914
          %966 = vmatmul.f32.gmra.mxu0 %v912
          %v967 = vpop.f32.mrf.mxu0
          %v968 = vadd.f32 %v948, %v967
          %969 = vdwg.mxu0
          %970 = vmatpush.msra.mxu0 %v945
          %971 = vmatpush.msra.mxu0 %v944
          %972 = vmatpush.msra.mxu0 %v943
          %973 = vmatpush.msra.mxu0 %v942
          %974 = vmatpush.msra.mxu0 %v941
          %975 = vmatpush.msra.mxu0 %v940
          %976 = vmatpush.msra.mxu0 %v939
          %977 = vmatpush.msra.mxu0 %v938
          %978 = vmatpush.msra.mxu0 %v937
          %979 = vmatpush.msra.mxu0 %v936
          %980 = vmatpush.msra.mxu0 %v935
          %981 = vmatpush.msra.mxu0 %v934
          %982 = vmatpush.msra.mxu0 %v933
          %983 = vmatpush.msra.mxu0 %v932
          %984 = vmatpush.msra.mxu0 %v931
          %985 = vmatpush.msra.mxu0 %v930
          %986 = vmatmul.f32.gmra.mxu0 %v913
          %v987 = vpop.f32.mrf.mxu0
          %v988 = vadd.f32 %v968, %v987
          %989 = vdwg.mxu0
          %v990 = vld [vmem:[%s3] sm:$0xf]
          %v991 = vld [vmem:[%s4] sm:$0x1]
          %vm992 = vcmask 516096
          %993 = vst.msk [vmem:[#allocation2] sm:$0x1] %vm992, %v991
          %v994 = vadd.f32 %v988, %v990
          %vm995 = vcmask 519168
          %996 = vst.msk [vmem:[#allocation2 + $0x1] sm:$0xf] %vm995, %v994
          %997 = vst.msk [vmem:[#allocation2 + $0x5] sm:$0x1] %vm992, %v991
          %v999 = vrot.slane %v990, 4
          %v1001 = vadd.f32 %v988, %v999
          %vm1002 = vcmask 523268
          %1003 = vst.msk [vmem:[#allocation2 + $0x2] sm:$0xf0] %vm1002, %v1001
        $region112: #{tpu_custom_call.1} parent=107 // pred_fallthru
          _
        %v1004 = vld [vmem:[#allocation2] sm:$0xff]
        %v1005 = vld [vmem:[#allocation2 + $0x8] sm:$0x3]
        %v1006 = vld [vmem:[%s854] sm:$0x1]
        %v1007 = vld [vmem:[%s857] sm:$0x1]
        %vm1008 = vcmask 523264
        %v1009 = vsel %vm1008, %v1004, 0.0
        %1010 = vadd.xlane.f32.xlu0 %v1009
        %v1011 = vpop.xlane.xlu0 %1010
        %vm1012 = vcmask 517120
        %v1013 = vsel %vm1012, %v1005, 0.0
        %1014 = vadd.xlane.f32.xlu0 %v1013
        %v1015 = vpop.xlane.xlu0 %1014
        %v1016 = vrcp.pop 64.0
        %v1017 = vmul.f32 64.0, %v1016
        %v1018 = vsub.f32 1.0, %v1017
        %v1019 = vmul.f32 %v1016, %v1018
        %v1020 = vadd.f32 %v1016, %v1019
        %vm1021 = vweird.f32 %v1016
        %v1022 = vsel %vm1021, %v1016, %v1020
        %v1023 = vmul.f32 %v1011, %v1022
        %v1024 = vmul.f32 %v1015, %v1022
        %v1025 = vsub.f32 %v1004, %v1023
        %v1026 = vsub.f32 %v1005, %v1024
        %v1027 = vmul.f32 %v1025, %v1025
        %v1028 = vmul.f32 %v1026, %v1026
        %v1029 = vsel %vm1008, %v1027, 0.0
        %1030 = vadd.xlane.f32.xlu0 %v1029
        %v1031 = vpop.xlane.xlu0 %1030
        %v1032 = vsel %vm1012, %v1028, 0.0
        %1033 = vadd.xlane.f32.xlu0 %v1032
        %v1034 = vpop.xlane.xlu0 %1033
        %v1035 = vmul.f32 %v1031, %v1022
        %v1036 = vmul.f32 %v1034, %v1022
        %v1037 = vadd.f32 %v1035, 1e-05
        %v1038 = vadd.f32 %v1036, 1e-05
        %v1039 = vrsqrt.pop %v1037
        %v1040 = vmul.f32 %v1039, %v1037
        %v1041 = vmul.f32 %v1040, %v1039
        %v1042 = vmul.f32 0.5, %v1041
        %v1043 = vsub.f32 1.5, %v1042
        %v1044 = vmul.f32 %v1039, %v1043
        %vm1045 = vweird.f32 %v1037
        %vm1046 = vweird.f32 %v1039
        %vm1047 = vmor %vm1045, %vm1046
        %v1048 = vsel %vm1047, %v1039, %v1044
        %v1049 = vrsqrt.pop %v1038
        %v1050 = vmul.f32 %v1049, %v1038
        %v1051 = vmul.f32 %v1050, %v1049
        %v1052 = vmul.f32 0.5, %v1051
        %v1053 = vsub.f32 1.5, %v1052
        %v1054 = vmul.f32 %v1049, %v1053
        %vm1055 = vweird.f32 %v1038
        %vm1056 = vweird.f32 %v1049
        %vm1057 = vmor %vm1055, %vm1056
        %v1058 = vsel %vm1057, %v1049, %v1054
        %v1059 = vmul.f32 %v1025, %v1048
        %v1060 = vmul.f32 %v1026, %v1058
        %v1062 = vperm.slane %v1006, 0
        %v1064 = vmul.f32 %v1059, %v1062
        %v1065 = vmul.f32 %v1060, %v1062
        %v1067 = vperm.slane %v1007, 0
        %v1069 = vadd.f32 %v1064, %v1067
        %v1070 = vadd.f32 %v1065, %v1067
        %v1071 = vld [vmem:[%s862] sm:$0xff]
        %v1072 = vld [vmem:[%s862 + $0x8] sm:$0xff]
        %v1073 = vld [vmem:[%s862 + $0x10] sm:$0xff]
        %v1074 = vld [vmem:[%s862 + $0x18] sm:$0xff]
        %v1075 = vld [vmem:[%s862 + $0x20] sm:$0xff]
        %v1076 = vld [vmem:[%s862 + $0x28] sm:$0xff]
        %v1077 = vld [vmem:[%s862 + $0x30] sm:$0xff]
        %v1078 = vld [vmem:[%s862 + $0x38] sm:$0xff]
        %v1079 = vld [vmem:[%s862 + $0x40] sm:$0xff]
        %v1080 = vld [vmem:[%s862 + $0x48] sm:$0xff]
        %v1081 = vld [vmem:[%s862 + $0x50] sm:$0xff]
        %v1082 = vld [vmem:[%s862 + $0x58] sm:$0xff]
        %v1083 = vld [vmem:[%s862 + $0x60] sm:$0xff]
        %v1084 = vld [vmem:[%s862 + $0x68] sm:$0xff]
        %v1085 = vld [vmem:[%s862 + $0x70] sm:$0xff]
        %v1086 = vld [vmem:[%s862 + $0x78] sm:$0xff]
        %v1087 = vld [vmem:[%s862 + $0x80] sm:$0xff]
        %v1088 = vld [vmem:[%s862 + $0x88] sm:$0xff]
        %v1089 = vld [vmem:[%s862 + $0x90] sm:$0xff]
        %v1090 = vld [vmem:[%s862 + $0x98] sm:$0xff]
        %v1091 = vld [vmem:[%s862 + $0xa0] sm:$0xff]
        %v1092 = vld [vmem:[%s862 + $0xa8] sm:$0xff]
        %v1093 = vld [vmem:[%s862 + $0xb0] sm:$0xff]
        %v1094 = vld [vmem:[%s862 + $0xb8] sm:$0xff]
        %v1095 = vld [vmem:[%s862 + $0xc0] sm:$0xff]
        %v1096 = vld [vmem:[%s862 + $0xc8] sm:$0xff]
        %v1097 = vld [vmem:[%s862 + $0xd0] sm:$0xff]
        %v1098 = vld [vmem:[%s862 + $0xd8] sm:$0xff]
        %v1099 = vld [vmem:[%s862 + $0xe0] sm:$0xff]
        %v1100 = vld [vmem:[%s862 + $0xe8] sm:$0xff]
        %v1101 = vld [vmem:[%s862 + $0xf0] sm:$0xff]
        %v1102 = vld [vmem:[%s862 + $0xf8] sm:$0xff]
        %v1104 = vsel %vm1008, %v1069, 0
        %v1107 = vsel %vm1008, %v1070, 0
        %1109 = vmatpush.msra.mxu0 0.0
        %1110 = vmatpush.msra.mxu0 0.0
        %1111 = vmatpush.msra.mxu0 0.0
        %1112 = vmatpush.msra.mxu0 0.0
        %1113 = vmatpush.msra.mxu0 0.0
        %1114 = vmatpush.msra.mxu0 0.0
        %1115 = vmatpush.msra.mxu0 0.0
        %1116 = vmatpush.msra.mxu0 0.0
        %1117 = vmatpush.msra.mxu0 %v1078
        %1118 = vmatpush.msra.mxu0 %v1077
        %1119 = vmatpush.msra.mxu0 %v1076
        %1120 = vmatpush.msra.mxu0 %v1075
        %1121 = vmatpush.msra.mxu0 %v1074
        %1122 = vmatpush.msra.mxu0 %v1073
        %1123 = vmatpush.msra.mxu0 %v1072
        %1124 = vmatpush.msra.mxu0 %v1071
        %1125 = vmatmul.f32.gmra.mxu0 %v1104
        %v1126 = vpop.f32.mrf.mxu0
        %v1127 = vadd.f32 0.0, %v1126
        %1128 = vmatmul.f32.gmra.mxu0 %v1107
        %v1129 = vpop.f32.mrf.mxu0
        %v1130 = vadd.f32 0.0, %v1129
        %1131 = vdwg.mxu0
        %1132 = vmatpush.msra.mxu0 0.0
        %1133 = vmatpush.msra.mxu0 0.0
        %1134 = vmatpush.msra.mxu0 0.0
        %1135 = vmatpush.msra.mxu0 0.0
        %1136 = vmatpush.msra.mxu0 0.0
        %1137 = vmatpush.msra.mxu0 0.0
        %1138 = vmatpush.msra.mxu0 0.0
        %1139 = vmatpush.msra.mxu0 0.0
        %1140 = vmatpush.msra.mxu0 %v1086
        %1141 = vmatpush.msra.mxu0 %v1085
        %1142 = vmatpush.msra.mxu0 %v1084
        %1143 = vmatpush.msra.mxu0 %v1083
        %1144 = vmatpush.msra.mxu0 %v1082
        %1145 = vmatpush.msra.mxu0 %v1081
        %1146 = vmatpush.msra.mxu0 %v1080
        %1147 = vmatpush.msra.mxu0 %v1079
        %1148 = vmatmul.f32.gmra.mxu0 %v1104
        %v1149 = vpop.f32.mrf.mxu0
        %v1150 = vadd.f32 0.0, %v1149
        %1151 = vmatmul.f32.gmra.mxu0 %v1107
        %v1152 = vpop.f32.mrf.mxu0
        %v1153 = vadd.f32 0.0, %v1152
        %1154 = vdwg.mxu0
        %1155 = vmatpush.msra.mxu0 0.0
        %1156 = vmatpush.msra.mxu0 0.0
        %1157 = vmatpush.msra.mxu0 0.0
        %1158 = vmatpush.msra.mxu0 0.0
        %1159 = vmatpush.msra.mxu0 0.0
        %1160 = vmatpush.msra.mxu0 0.0
        %1161 = vmatpush.msra.mxu0 0.0
        %1162 = vmatpush.msra.mxu0 0.0
        %1163 = vmatpush.msra.mxu0 %v1094
        %1164 = vmatpush.msra.mxu0 %v1093
        %1165 = vmatpush.msra.mxu0 %v1092
        %1166 = vmatpush.msra.mxu0 %v1091
        %1167 = vmatpush.msra.mxu0 %v1090
        %1168 = vmatpush.msra.mxu0 %v1089
        %1169 = vmatpush.msra.mxu0 %v1088
        %1170 = vmatpush.msra.mxu0 %v1087
        %1171 = vmatmul.f32.gmra.mxu0 %v1104
        %v1172 = vpop.f32.mrf.mxu0
        %v1173 = vadd.f32 0.0, %v1172
        %1174 = vmatmul.f32.gmra.mxu0 %v1107
        %v1175 = vpop.f32.mrf.mxu0
        %v1176 = vadd.f32 0.0, %v1175
        %1177 = vdwg.mxu0
        %1178 = vmatpush.msra.mxu0 0.0
        %1179 = vmatpush.msra.mxu0 0.0
        %1180 = vmatpush.msra.mxu0 0.0
        %1181 = vmatpush.msra.mxu0 0.0
        %1182 = vmatpush.msra.mxu0 0.0
        %1183 = vmatpush.msra.mxu0 0.0
        %1184 = vmatpush.msra.mxu0 0.0
        %1185 = vmatpush.msra.mxu0 0.0
        %1186 = vmatpush.msra.mxu0 %v1102
        %1187 = vmatpush.msra.mxu0 %v1101
        %1188 = vmatpush.msra.mxu0 %v1100
        %1189 = vmatpush.msra.mxu0 %v1099
        %1190 = vmatpush.msra.mxu0 %v1098
        %1191 = vmatpush.msra.mxu0 %v1097
        %1192 = vmatpush.msra.mxu0 %v1096
        %1193 = vmatpush.msra.mxu0 %v1095
        %1194 = vmatmul.f32.gmra.mxu0 %v1104
        %v1195 = vpop.f32.mrf.mxu0
        %v1196 = vadd.f32 0.0, %v1195
        %1197 = vmatmul.f32.gmra.mxu0 %v1107
        %v1198 = vpop.f32.mrf.mxu0
        %v1199 = vadd.f32 0.0, %v1198
        %1200 = vdwg.mxu0
        %v1201 = vld [vmem:[%s867] sm:$0xff]
        %v1202 = vld [vmem:[%s867 + $0x8] sm:$0xff]
        %v1203 = vld [vmem:[%s867 + $0x10] sm:$0xff]
        %v1204 = vld [vmem:[%s867 + $0x18] sm:$0xff]
        %v1205 = vld [vmem:[%s867 + $0x20] sm:$0xff]
        %v1206 = vld [vmem:[%s867 + $0x28] sm:$0xff]
        %v1207 = vld [vmem:[%s867 + $0x30] sm:$0xff]
        %v1208 = vld [vmem:[%s867 + $0x38] sm:$0xff]
        %v1209 = vld [vmem:[%s867 + $0x40] sm:$0xff]
        %v1210 = vld [vmem:[%s867 + $0x48] sm:$0xff]
        %v1211 = vld [vmem:[%s867 + $0x50] sm:$0xff]
        %v1212 = vld [vmem:[%s867 + $0x58] sm:$0xff]
        %v1213 = vld [vmem:[%s867 + $0x60] sm:$0xff]
        %v1214 = vld [vmem:[%s867 + $0x68] sm:$0xff]
        %v1215 = vld [vmem:[%s867 + $0x70] sm:$0xff]
        %v1216 = vld [vmem:[%s867 + $0x78] sm:$0xff]
        %v1217 = vld [vmem:[%s867 + $0x80] sm:$0xff]
        %v1218 = vld [vmem:[%s867 + $0x88] sm:$0xff]
        %v1219 = vld [vmem:[%s867 + $0x90] sm:$0xff]
        %v1220 = vld [vmem:[%s867 + $0x98] sm:$0xff]
        %v1221 = vld [vmem:[%s867 + $0xa0] sm:$0xff]
        %v1222 = vld [vmem:[%s867 + $0xa8] sm:$0xff]
        %v1223 = vld [vmem:[%s867 + $0xb0] sm:$0xff]
        %v1224 = vld [vmem:[%s867 + $0xb8] sm:$0xff]
        %v1225 = vld [vmem:[%s867 + $0xc0] sm:$0xff]
        %v1226 = vld [vmem:[%s867 + $0xc8] sm:$0xff]
        %v1227 = vld [vmem:[%s867 + $0xd0] sm:$0xff]
        %v1228 = vld [vmem:[%s867 + $0xd8] sm:$0xff]
        %v1229 = vld [vmem:[%s867 + $0xe0] sm:$0xff]
        %v1230 = vld [vmem:[%s867 + $0xe8] sm:$0xff]
        %v1231 = vld [vmem:[%s867 + $0xf0] sm:$0xff]
        %v1232 = vld [vmem:[%s867 + $0xf8] sm:$0xff]
        %1233 = vmatpush.msra.mxu0 0.0
        %1234 = vmatpush.msra.mxu0 0.0
        %1235 = vmatpush.msra.mxu0 0.0
        %1236 = vmatpush.msra.mxu0 0.0
        %1237 = vmatpush.msra.mxu0 0.0
        %1238 = vmatpush.msra.mxu0 0.0
        %1239 = vmatpush.msra.mxu0 0.0
        %1240 = vmatpush.msra.mxu0 0.0
        %1241 = vmatpush.msra.mxu0 %v1208
        %1242 = vmatpush.msra.mxu0 %v1207
        %1243 = vmatpush.msra.mxu0 %v1206
        %1244 = vmatpush.msra.mxu0 %v1205
        %1245 = vmatpush.msra.mxu0 %v1204
        %1246 = vmatpush.msra.mxu0 %v1203
        %1247 = vmatpush.msra.mxu0 %v1202
        %1248 = vmatpush.msra.mxu0 %v1201
        %1249 = vmatmul.f32.gmra.mxu0 %v1104
        %v1250 = vpop.f32.mrf.mxu0
        %v1251 = vadd.f32 0.0, %v1250
        %1252 = vmatmul.f32.gmra.mxu0 %v1107
        %v1253 = vpop.f32.mrf.mxu0
        %v1254 = vadd.f32 0.0, %v1253
        %1255 = vdwg.mxu0
        %1256 = vmatpush.msra.mxu0 0.0
        %1257 = vmatpush.msra.mxu0 0.0
        %1258 = vmatpush.msra.mxu0 0.0
        %1259 = vmatpush.msra.mxu0 0.0
        %1260 = vmatpush.msra.mxu0 0.0
        %1261 = vmatpush.msra.mxu0 0.0
        %1262 = vmatpush.msra.mxu0 0.0
        %1263 = vmatpush.msra.mxu0 0.0
        %1264 = vmatpush.msra.mxu0 %v1216
        %1265 = vmatpush.msra.mxu0 %v1215
        %1266 = vmatpush.msra.mxu0 %v1214
        %1267 = vmatpush.msra.mxu0 %v1213
        %1268 = vmatpush.msra.mxu0 %v1212
        %1269 = vmatpush.msra.mxu0 %v1211
        %1270 = vmatpush.msra.mxu0 %v1210
        %1271 = vmatpush.msra.mxu0 %v1209
        %1272 = vmatmul.f32.gmra.mxu0 %v1104
        %v1273 = vpop.f32.mrf.mxu0
        %v1274 = vadd.f32 0.0, %v1273
        %1275 = vmatmul.f32.gmra.mxu0 %v1107
        %v1276 = vpop.f32.mrf.mxu0
        %v1277 = vadd.f32 0.0, %v1276
        %1278 = vdwg.mxu0
        %1279 = vmatpush.msra.mxu0 0.0
        %1280 = vmatpush.msra.mxu0 0.0
        %1281 = vmatpush.msra.mxu0 0.0
        %1282 = vmatpush.msra.mxu0 0.0
        %1283 = vmatpush.msra.mxu0 0.0
        %1284 = vmatpush.msra.mxu0 0.0
        %1285 = vmatpush.msra.mxu0 0.0
        %1286 = vmatpush.msra.mxu0 0.0
        %1287 = vmatpush.msra.mxu0 %v1224
        %1288 = vmatpush.msra.mxu0 %v1223
        %1289 = vmatpush.msra.mxu0 %v1222
        %1290 = vmatpush.msra.mxu0 %v1221
        %1291 = vmatpush.msra.mxu0 %v1220
        %1292 = vmatpush.msra.mxu0 %v1219
        %1293 = vmatpush.msra.mxu0 %v1218
        %1294 = vmatpush.msra.mxu0 %v1217
        %1295 = vmatmul.f32.gmra.mxu0 %v1104
        %v1296 = vpop.f32.mrf.mxu0
        %v1297 = vadd.f32 0.0, %v1296
        %1298 = vmatmul.f32.gmra.mxu0 %v1107
        %v1299 = vpop.f32.mrf.mxu0
        %v1300 = vadd.f32 0.0, %v1299
        %1301 = vdwg.mxu0
        %1302 = vmatpush.msra.mxu0 0.0
        %1303 = vmatpush.msra.mxu0 0.0
        %1304 = vmatpush.msra.mxu0 0.0
        %1305 = vmatpush.msra.mxu0 0.0
        %1306 = vmatpush.msra.mxu0 0.0
        %1307 = vmatpush.msra.mxu0 0.0
        %1308 = vmatpush.msra.mxu0 0.0
        %1309 = vmatpush.msra.mxu0 0.0
        %1310 = vmatpush.msra.mxu0 %v1232
        %1311 = vmatpush.msra.mxu0 %v1231
        %1312 = vmatpush.msra.mxu0 %v1230
        %1313 = vmatpush.msra.mxu0 %v1229
        %1314 = vmatpush.msra.mxu0 %v1228
        %1315 = vmatpush.msra.mxu0 %v1227
        %1316 = vmatpush.msra.mxu0 %v1226
        %1317 = vmatpush.msra.mxu0 %v1225
        %1318 = vmatmul.f32.gmra.mxu0 %v1104
        %v1319 = vpop.f32.mrf.mxu0
        %v1320 = vadd.f32 0.0, %v1319
        %1321 = vmatmul.f32.gmra.mxu0 %v1107
        %v1322 = vpop.f32.mrf.mxu0
        %v1323 = vadd.f32 0.0, %v1322
        %1324 = vdwg.mxu0
        %v1325 = vld [vmem:[%s872] sm:$0xff]
        %v1326 = vld [vmem:[%s872 + $0x8] sm:$0xff]
        %v1327 = vld [vmem:[%s872 + $0x10] sm:$0xff]
        %v1328 = vld [vmem:[%s872 + $0x18] sm:$0xff]
        %v1329 = vld [vmem:[%s872 + $0x20] sm:$0xff]
        %v1330 = vld [vmem:[%s872 + $0x28] sm:$0xff]
        %v1331 = vld [vmem:[%s872 + $0x30] sm:$0xff]
        %v1332 = vld [vmem:[%s872 + $0x38] sm:$0xff]
        %v1333 = vld [vmem:[%s872 + $0x40] sm:$0xff]
        %v1334 = vld [vmem:[%s872 + $0x48] sm:$0xff]
        %v1335 = vld [vmem:[%s872 + $0x50] sm:$0xff]
        %v1336 = vld [vmem:[%s872 + $0x58] sm:$0xff]
        %v1337 = vld [vmem:[%s872 + $0x60] sm:$0xff]
        %v1338 = vld [vmem:[%s872 + $0x68] sm:$0xff]
        %v1339 = vld [vmem:[%s872 + $0x70] sm:$0xff]
        %v1340 = vld [vmem:[%s872 + $0x78] sm:$0xff]
        %v1341 = vld [vmem:[%s872 + $0x80] sm:$0xff]
        %v1342 = vld [vmem:[%s872 + $0x88] sm:$0xff]
        %v1343 = vld [vmem:[%s872 + $0x90] sm:$0xff]
        %v1344 = vld [vmem:[%s872 + $0x98] sm:$0xff]
        %v1345 = vld [vmem:[%s872 + $0xa0] sm:$0xff]
        %v1346 = vld [vmem:[%s872 + $0xa8] sm:$0xff]
        %v1347 = vld [vmem:[%s872 + $0xb0] sm:$0xff]
        %v1348 = vld [vmem:[%s872 + $0xb8] sm:$0xff]
        %v1349 = vld [vmem:[%s872 + $0xc0] sm:$0xff]
        %v1350 = vld [vmem:[%s872 + $0xc8] sm:$0xff]
        %v1351 = vld [vmem:[%s872 + $0xd0] sm:$0xff]
        %v1352 = vld [vmem:[%s872 + $0xd8] sm:$0xff]
        %v1353 = vld [vmem:[%s872 + $0xe0] sm:$0xff]
        %v1354 = vld [vmem:[%s872 + $0xe8] sm:$0xff]
        %v1355 = vld [vmem:[%s872 + $0xf0] sm:$0xff]
        %v1356 = vld [vmem:[%s872 + $0xf8] sm:$0xff]
        %1357 = vmatpush.msra.mxu0 0.0
        %1358 = vmatpush.msra.mxu0 0.0
        %1359 = vmatpush.msra.mxu0 0.0
        %1360 = vmatpush.msra.mxu0 0.0
        %1361 = vmatpush.msra.mxu0 0.0
        %1362 = vmatpush.msra.mxu0 0.0
        %1363 = vmatpush.msra.mxu0 0.0
        %1364 = vmatpush.msra.mxu0 0.0
        %1365 = vmatpush.msra.mxu0 %v1332
        %1366 = vmatpush.msra.mxu0 %v1331
        %1367 = vmatpush.msra.mxu0 %v1330
        %1368 = vmatpush.msra.mxu0 %v1329
        %1369 = vmatpush.msra.mxu0 %v1328
        %1370 = vmatpush.msra.mxu0 %v1327
        %1371 = vmatpush.msra.mxu0 %v1326
        %1372 = vmatpush.msra.mxu0 %v1325
        %1373 = vmatmul.f32.gmra.mxu0 %v1104
        %v1374 = vpop.f32.mrf.mxu0
        %v1375 = vadd.f32 0.0, %v1374
        %1376 = vmatmul.f32.gmra.mxu0 %v1107
        %v1377 = vpop.f32.mrf.mxu0
        %v1378 = vadd.f32 0.0, %v1377
        %1379 = vdwg.mxu0
        %1380 = vmatpush.msra.mxu0 0.0
        %1381 = vmatpush.msra.mxu0 0.0
        %1382 = vmatpush.msra.mxu0 0.0
        %1383 = vmatpush.msra.mxu0 0.0
        %1384 = vmatpush.msra.mxu0 0.0
        %1385 = vmatpush.msra.mxu0 0.0
        %1386 = vmatpush.msra.mxu0 0.0
        %1387 = vmatpush.msra.mxu0 0.0
        %1388 = vmatpush.msra.mxu0 %v1340
        %1389 = vmatpush.msra.mxu0 %v1339
        %1390 = vmatpush.msra.mxu0 %v1338
        %1391 = vmatpush.msra.mxu0 %v1337
        %1392 = vmatpush.msra.mxu0 %v1336
        %1393 = vmatpush.msra.mxu0 %v1335
        %1394 = vmatpush.msra.mxu0 %v1334
        %1395 = vmatpush.msra.mxu0 %v1333
        %1396 = vmatmul.f32.gmra.mxu0 %v1104
        %v1397 = vpop.f32.mrf.mxu0
        %v1398 = vadd.f32 0.0, %v1397
        %1399 = vmatmul.f32.gmra.mxu0 %v1107
        %v1400 = vpop.f32.mrf.mxu0
        %v1401 = vadd.f32 0.0, %v1400
        %1402 = vdwg.mxu0
        %1403 = vmatpush.msra.mxu0 0.0
        %1404 = vmatpush.msra.mxu0 0.0
        %1405 = vmatpush.msra.mxu0 0.0
        %1406 = vmatpush.msra.mxu0 0.0
        %1407 = vmatpush.msra.mxu0 0.0
        %1408 = vmatpush.msra.mxu0 0.0
        %1409 = vmatpush.msra.mxu0 0.0
        %1410 = vmatpush.msra.mxu0 0.0
        %1411 = vmatpush.msra.mxu0 %v1348
        %1412 = vmatpush.msra.mxu0 %v1347
        %1413 = vmatpush.msra.mxu0 %v1346
        %1414 = vmatpush.msra.mxu0 %v1345
        %1415 = vmatpush.msra.mxu0 %v1344
        %1416 = vmatpush.msra.mxu0 %v1343
        %1417 = vmatpush.msra.mxu0 %v1342
        %1418 = vmatpush.msra.mxu0 %v1341
        %1419 = vmatmul.f32.gmra.mxu0 %v1104
        %v1420 = vpop.f32.mrf.mxu0
        %v1421 = vadd.f32 0.0, %v1420
        %1422 = vmatmul.f32.gmra.mxu0 %v1107
        %v1423 = vpop.f32.mrf.mxu0
        %v1424 = vadd.f32 0.0, %v1423
        %1425 = vdwg.mxu0
        %1426 = vmatpush.msra.mxu0 0.0
        %1427 = vmatpush.msra.mxu0 0.0
        %1428 = vmatpush.msra.mxu0 0.0
        %1429 = vmatpush.msra.mxu0 0.0
        %1430 = vmatpush.msra.mxu0 0.0
        %1431 = vmatpush.msra.mxu0 0.0
        %1432 = vmatpush.msra.mxu0 0.0
        %1433 = vmatpush.msra.mxu0 0.0
        %1434 = vmatpush.msra.mxu0 %v1356
        %1435 = vmatpush.msra.mxu0 %v1355
        %1436 = vmatpush.msra.mxu0 %v1354
        %1437 = vmatpush.msra.mxu0 %v1353
        %1438 = vmatpush.msra.mxu0 %v1352
        %1439 = vmatpush.msra.mxu0 %v1351
        %1440 = vmatpush.msra.mxu0 %v1350
        %1441 = vmatpush.msra.mxu0 %v1349
        %1442 = vmatmul.f32.gmra.mxu0 %v1104
        %v1443 = vpop.f32.mrf.mxu0
        %v1444 = vadd.f32 0.0, %v1443
        %1445 = vmatmul.f32.gmra.mxu0 %v1107
        %v1446 = vpop.f32.mrf.mxu0
        %v1447 = vadd.f32 0.0, %v1446
        %1448 = vdwg.mxu0
        %v1457 = vrot.slane %v1127, 1
        %v1458 = vrot.slane %v1127, 2
        %v1459 = vrot.slane %v1127, 3
        %v1460 = vrot.slane %v1127, 4
        %v1461 = vrot.slane %v1127, 5
        %v1462 = vrot.slane %v1127, 6
        %v1463 = vrot.slane %v1127, 7
        %v1464 = vrot.slane %v1130, 1
        %v1465 = vrot.slane %v1150, 1
        %v1466 = vrot.slane %v1150, 2
        %v1467 = vrot.slane %v1150, 3
        %v1468 = vrot.slane %v1150, 4
        %v1469 = vrot.slane %v1150, 5
        %v1470 = vrot.slane %v1150, 6
        %v1471 = vrot.slane %v1150, 7
        %v1472 = vrot.slane %v1153, 1
        %v1473 = vrot.slane %v1173, 1
        %v1474 = vrot.slane %v1173, 2
        %v1475 = vrot.slane %v1173, 3
        %v1476 = vrot.slane %v1173, 4
        %v1477 = vrot.slane %v1173, 5
        %v1478 = vrot.slane %v1173, 6
        %v1479 = vrot.slane %v1173, 7
        %v1480 = vrot.slane %v1176, 1
        %v1481 = vrot.slane %v1196, 1
        %v1482 = vrot.slane %v1196, 2
        %v1483 = vrot.slane %v1196, 3
        %v1484 = vrot.slane %v1196, 4
        %v1485 = vrot.slane %v1196, 5
        %v1486 = vrot.slane %v1196, 6
        %v1487 = vrot.slane %v1196, 7
        %v1488 = vrot.slane %v1199, 1
        %v1497 = vrot.slane %v1251, 1
        %v1498 = vrot.slane %v1251, 2
        %v1499 = vrot.slane %v1251, 3
        %v1500 = vrot.slane %v1251, 4
        %v1501 = vrot.slane %v1251, 5
        %v1502 = vrot.slane %v1251, 6
        %v1503 = vrot.slane %v1251, 7
        %v1504 = vrot.slane %v1254, 1
        %v1505 = vrot.slane %v1274, 1
        %v1506 = vrot.slane %v1274, 2
        %v1507 = vrot.slane %v1274, 3
        %v1508 = vrot.slane %v1274, 4
        %v1509 = vrot.slane %v1274, 5
        %v1510 = vrot.slane %v1274, 6
        %v1511 = vrot.slane %v1274, 7
        %v1512 = vrot.slane %v1277, 1
        %v1513 = vrot.slane %v1297, 1
        %v1514 = vrot.slane %v1297, 2
        %v1515 = vrot.slane %v1297, 3
        %v1516 = vrot.slane %v1297, 4
        %v1517 = vrot.slane %v1297, 5
        %v1518 = vrot.slane %v1297, 6
        %v1519 = vrot.slane %v1297, 7
        %v1520 = vrot.slane %v1300, 1
        %v1521 = vrot.slane %v1320, 1
        %v1522 = vrot.slane %v1320, 2
        %v1523 = vrot.slane %v1320, 3
        %v1524 = vrot.slane %v1320, 4
        %v1525 = vrot.slane %v1320, 5
        %v1526 = vrot.slane %v1320, 6
        %v1527 = vrot.slane %v1320, 7
        %v1528 = vrot.slane %v1323, 1
        %v1537 = vrot.slane %v1375, 1
        %v1538 = vrot.slane %v1375, 2
        %v1539 = vrot.slane %v1375, 3
        %v1540 = vrot.slane %v1375, 4
        %v1541 = vrot.slane %v1375, 5
        %v1542 = vrot.slane %v1375, 6
        %v1543 = vrot.slane %v1375, 7
        %v1544 = vrot.slane %v1378, 1
        %v1545 = vrot.slane %v1398, 1
        %v1546 = vrot.slane %v1398, 2
        %v1547 = vrot.slane %v1398, 3
        %v1548 = vrot.slane %v1398, 4
        %v1549 = vrot.slane %v1398, 5
        %v1550 = vrot.slane %v1398, 6
        %v1551 = vrot.slane %v1398, 7
        %v1552 = vrot.slane %v1401, 1
        %v1553 = vrot.slane %v1421, 1
        %v1554 = vrot.slane %v1421, 2
        %v1555 = vrot.slane %v1421, 3
        %v1556 = vrot.slane %v1421, 4
        %v1557 = vrot.slane %v1421, 5
        %v1558 = vrot.slane %v1421, 6
        %v1559 = vrot.slane %v1421, 7
        %v1560 = vrot.slane %v1424, 1
        %v1561 = vrot.slane %v1444, 1
        %v1562 = vrot.slane %v1444, 2
        %v1563 = vrot.slane %v1444, 3
        %v1564 = vrot.slane %v1444, 4
        %v1565 = vrot.slane %v1444, 5
        %v1566 = vrot.slane %v1444, 6
        %v1567 = vrot.slane %v1444, 7
        %v1568 = vrot.slane %v1447, 1
        %1569 = vst [vmem:[#allocation1] ss:$9 sm:$0xff] %v1127
        %s1570 = scalar_lea.vmem [#allocation1], 1
        %1571 = vst [vmem:[%s1570] ss:$9 sm:$0xff] %v1457
        %s1572 = scalar_lea.vmem [#allocation1], 2
        %1573 = vst [vmem:[%s1572] ss:$9 sm:$0xff] %v1458
        %s1574 = scalar_lea.vmem [#allocation1], 3
        %1575 = vst [vmem:[%s1574] ss:$9 sm:$0xff] %v1459
        %s1576 = scalar_lea.vmem [#allocation1], 4
        %1577 = vst [vmem:[%s1576] ss:$9 sm:$0xff] %v1460
        %v1578 = vld [vmem:[#allocation1] sm:$0xff]
        %1579 = vst [vmem:[#allocation1] ss:$9 sm:$0xff] %v1251
        %s1580 = scalar_lea.vmem [#allocation1], 1
        %1581 = vst [vmem:[%s1580] ss:$9 sm:$0xff] %v1497
        %s1582 = scalar_lea.vmem [#allocation1], 2
        %1583 = vst [vmem:[%s1582] ss:$9 sm:$0xff] %v1498
        %s1584 = scalar_lea.vmem [#allocation1], 3
        %1585 = vst [vmem:[%s1584] ss:$9 sm:$0xff] %v1499
        %s1586 = scalar_lea.vmem [#allocation1], 4
        %1587 = vst [vmem:[%s1586] ss:$9 sm:$0xff] %v1500
        %v1588 = vld [vmem:[#allocation1] sm:$0xff]
        %vm1589 = vcmask 130048
        %v1590 = vsel %vm1589, %v1578, 0
        %v1592 = vsel %vm1589, %v1588, 0
        %1594 = vmatpush.xpose.msra.mxu0 0.0
        %1595 = vmatpush.xpose.msra.mxu0 0.0
        %1596 = vmatpush.xpose.msra.mxu0 0.0
        %1597 = vmatpush.xpose.msra.mxu0 0.0
        %1598 = vmatpush.xpose.msra.mxu0 0.0
        %1599 = vmatpush.xpose.msra.mxu0 0.0
        %1600 = vmatpush.xpose.msra.mxu0 0.0
        %1601 = vmatpush.xpose.msra.mxu0 0.0
        %1602 = vmatpush.xpose.msra.mxu0 0.0
        %1603 = vmatpush.xpose.msra.mxu0 0.0
        %1604 = vmatpush.xpose.msra.mxu0 0.0
        %1605 = vmatpush.xpose.msra.mxu0 0.0
        %1606 = vmatpush.xpose.msra.mxu0 0.0
        %1607 = vmatpush.xpose.msra.mxu0 0.0
        %1608 = vmatpush.xpose.msra.mxu0 0.0
        %1609 = vmatpush.xpose.msra.mxu0 %v1592
        %1610 = vmatmul.f32.gmra.mxu0 %v1590
        %v1611 = vpop.f32.mrf.mxu0
        %v1612 = vadd.f32 0.0, %v1611
        %1613 = vdwg.mxu0
        %1614 = vst [vmem:[#allocation1] ss:$9 sm:$0xff] %v1461
        %s1615 = scalar_lea.vmem [#allocation1], 1
        %1616 = vst [vmem:[%s1615] ss:$9 sm:$0xff] %v1462
        %s1617 = scalar_lea.vmem [#allocation1], 2
        %1618 = vst [vmem:[%s1617] ss:$9 sm:$0xff] %v1463
        %s1619 = scalar_lea.vmem [#allocation1], 3
        %1620 = vst [vmem:[%s1619] ss:$9 sm:$0xff] %v1130
        %s1621 = scalar_lea.vmem [#allocation1], 4
        %1622 = vst [vmem:[%s1621] ss:$9 sm:$0xff] %v1464
        %v1623 = vld [vmem:[#allocation1] sm:$0xff]
        %1624 = vst [vmem:[#allocation1] ss:$9 sm:$0xff] %v1501
        %s1625 = scalar_lea.vmem [#allocation1], 1
        %1626 = vst [vmem:[%s1625] ss:$9 sm:$0xff] %v1502
        %s1627 = scalar_lea.vmem [#allocation1], 2
        %1628 = vst [vmem:[%s1627] ss:$9 sm:$0xff] %v1503
        %s1629 = scalar_lea.vmem [#allocation1], 3
        %1630 = vst [vmem:[%s1629] ss:$9 sm:$0xff] %v1254
        %s1631 = scalar_lea.vmem [#allocation1], 4
        %1632 = vst [vmem:[%s1631] ss:$9 sm:$0xff] %v1504
        %v1633 = vld [vmem:[#allocation1] sm:$0xff]
        %v1634 = vsel %vm1589, %v1623, 0
        %v1636 = vsel %vm1589, %v1633, 0
        %1638 = vmatpush.xpose.msra.mxu0 0.0
        %1639 = vmatpush.xpose.msra.mxu0 0.0
        %1640 = vmatpush.xpose.msra.mxu0 0.0
        %1641 = vmatpush.xpose.msra.mxu0 0.0
        %1642 = vmatpush.xpose.msra.mxu0 0.0
        %1643 = vmatpush.xpose.msra.mxu0 0.0
        %1644 = vmatpush.xpose.msra.mxu0 0.0
        %1645 = vmatpush.xpose.msra.mxu0 0.0
        %1646 = vmatpush.xpose.msra.mxu0 0.0
        %1647 = vmatpush.xpose.msra.mxu0 0.0
        %1648 = vmatpush.xpose.msra.mxu0 0.0
        %1649 = vmatpush.xpose.msra.mxu0 0.0
        %1650 = vmatpush.xpose.msra.mxu0 0.0
        %1651 = vmatpush.xpose.msra.mxu0 0.0
        %1652 = vmatpush.xpose.msra.mxu0 0.0
        %1653 = vmatpush.xpose.msra.mxu0 %v1636
        %1654 = vmatmul.f32.gmra.mxu0 %v1634
        %v1655 = vpop.f32.mrf.mxu0
        %v1656 = vadd.f32 0.0, %v1655
        %1657 = vdwg.mxu0
        %1658 = vst [vmem:[#allocation1] ss:$9 sm:$0xff] %v1150
        %s1659 = scalar_lea.vmem [#allocation1], 1
        %1660 = vst [vmem:[%s1659] ss:$9 sm:$0xff] %v1465
        %s1661 = scalar_lea.vmem [#allocation1], 2
        %1662 = vst [vmem:[%s1661] ss:$9 sm:$0xff] %v1466
        %s1663 = scalar_lea.vmem [#allocation1], 3
        %1664 = vst [vmem:[%s1663] ss:$9 sm:$0xff] %v1467
        %s1665 = scalar_lea.vmem [#allocation1], 4
        %1666 = vst [vmem:[%s1665] ss:$9 sm:$0xff] %v1468
        %v1667 = vld [vmem:[#allocation1] sm:$0xff]
        %1668 = vst [vmem:[#allocation1] ss:$9 sm:$0xff] %v1274
        %s1669 = scalar_lea.vmem [#allocation1], 1
        %1670 = vst [vmem:[%s1669] ss:$9 sm:$0xff] %v1505
        %s1671 = scalar_lea.vmem [#allocation1], 2
        %1672 = vst [vmem:[%s1671] ss:$9 sm:$0xff] %v1506
        %s1673 = scalar_lea.vmem [#allocation1], 3
        %1674 = vst [vmem:[%s1673] ss:$9 sm:$0xff] %v1507
        %s1675 = scalar_lea.vmem [#allocation1], 4
        %1676 = vst [vmem:[%s1675] ss:$9 sm:$0xff] %v1508
        %v1677 = vld [vmem:[#allocation1] sm:$0xff]
        %v1678 = vsel %vm1589, %v1667, 0
        %v1680 = vsel %vm1589, %v1677, 0
        %1682 = vmatpush.xpose.msra.mxu0 0.0
        %1683 = vmatpush.xpose.msra.mxu0 0.0
        %1684 = vmatpush.xpose.msra.mxu0 0.0
        %1685 = vmatpush.xpose.msra.mxu0 0.0
        %1686 = vmatpush.xpose.msra.mxu0 0.0
        %1687 = vmatpush.xpose.msra.mxu0 0.0
        %1688 = vmatpush.xpose.msra.mxu0 0.0
        %1689 = vmatpush.xpose.msra.mxu0 0.0
        %1690 = vmatpush.xpose.msra.mxu0 0.0
        %1691 = vmatpush.xpose.msra.mxu0 0.0
        %1692 = vmatpush.xpose.msra.mxu0 0.0
        %1693 = vmatpush.xpose.msra.mxu0 0.0
        %1694 = vmatpush.xpose.msra.mxu0 0.0
        %1695 = vmatpush.xpose.msra.mxu0 0.0
        %1696 = vmatpush.xpose.msra.mxu0 0.0
        %1697 = vmatpush.xpose.msra.mxu0 %v1680
        %1698 = vmatmul.f32.gmra.mxu0 %v1678
        %v1699 = vpop.f32.mrf.mxu0
        %v1700 = vadd.f32 0.0, %v1699
        %1701 = vdwg.mxu0
        %1702 = vst [vmem:[#allocation1] ss:$9 sm:$0xff] %v1469
        %s1703 = scalar_lea.vmem [#allocation1], 1
        %1704 = vst [vmem:[%s1703] ss:$9 sm:$0xff] %v1470
        %s1705 = scalar_lea.vmem [#allocation1], 2
        %1706 = vst [vmem:[%s1705] ss:$9 sm:$0xff] %v1471
        %s1707 = scalar_lea.vmem [#allocation1], 3
        %1708 = vst [vmem:[%s1707] ss:$9 sm:$0xff] %v1153
        %s1709 = scalar_lea.vmem [#allocation1], 4
        %1710 = vst [vmem:[%s1709] ss:$9 sm:$0xff] %v1472
        %v1711 = vld [vmem:[#allocation1] sm:$0xff]
        %1712 = vst [vmem:[#allocation1] ss:$9 sm:$0xff] %v1509
        %s1713 = scalar_lea.vmem [#allocation1], 1
        %1714 = vst [vmem:[%s1713] ss:$9 sm:$0xff] %v1510
        %s1715 = scalar_lea.vmem [#allocation1], 2
        %1716 = vst [vmem:[%s1715] ss:$9 sm:$0xff] %v1511
        %s1717 = scalar_lea.vmem [#allocation1], 3
        %1718 = vst [vmem:[%s1717] ss:$9 sm:$0xff] %v1277
        %s1719 = scalar_lea.vmem [#allocation1], 4
        %1720 = vst [vmem:[%s1719] ss:$9 sm:$0xff] %v1512
        %v1721 = vld [vmem:[#allocation1] sm:$0xff]
        %v1722 = vsel %vm1589, %v1711, 0
        %v1724 = vsel %vm1589, %v1721, 0
        %1726 = vmatpush.xpose.msra.mxu0 0.0
        %1727 = vmatpush.xpose.msra.mxu0 0.0
        %1728 = vmatpush.xpose.msra.mxu0 0.0
        %1729 = vmatpush.xpose.msra.mxu0 0.0
        %1730 = vmatpush.xpose.msra.mxu0 0.0
        %1731 = vmatpush.xpose.msra.mxu0 0.0
        %1732 = vmatpush.xpose.msra.mxu0 0.0
        %1733 = vmatpush.xpose.msra.mxu0 0.0
        %1734 = vmatpush.xpose.msra.mxu0 0.0
        %1735 = vmatpush.xpose.msra.mxu0 0.0
        %1736 = vmatpush.xpose.msra.mxu0 0.0
        %1737 = vmatpush.xpose.msra.mxu0 0.0
        %1738 = vmatpush.xpose.msra.mxu0 0.0
        %1739 = vmatpush.xpose.msra.mxu0 0.0
        %1740 = vmatpush.xpose.msra.mxu0 0.0
        %1741 = vmatpush.xpose.msra.mxu0 %v1724
        %1742 = vmatmul.f32.gmra.mxu0 %v1722
        %v1743 = vpop.f32.mrf.mxu0
        %v1744 = vadd.f32 0.0, %v1743
        %1745 = vdwg.mxu0
        %1746 = vst [vmem:[#allocation1] ss:$9 sm:$0xff] %v1173
        %s1747 = scalar_lea.vmem [#allocation1], 1
        %1748 = vst [vmem:[%s1747] ss:$9 sm:$0xff] %v1473
        %s1749 = scalar_lea.vmem [#allocation1], 2
        %1750 = vst [vmem:[%s1749] ss:$9 sm:$0xff] %v1474
        %s1751 = scalar_lea.vmem [#allocation1], 3
        %1752 = vst [vmem:[%s1751] ss:$9 sm:$0xff] %v1475
        %s1753 = scalar_lea.vmem [#allocation1], 4
        %1754 = vst [vmem:[%s1753] ss:$9 sm:$0xff] %v1476
        %v1755 = vld [vmem:[#allocation1] sm:$0xff]
        %1756 = vst [vmem:[#allocation1] ss:$9 sm:$0xff] %v1297
        %s1757 = scalar_lea.vmem [#allocation1], 1
        %1758 = vst [vmem:[%s1757] ss:$9 sm:$0xff] %v1513
        %s1759 = scalar_lea.vmem [#allocation1], 2
        %1760 = vst [vmem:[%s1759] ss:$9 sm:$0xff] %v1514
        %s1761 = scalar_lea.vmem [#allocation1], 3
        %1762 = vst [vmem:[%s1761] ss:$9 sm:$0xff] %v1515
        %s1763 = scalar_lea.vmem [#allocation1], 4
        %1764 = vst [vmem:[%s1763] ss:$9 sm:$0xff] %v1516
        %v1765 = vld [vmem:[#allocation1] sm:$0xff]
        %v1766 = vsel %vm1589, %v1755, 0
        %v1768 = vsel %vm1589, %v1765, 0
        %1770 = vmatpush.xpose.msra.mxu0 0.0
        %1771 = vmatpush.xpose.msra.mxu0 0.0
        %1772 = vmatpush.xpose.msra.mxu0 0.0
        %1773 = vmatpush.xpose.msra.mxu0 0.0
        %1774 = vmatpush.xpose.msra.mxu0 0.0
        %1775 = vmatpush.xpose.msra.mxu0 0.0
        %1776 = vmatpush.xpose.msra.mxu0 0.0
        %1777 = vmatpush.xpose.msra.mxu0 0.0
        %1778 = vmatpush.xpose.msra.mxu0 0.0
        %1779 = vmatpush.xpose.msra.mxu0 0.0
        %1780 = vmatpush.xpose.msra.mxu0 0.0
        %1781 = vmatpush.xpose.msra.mxu0 0.0
        %1782 = vmatpush.xpose.msra.mxu0 0.0
        %1783 = vmatpush.xpose.msra.mxu0 0.0
        %1784 = vmatpush.xpose.msra.mxu0 0.0
        %1785 = vmatpush.xpose.msra.mxu0 %v1768
        %1786 = vmatmul.f32.gmra.mxu0 %v1766
        %v1787 = vpop.f32.mrf.mxu0
        %v1788 = vadd.f32 0.0, %v1787
        %1789 = vdwg.mxu0
        %1790 = vst [vmem:[#allocation1] ss:$9 sm:$0xff] %v1477
        %s1791 = scalar_lea.vmem [#allocation1], 1
        %1792 = vst [vmem:[%s1791] ss:$9 sm:$0xff] %v1478
        %s1793 = scalar_lea.vmem [#allocation1], 2
        %1794 = vst [vmem:[%s1793] ss:$9 sm:$0xff] %v1479
        %s1795 = scalar_lea.vmem [#allocation1], 3
        %1796 = vst [vmem:[%s1795] ss:$9 sm:$0xff] %v1176
        %s1797 = scalar_lea.vmem [#allocation1], 4
        %1798 = vst [vmem:[%s1797] ss:$9 sm:$0xff] %v1480
        %v1799 = vld [vmem:[#allocation1] sm:$0xff]
        %1800 = vst [vmem:[#allocation1] ss:$9 sm:$0xff] %v1517
        %s1801 = scalar_lea.vmem [#allocation1], 1
        %1802 = vst [vmem:[%s1801] ss:$9 sm:$0xff] %v1518
        %s1803 = scalar_lea.vmem [#allocation1], 2
        %1804 = vst [vmem:[%s1803] ss:$9 sm:$0xff] %v1519
        %s1805 = scalar_lea.vmem [#allocation1], 3
        %1806 = vst [vmem:[%s1805] ss:$9 sm:$0xff] %v1300
        %s1807 = scalar_lea.vmem [#allocation1], 4
        %1808 = vst [vmem:[%s1807] ss:$9 sm:$0xff] %v1520
        %v1809 = vld [vmem:[#allocation1] sm:$0xff]
        %v1810 = vsel %vm1589, %v1799, 0
        %v1812 = vsel %vm1589, %v1809, 0
        %1814 = vmatpush.xpose.msra.mxu0 0.0
        %1815 = vmatpush.xpose.msra.mxu0 0.0
        %1816 = vmatpush.xpose.msra.mxu0 0.0
        %1817 = vmatpush.xpose.msra.mxu0 0.0
        %1818 = vmatpush.xpose.msra.mxu0 0.0
        %1819 = vmatpush.xpose.msra.mxu0 0.0
        %1820 = vmatpush.xpose.msra.mxu0 0.0
        %1821 = vmatpush.xpose.msra.mxu0 0.0
        %1822 = vmatpush.xpose.msra.mxu0 0.0
        %1823 = vmatpush.xpose.msra.mxu0 0.0
        %1824 = vmatpush.xpose.msra.mxu0 0.0
        %1825 = vmatpush.xpose.msra.mxu0 0.0
        %1826 = vmatpush.xpose.msra.mxu0 0.0
        %1827 = vmatpush.xpose.msra.mxu0 0.0
        %1828 = vmatpush.xpose.msra.mxu0 0.0
        %1829 = vmatpush.xpose.msra.mxu0 %v1812
        %1830 = vmatmul.f32.gmra.mxu0 %v1810
        %v1831 = vpop.f32.mrf.mxu0
        %v1832 = vadd.f32 0.0, %v1831
        %1833 = vdwg.mxu0
        %1834 = vst [vmem:[#allocation1] ss:$9 sm:$0xff] %v1196
        %s1835 = scalar_lea.vmem [#allocation1], 1
        %1836 = vst [vmem:[%s1835] ss:$9 sm:$0xff] %v1481
        %s1837 = scalar_lea.vmem [#allocation1], 2
        %1838 = vst [vmem:[%s1837] ss:$9 sm:$0xff] %v1482
        %s1839 = scalar_lea.vmem [#allocation1], 3
        %1840 = vst [vmem:[%s1839] ss:$9 sm:$0xff] %v1483
        %s1841 = scalar_lea.vmem [#allocation1], 4
        %1842 = vst [vmem:[%s1841] ss:$9 sm:$0xff] %v1484
        %v1843 = vld [vmem:[#allocation1] sm:$0xff]
        %1844 = vst [vmem:[#allocation1] ss:$9 sm:$0xff] %v1320
        %s1845 = scalar_lea.vmem [#allocation1], 1
        %1846 = vst [vmem:[%s1845] ss:$9 sm:$0xff] %v1521
        %s1847 = scalar_lea.vmem [#allocation1], 2
        %1848 = vst [vmem:[%s1847] ss:$9 sm:$0xff] %v1522
        %s1849 = scalar_lea.vmem [#allocation1], 3
        %1850 = vst [vmem:[%s1849] ss:$9 sm:$0xff] %v1523
        %s1851 = scalar_lea.vmem [#allocation1], 4
        %1852 = vst [vmem:[%s1851] ss:$9 sm:$0xff] %v1524
        %v1853 = vld [vmem:[#allocation1] sm:$0xff]
        %v1854 = vsel %vm1589, %v1843, 0
        %v1856 = vsel %vm1589, %v1853, 0
        %1858 = vmatpush.xpose.msra.mxu0 0.0
        %1859 = vmatpush.xpose.msra.mxu0 0.0
        %1860 = vmatpush.xpose.msra.mxu0 0.0
        %1861 = vmatpush.xpose.msra.mxu0 0.0
        %1862 = vmatpush.xpose.msra.mxu0 0.0
        %1863 = vmatpush.xpose.msra.mxu0 0.0
        %1864 = vmatpush.xpose.msra.mxu0 0.0
        %1865 = vmatpush.xpose.msra.mxu0 0.0
        %1866 = vmatpush.xpose.msra.mxu0 0.0
        %1867 = vmatpush.xpose.msra.mxu0 0.0
        %1868 = vmatpush.xpose.msra.mxu0 0.0
        %1869 = vmatpush.xpose.msra.mxu0 0.0
        %1870 = vmatpush.xpose.msra.mxu0 0.0
        %1871 = vmatpush.xpose.msra.mxu0 0.0
        %1872 = vmatpush.xpose.msra.mxu0 0.0
        %1873 = vmatpush.xpose.msra.mxu0 %v1856
        %1874 = vmatmul.f32.gmra.mxu0 %v1854
        %v1875 = vpop.f32.mrf.mxu0
        %v1876 = vadd.f32 0.0, %v1875
        %1877 = vdwg.mxu0
        %1878 = vst [vmem:[#allocation1] ss:$9 sm:$0xff] %v1485
        %s1879 = scalar_lea.vmem [#allocation1], 1
        %1880 = vst [vmem:[%s1879] ss:$9 sm:$0xff] %v1486
        %s1881 = scalar_lea.vmem [#allocation1], 2
        %1882 = vst [vmem:[%s1881] ss:$9 sm:$0xff] %v1487
        %s1883 = scalar_lea.vmem [#allocation1], 3
        %1884 = vst [vmem:[%s1883] ss:$9 sm:$0xff] %v1199
        %s1885 = scalar_lea.vmem [#allocation1], 4
        %1886 = vst [vmem:[%s1885] ss:$9 sm:$0xff] %v1488
        %v1887 = vld [vmem:[#allocation1] sm:$0xff]
        %1888 = vst [vmem:[#allocation1] ss:$9 sm:$0xff] %v1525
        %s1889 = scalar_lea.vmem [#allocation1], 1
        %1890 = vst [vmem:[%s1889] ss:$9 sm:$0xff] %v1526
        %s1891 = scalar_lea.vmem [#allocation1], 2
        %1892 = vst [vmem:[%s1891] ss:$9 sm:$0xff] %v1527
        %s1893 = scalar_lea.vmem [#allocation1], 3
        %1894 = vst [vmem:[%s1893] ss:$9 sm:$0xff] %v1323
        %s1895 = scalar_lea.vmem [#allocation1], 4
        %1896 = vst [vmem:[%s1895] ss:$9 sm:$0xff] %v1528
        %v1897 = vld [vmem:[#allocation1] sm:$0xff]
        %v1898 = vsel %vm1589, %v1887, 0
        %v1900 = vsel %vm1589, %v1897, 0
        %1902 = vmatpush.xpose.msra.mxu0 0.0
        %1903 = vmatpush.xpose.msra.mxu0 0.0
        %1904 = vmatpush.xpose.msra.mxu0 0.0
        %1905 = vmatpush.xpose.msra.mxu0 0.0
        %1906 = vmatpush.xpose.msra.mxu0 0.0
        %1907 = vmatpush.xpose.msra.mxu0 0.0
        %1908 = vmatpush.xpose.msra.mxu0 0.0
        %1909 = vmatpush.xpose.msra.mxu0 0.0
        %1910 = vmatpush.xpose.msra.mxu0 0.0
        %1911 = vmatpush.xpose.msra.mxu0 0.0
        %1912 = vmatpush.xpose.msra.mxu0 0.0
        %1913 = vmatpush.xpose.msra.mxu0 0.0
        %1914 = vmatpush.xpose.msra.mxu0 0.0
        %1915 = vmatpush.xpose.msra.mxu0 0.0
        %1916 = vmatpush.xpose.msra.mxu0 0.0
        %1917 = vmatpush.xpose.msra.mxu0 %v1900
        %1918 = vmatmul.f32.gmra.mxu0 %v1898
        %v1919 = vpop.f32.mrf.mxu0
        %v1920 = vadd.f32 0.0, %v1919
        %1921 = vdwg.mxu0
        %vm1922 = vcmask 36864
        %v1923 = vsel %vm1922, %v1612, -inf
        %1924 = vmax.xlane.f32.xlu0 %v1923
        %v1925 = vpop.xlane.xlu0 %1924
        %v1926 = vsel %vm1922, %v1656, -inf
        %1927 = vmax.xlane.f32.xlu0 %v1926
        %v1928 = vpop.xlane.xlu0 %1927
        %v1929 = vsel %vm1922, %v1700, -inf
        %1930 = vmax.xlane.f32.xlu0 %v1929
        %v1931 = vpop.xlane.xlu0 %1930
        %v1932 = vsel %vm1922, %v1744, -inf
        %1933 = vmax.xlane.f32.xlu0 %v1932
        %v1934 = vpop.xlane.xlu0 %1933
        %v1935 = vsel %vm1922, %v1788, -inf
        %1936 = vmax.xlane.f32.xlu0 %v1935
        %v1937 = vpop.xlane.xlu0 %1936
        %v1938 = vsel %vm1922, %v1832, -inf
        %1939 = vmax.xlane.f32.xlu0 %v1938
        %v1940 = vpop.xlane.xlu0 %1939
        %v1941 = vsel %vm1922, %v1876, -inf
        %1942 = vmax.xlane.f32.xlu0 %v1941
        %v1943 = vpop.xlane.xlu0 %1942
        %v1944 = vsel %vm1922, %v1920, -inf
        %1945 = vmax.xlane.f32.xlu0 %v1944
        %v1946 = vpop.xlane.xlu0 %1945
        %v1947 = vsub.f32 %v1612, %v1925
        %v1948 = vsub.f32 %v1656, %v1928
        %v1949 = vsub.f32 %v1700, %v1931
        %v1950 = vsub.f32 %v1744, %v1934
        %v1951 = vsub.f32 %v1788, %v1937
        %v1952 = vsub.f32 %v1832, %v1940
        %v1953 = vsub.f32 %v1876, %v1943
        %v1954 = vsub.f32 %v1920, %v1946
        %v1955 = vmul.f32 %v1947, 1.442695
        %v1956 = vpow.pop %v1955
        %v1957 = vmul.f32 %v1948, 1.442695
        %v1958 = vpow.pop %v1957
        %v1959 = vmul.f32 %v1949, 1.442695
        %v1960 = vpow.pop %v1959
        %v1961 = vmul.f32 %v1950, 1.442695
        %v1962 = vpow.pop %v1961
        %v1963 = vmul.f32 %v1951, 1.442695
        %v1964 = vpow.pop %v1963
        %v1965 = vmul.f32 %v1952, 1.442695
        %v1966 = vpow.pop %v1965
        %v1967 = vmul.f32 %v1953, 1.442695
        %v1968 = vpow.pop %v1967
        %v1969 = vmul.f32 %v1954, 1.442695
        %v1970 = vpow.pop %v1969
        %v1971 = vsel %vm1922, %v1956, 0.0
        %1972 = vadd.xlane.f32.xlu0 %v1971
        %v1973 = vpop.xlane.xlu0 %1972
        %v1974 = vsel %vm1922, %v1958, 0.0
        %1975 = vadd.xlane.f32.xlu0 %v1974
        %v1976 = vpop.xlane.xlu0 %1975
        %v1977 = vsel %vm1922, %v1960, 0.0
        %1978 = vadd.xlane.f32.xlu0 %v1977
        %v1979 = vpop.xlane.xlu0 %1978
        %v1980 = vsel %vm1922, %v1962, 0.0
        %1981 = vadd.xlane.f32.xlu0 %v1980
        %v1982 = vpop.xlane.xlu0 %1981
        %v1983 = vsel %vm1922, %v1964, 0.0
        %1984 = vadd.xlane.f32.xlu0 %v1983
        %v1985 = vpop.xlane.xlu0 %1984
        %v1986 = vsel %vm1922, %v1966, 0.0
        %1987 = vadd.xlane.f32.xlu0 %v1986
        %v1988 = vpop.xlane.xlu0 %1987
        %v1989 = vsel %vm1922, %v1968, 0.0
        %1990 = vadd.xlane.f32.xlu0 %v1989
        %v1991 = vpop.xlane.xlu0 %1990
        %v1992 = vsel %vm1922, %v1970, 0.0
        %1993 = vadd.xlane.f32.xlu0 %v1992
        %v1994 = vpop.xlane.xlu0 %1993
        %v1995 = vrcp.pop %v1973
        %v1996 = vrcp.pop %v1976
        %v1997 = vrcp.pop %v1979
        %v1998 = vrcp.pop %v1982
        %v1999 = vrcp.pop %v1985
        %v2000 = vrcp.pop %v1988
        %v2001 = vrcp.pop %v1991
        %v2002 = vrcp.pop %v1994
        %v2003 = vmul.f32 %v1956, %v1995
        %v2004 = vmul.f32 %v1958, %v1996
        %v2005 = vmul.f32 %v1960, %v1997
        %v2006 = vmul.f32 %v1962, %v1998
        %v2007 = vmul.f32 %v1964, %v1999
        %v2008 = vmul.f32 %v1966, %v2000
        %v2009 = vmul.f32 %v1968, %v2001
        %v2010 = vmul.f32 %v1970, %v2002
        %2011 = vst [vmem:[#allocation1] ss:$9 sm:$0xff] %v1375
        %s2012 = scalar_lea.vmem [#allocation1], 1
        %2013 = vst [vmem:[%s2012] ss:$9 sm:$0xff] %v1537
        %s2014 = scalar_lea.vmem [#allocation1], 2
        %2015 = vst [vmem:[%s2014] ss:$9 sm:$0xff] %v1538
        %s2016 = scalar_lea.vmem [#allocation1], 3
        %2017 = vst [vmem:[%s2016] ss:$9 sm:$0xff] %v1539
        %s2018 = scalar_lea.vmem [#allocation1], 4
        %2019 = vst [vmem:[%s2018] ss:$9 sm:$0xff] %v1540
        %v2020 = vld [vmem:[#allocation1] sm:$0xff]
        %vm2021 = vcmask 39936
        %v2023 = vsel %vm2021, %v2003, 0
        %vm2025 = vcmask 1044480
        %v2026 = vsel %vm2025, %v2020, 0
        %2028 = vmatpush.msra.mxu0 0.0
        %2029 = vmatpush.msra.mxu0 0.0
        %2030 = vmatpush.msra.mxu0 0.0
        %2031 = vmatpush.msra.mxu0 0.0
        %2032 = vmatpush.msra.mxu0 0.0
        %2033 = vmatpush.msra.mxu0 0.0
        %2034 = vmatpush.msra.mxu0 0.0
        %2035 = vmatpush.msra.mxu0 0.0
        %2036 = vmatpush.msra.mxu0 0.0
        %2037 = vmatpush.msra.mxu0 0.0
        %2038 = vmatpush.msra.mxu0 0.0
        %2039 = vmatpush.msra.mxu0 0.0
        %2040 = vmatpush.msra.mxu0 0.0
        %2041 = vmatpush.msra.mxu0 0.0
        %2042 = vmatpush.msra.mxu0 0.0
        %2043 = vmatpush.msra.mxu0 %v2026
        %2044 = vmatmul.f32.gmra.mxu0 %v2023
        %v2045 = vpop.f32.mrf.mxu0
        %v2046 = vadd.f32 0.0, %v2045
        %2047 = vdwg.mxu0
        %2048 = vst [vmem:[#allocation1] ss:$9 sm:$0xff] %v1541
        %s2049 = scalar_lea.vmem [#allocation1], 1
        %2050 = vst [vmem:[%s2049] ss:$9 sm:$0xff] %v1542
        %s2051 = scalar_lea.vmem [#allocation1], 2
        %2052 = vst [vmem:[%s2051] ss:$9 sm:$0xff] %v1543
        %s2053 = scalar_lea.vmem [#allocation1], 3
        %2054 = vst [vmem:[%s2053] ss:$9 sm:$0xff] %v1378
        %s2055 = scalar_lea.vmem [#allocation1], 4
        %2056 = vst [vmem:[%s2055] ss:$9 sm:$0xff] %v1544
        %v2057 = vld [vmem:[#allocation1] sm:$0xff]
        %v2059 = vsel %vm2021, %v2004, 0
        %v2061 = vsel %vm2025, %v2057, 0
        %2063 = vmatpush.msra.mxu0 0.0
        %2064 = vmatpush.msra.mxu0 0.0
        %2065 = vmatpush.msra.mxu0 0.0
        %2066 = vmatpush.msra.mxu0 0.0
        %2067 = vmatpush.msra.mxu0 0.0
        %2068 = vmatpush.msra.mxu0 0.0
        %2069 = vmatpush.msra.mxu0 0.0
        %2070 = vmatpush.msra.mxu0 0.0
        %2071 = vmatpush.msra.mxu0 0.0
        %2072 = vmatpush.msra.mxu0 0.0
        %2073 = vmatpush.msra.mxu0 0.0
        %2074 = vmatpush.msra.mxu0 0.0
        %2075 = vmatpush.msra.mxu0 0.0
        %2076 = vmatpush.msra.mxu0 0.0
        %2077 = vmatpush.msra.mxu0 0.0
        %2078 = vmatpush.msra.mxu0 %v2061
        %2079 = vmatmul.f32.gmra.mxu0 %v2059
        %v2080 = vpop.f32.mrf.mxu0
        %v2081 = vadd.f32 0.0, %v2080
        %2082 = vdwg.mxu0
        %2083 = vst [vmem:[#allocation1] ss:$9 sm:$0xff] %v1398
        %s2084 = scalar_lea.vmem [#allocation1], 1
        %2085 = vst [vmem:[%s2084] ss:$9 sm:$0xff] %v1545
        %s2086 = scalar_lea.vmem [#allocation1], 2
        %2087 = vst [vmem:[%s2086] ss:$9 sm:$0xff] %v1546
        %s2088 = scalar_lea.vmem [#allocation1], 3
        %2089 = vst [vmem:[%s2088] ss:$9 sm:$0xff] %v1547
        %s2090 = scalar_lea.vmem [#allocation1], 4
        %2091 = vst [vmem:[%s2090] ss:$9 sm:$0xff] %v1548
        %v2092 = vld [vmem:[#allocation1] sm:$0xff]
        %v2094 = vsel %vm2021, %v2005, 0
        %v2096 = vsel %vm2025, %v2092, 0
        %2098 = vmatpush.msra.mxu0 0.0
        %2099 = vmatpush.msra.mxu0 0.0
        %2100 = vmatpush.msra.mxu0 0.0
        %2101 = vmatpush.msra.mxu0 0.0
        %2102 = vmatpush.msra.mxu0 0.0
        %2103 = vmatpush.msra.mxu0 0.0
        %2104 = vmatpush.msra.mxu0 0.0
        %2105 = vmatpush.msra.mxu0 0.0
        %2106 = vmatpush.msra.mxu0 0.0
        %2107 = vmatpush.msra.mxu0 0.0
        %2108 = vmatpush.msra.mxu0 0.0
        %2109 = vmatpush.msra.mxu0 0.0
        %2110 = vmatpush.msra.mxu0 0.0
        %2111 = vmatpush.msra.mxu0 0.0
        %2112 = vmatpush.msra.mxu0 0.0
        %2113 = vmatpush.msra.mxu0 %v2096
        %2114 = vmatmul.f32.gmra.mxu0 %v2094
        %v2115 = vpop.f32.mrf.mxu0
        %v2116 = vadd.f32 0.0, %v2115
        %2117 = vdwg.mxu0
        %2118 = vst [vmem:[#allocation1] ss:$9 sm:$0xff] %v1549
        %s2119 = scalar_lea.vmem [#allocation1], 1
        %2120 = vst [vmem:[%s2119] ss:$9 sm:$0xff] %v1550
        %s2121 = scalar_lea.vmem [#allocation1], 2
        %2122 = vst [vmem:[%s2121] ss:$9 sm:$0xff] %v1551
        %s2123 = scalar_lea.vmem [#allocation1], 3
        %2124 = vst [vmem:[%s2123] ss:$9 sm:$0xff] %v1401
        %s2125 = scalar_lea.vmem [#allocation1], 4
        %2126 = vst [vmem:[%s2125] ss:$9 sm:$0xff] %v1552
        %v2127 = vld [vmem:[#allocation1] sm:$0xff]
        %v2129 = vsel %vm2021, %v2006, 0
        %v2131 = vsel %vm2025, %v2127, 0
        %2133 = vmatpush.msra.mxu0 0.0
        %2134 = vmatpush.msra.mxu0 0.0
        %2135 = vmatpush.msra.mxu0 0.0
        %2136 = vmatpush.msra.mxu0 0.0
        %2137 = vmatpush.msra.mxu0 0.0
        %2138 = vmatpush.msra.mxu0 0.0
        %2139 = vmatpush.msra.mxu0 0.0
        %2140 = vmatpush.msra.mxu0 0.0
        %2141 = vmatpush.msra.mxu0 0.0
        %2142 = vmatpush.msra.mxu0 0.0
        %2143 = vmatpush.msra.mxu0 0.0
        %2144 = vmatpush.msra.mxu0 0.0
        %2145 = vmatpush.msra.mxu0 0.0
        %2146 = vmatpush.msra.mxu0 0.0
        %2147 = vmatpush.msra.mxu0 0.0
        %2148 = vmatpush.msra.mxu0 %v2131
        %2149 = vmatmul.f32.gmra.mxu0 %v2129
        %v2150 = vpop.f32.mrf.mxu0
        %v2151 = vadd.f32 0.0, %v2150
        %2152 = vdwg.mxu0
        %2153 = vst [vmem:[#allocation1] ss:$9 sm:$0xff] %v1421
        %s2154 = scalar_lea.vmem [#allocation1], 1
        %2155 = vst [vmem:[%s2154] ss:$9 sm:$0xff] %v1553
        %s2156 = scalar_lea.vmem [#allocation1], 2
        %2157 = vst [vmem:[%s2156] ss:$9 sm:$0xff] %v1554
        %s2158 = scalar_lea.vmem [#allocation1], 3
        %2159 = vst [vmem:[%s2158] ss:$9 sm:$0xff] %v1555
        %s2160 = scalar_lea.vmem [#allocation1], 4
        %2161 = vst [vmem:[%s2160] ss:$9 sm:$0xff] %v1556
        %v2162 = vld [vmem:[#allocation1] sm:$0xff]
        %v2164 = vsel %vm2021, %v2007, 0
        %v2166 = vsel %vm2025, %v2162, 0
        %2168 = vmatpush.msra.mxu0 0.0
        %2169 = vmatpush.msra.mxu0 0.0
        %2170 = vmatpush.msra.mxu0 0.0
        %2171 = vmatpush.msra.mxu0 0.0
        %2172 = vmatpush.msra.mxu0 0.0
        %2173 = vmatpush.msra.mxu0 0.0
        %2174 = vmatpush.msra.mxu0 0.0
        %2175 = vmatpush.msra.mxu0 0.0
        %2176 = vmatpush.msra.mxu0 0.0
        %2177 = vmatpush.msra.mxu0 0.0
        %2178 = vmatpush.msra.mxu0 0.0
        %2179 = vmatpush.msra.mxu0 0.0
        %2180 = vmatpush.msra.mxu0 0.0
        %2181 = vmatpush.msra.mxu0 0.0
        %2182 = vmatpush.msra.mxu0 0.0
        %2183 = vmatpush.msra.mxu0 %v2166
        %2184 = vmatmul.f32.gmra.mxu0 %v2164
        %v2185 = vpop.f32.mrf.mxu0
        %v2186 = vadd.f32 0.0, %v2185
        %2187 = vdwg.mxu0
        %2188 = vst [vmem:[#allocation1] ss:$9 sm:$0xff] %v1557
        %s2189 = scalar_lea.vmem [#allocation1], 1
        %2190 = vst [vmem:[%s2189] ss:$9 sm:$0xff] %v1558
        %s2191 = scalar_lea.vmem [#allocation1], 2
        %2192 = vst [vmem:[%s2191] ss:$9 sm:$0xff] %v1559
        %s2193 = scalar_lea.vmem [#allocation1], 3
        %2194 = vst [vmem:[%s2193] ss:$9 sm:$0xff] %v1424
        %s2195 = scalar_lea.vmem [#allocation1], 4
        %2196 = vst [vmem:[%s2195] ss:$9 sm:$0xff] %v1560
        %v2197 = vld [vmem:[#allocation1] sm:$0xff]
        %v2199 = vsel %vm2021, %v2008, 0
        %v2201 = vsel %vm2025, %v2197, 0
        %2203 = vmatpush.msra.mxu0 0.0
        %2204 = vmatpush.msra.mxu0 0.0
        %2205 = vmatpush.msra.mxu0 0.0
        %2206 = vmatpush.msra.mxu0 0.0
        %2207 = vmatpush.msra.mxu0 0.0
        %2208 = vmatpush.msra.mxu0 0.0
        %2209 = vmatpush.msra.mxu0 0.0
        %2210 = vmatpush.msra.mxu0 0.0
        %2211 = vmatpush.msra.mxu0 0.0
        %2212 = vmatpush.msra.mxu0 0.0
        %2213 = vmatpush.msra.mxu0 0.0
        %2214 = vmatpush.msra.mxu0 0.0
        %2215 = vmatpush.msra.mxu0 0.0
        %2216 = vmatpush.msra.mxu0 0.0
        %2217 = vmatpush.msra.mxu0 0.0
        %2218 = vmatpush.msra.mxu0 %v2201
        %2219 = vmatmul.f32.gmra.mxu0 %v2199
        %v2220 = vpop.f32.mrf.mxu0
        %v2221 = vadd.f32 0.0, %v2220
        %2222 = vdwg.mxu0
        %2223 = vst [vmem:[#allocation1] ss:$9 sm:$0xff] %v1444
        %s2224 = scalar_lea.vmem [#allocation1], 1
        %2225 = vst [vmem:[%s2224] ss:$9 sm:$0xff] %v1561
        %s2226 = scalar_lea.vmem [#allocation1], 2
        %2227 = vst [vmem:[%s2226] ss:$9 sm:$0xff] %v1562
        %s2228 = scalar_lea.vmem [#allocation1], 3
        %2229 = vst [vmem:[%s2228] ss:$9 sm:$0xff] %v1563
        %s2230 = scalar_lea.vmem [#allocation1], 4
        %2231 = vst [vmem:[%s2230] ss:$9 sm:$0xff] %v1564
        %v2232 = vld [vmem:[#allocation1] sm:$0xff]
        %v2234 = vsel %vm2021, %v2009, 0
        %v2236 = vsel %vm2025, %v2232, 0
        %2238 = vmatpush.msra.mxu0 0.0
        %2239 = vmatpush.msra.mxu0 0.0
        %2240 = vmatpush.msra.mxu0 0.0
        %2241 = vmatpush.msra.mxu0 0.0
        %2242 = vmatpush.msra.mxu0 0.0
        %2243 = vmatpush.msra.mxu0 0.0
        %2244 = vmatpush.msra.mxu0 0.0
        %2245 = vmatpush.msra.mxu0 0.0
        %2246 = vmatpush.msra.mxu0 0.0
        %2247 = vmatpush.msra.mxu0 0.0
        %2248 = vmatpush.msra.mxu0 0.0
        %2249 = vmatpush.msra.mxu0 0.0
        %2250 = vmatpush.msra.mxu0 0.0
        %2251 = vmatpush.msra.mxu0 0.0
        %2252 = vmatpush.msra.mxu0 0.0
        %2253 = vmatpush.msra.mxu0 %v2236
        %2254 = vmatmul.f32.gmra.mxu0 %v2234
        %v2255 = vpop.f32.mrf.mxu0
        %v2256 = vadd.f32 0.0, %v2255
        %2257 = vdwg.mxu0
        %2258 = vst [vmem:[#allocation1] ss:$9 sm:$0xff] %v1565
        %s2259 = scalar_lea.vmem [#allocation1], 1
        %2260 = vst [vmem:[%s2259] ss:$9 sm:$0xff] %v1566
        %s2261 = scalar_lea.vmem [#allocation1], 2
        %2262 = vst [vmem:[%s2261] ss:$9 sm:$0xff] %v1567
        %s2263 = scalar_lea.vmem [#allocation1], 3
        %2264 = vst [vmem:[%s2263] ss:$9 sm:$0xff] %v1447
        %s2265 = scalar_lea.vmem [#allocation1], 4
        %2266 = vst [vmem:[%s2265] ss:$9 sm:$0xff] %v1568
        %v2267 = vld [vmem:[#allocation1] sm:$0xff]
        %v2269 = vsel %vm2021, %v2010, 0
        %v2271 = vsel %vm2025, %v2267, 0
        %2273 = vmatpush.msra.mxu0 0.0
        %2274 = vmatpush.msra.mxu0 0.0
        %2275 = vmatpush.msra.mxu0 0.0
        %2276 = vmatpush.msra.mxu0 0.0
        %2277 = vmatpush.msra.mxu0 0.0
        %2278 = vmatpush.msra.mxu0 0.0
        %2279 = vmatpush.msra.mxu0 0.0
        %2280 = vmatpush.msra.mxu0 0.0
        %2281 = vmatpush.msra.mxu0 0.0
        %2282 = vmatpush.msra.mxu0 0.0
        %2283 = vmatpush.msra.mxu0 0.0
        %2284 = vmatpush.msra.mxu0 0.0
        %2285 = vmatpush.msra.mxu0 0.0
        %2286 = vmatpush.msra.mxu0 0.0
        %2287 = vmatpush.msra.mxu0 0.0
        %2288 = vmatpush.msra.mxu0 %v2271
        %2289 = vmatmul.f32.gmra.mxu0 %v2269
        %v2290 = vpop.f32.mrf.mxu0
        %v2291 = vadd.f32 0.0, %v2290
        %2292 = vdwg.mxu0
        %v2301 = vrot.slane %v2046, 1
        %v2302 = vrot.slane %v2046, 2
        %v2303 = vrot.slane %v2046, 3
        %v2304 = vrot.slane %v2046, 4
        %v2305 = vrot.slane %v2081, 1
        %v2306 = vrot.slane %v2081, 2
        %v2307 = vrot.slane %v2081, 3
        %v2308 = vrot.slane %v2081, 4
        %v2309 = vrot.slane %v2116, 1
        %v2310 = vrot.slane %v2116, 2
        %v2311 = vrot.slane %v2116, 3
        %v2312 = vrot.slane %v2116, 4
        %v2313 = vrot.slane %v2151, 1
        %v2314 = vrot.slane %v2151, 2
        %v2315 = vrot.slane %v2151, 3
        %v2316 = vrot.slane %v2151, 4
        %v2317 = vrot.slane %v2186, 1
        %v2318 = vrot.slane %v2186, 2
        %v2319 = vrot.slane %v2186, 3
        %v2320 = vrot.slane %v2186, 4
        %v2321 = vrot.slane %v2221, 1
        %v2322 = vrot.slane %v2221, 2
        %v2323 = vrot.slane %v2221, 3
        %v2324 = vrot.slane %v2221, 4
        %v2325 = vrot.slane %v2256, 1
        %v2326 = vrot.slane %v2256, 2
        %v2327 = vrot.slane %v2256, 3
        %v2328 = vrot.slane %v2256, 4
        %v2329 = vrot.slane %v2291, 1
        %v2330 = vrot.slane %v2291, 2
        %v2331 = vrot.slane %v2291, 3
        %v2332 = vrot.slane %v2291, 4
        %v2333 = vld [vmem:[%s877] sm:$0xff]
        %v2334 = vld [vmem:[%s877 + $0x8] sm:$0xff]
        %v2335 = vld [vmem:[%s877 + $0x10] sm:$0xff]
        %v2336 = vld [vmem:[%s877 + $0x18] sm:$0xff]
        %v2337 = vld [vmem:[%s877 + $0x20] sm:$0xff]
        %v2338 = vld [vmem:[%s877 + $0x28] sm:$0xff]
        %v2339 = vld [vmem:[%s877 + $0x30] sm:$0xff]
        %v2340 = vld [vmem:[%s877 + $0x38] sm:$0xff]
        %2341 = vst [vmem:[#allocation1] ss:$9 sm:$0xff] %v2046
        %s2342 = scalar_lea.vmem [#allocation1], 1
        %2343 = vst [vmem:[%s2342] ss:$9 sm:$0xff] %v2301
        %s2344 = scalar_lea.vmem [#allocation1], 2
        %2345 = vst [vmem:[%s2344] ss:$9 sm:$0xff] %v2302
        %s2346 = scalar_lea.vmem [#allocation1], 3
        %2347 = vst [vmem:[%s2346] ss:$9 sm:$0xff] %v2303
        %s2348 = scalar_lea.vmem [#allocation1], 4
        %2349 = vst [vmem:[%s2348] ss:$9 sm:$0xff] %v2304
        %s2350 = scalar_lea.vmem [#allocation1], 5
        %2351 = vst [vmem:[%s2350] ss:$9 sm:$0xff] %v2081
        %s2352 = scalar_lea.vmem [#allocation1], 6
        %2353 = vst [vmem:[%s2352] ss:$9 sm:$0xff] %v2305
        %s2354 = scalar_lea.vmem [#allocation1], 7
        %2355 = vst [vmem:[%s2354] ss:$9 sm:$0xff] %v2306
        %v2356 = vld [vmem:[#allocation1] sm:$0xff]
        %2357 = vst [vmem:[#allocation1] ss:$9 sm:$0xff] %v2307
        %2358 = vst [vmem:[%s2342] ss:$9 sm:$0xff] %v2308
        %v2359 = vld [vmem:[#allocation1] sm:$0xff]
        %v2360 = vsel %vm1589, %v2356, 0
        %v2362 = vsel %vm1589, %v2359, 0
        %2364 = vmatpush.msra.mxu0 0.0
        %2365 = vmatpush.msra.mxu0 0.0
        %2366 = vmatpush.msra.mxu0 0.0
        %2367 = vmatpush.msra.mxu0 0.0
        %2368 = vmatpush.msra.mxu0 0.0
        %2369 = vmatpush.msra.mxu0 0.0
        %2370 = vmatpush.msra.mxu0 0.0
        %2371 = vmatpush.msra.mxu0 0.0
        %2372 = vmatpush.msra.mxu0 0.0
        %2373 = vmatpush.msra.mxu0 0.0
        %2374 = vmatpush.msra.mxu0 0.0
        %2375 = vmatpush.msra.mxu0 0.0
        %2376 = vmatpush.msra.mxu0 0.0
        %2377 = vmatpush.msra.mxu0 0.0
        %2378 = vmatpush.msra.mxu0 %v2334
        %2379 = vmatpush.msra.mxu0 %v2333
        %2380 = vmatmul.f32.gmra.mxu0 %v2360
        %v2381 = vpop.f32.mrf.mxu0
        %v2382 = vadd.f32 0.0, %v2381
        %2383 = vmatmul.f32.gmra.mxu0 %v2362
        %v2384 = vpop.f32.mrf.mxu0
        %v2385 = vadd.f32 0.0, %v2384
        %2386 = vdwg.mxu0
        %2387 = vst [vmem:[#allocation1] ss:$9 sm:$0xff] %v2116
        %s2388 = scalar_lea.vmem [#allocation1], 1
        %2389 = vst [vmem:[%s2388] ss:$9 sm:$0xff] %v2309
        %s2390 = scalar_lea.vmem [#allocation1], 2
        %2391 = vst [vmem:[%s2390] ss:$9 sm:$0xff] %v2310
        %s2392 = scalar_lea.vmem [#allocation1], 3
        %2393 = vst [vmem:[%s2392] ss:$9 sm:$0xff] %v2311
        %s2394 = scalar_lea.vmem [#allocation1], 4
        %2395 = vst [vmem:[%s2394] ss:$9 sm:$0xff] %v2312
        %s2396 = scalar_lea.vmem [#allocation1], 5
        %2397 = vst [vmem:[%s2396] ss:$9 sm:$0xff] %v2151
        %s2398 = scalar_lea.vmem [#allocation1], 6
        %2399 = vst [vmem:[%s2398] ss:$9 sm:$0xff] %v2313
        %s2400 = scalar_lea.vmem [#allocation1], 7
        %2401 = vst [vmem:[%s2400] ss:$9 sm:$0xff] %v2314
        %v2402 = vld [vmem:[#allocation1] sm:$0xff]
        %2403 = vst [vmem:[#allocation1] ss:$9 sm:$0xff] %v2315
        %2404 = vst [vmem:[%s2388] ss:$9 sm:$0xff] %v2316
        %v2405 = vld [vmem:[#allocation1] sm:$0xff]
        %v2406 = vsel %vm1589, %v2402, 0
        %v2408 = vsel %vm1589, %v2405, 0
        %2410 = vmatpush.msra.mxu0 0.0
        %2411 = vmatpush.msra.mxu0 0.0
        %2412 = vmatpush.msra.mxu0 0.0
        %2413 = vmatpush.msra.mxu0 0.0
        %2414 = vmatpush.msra.mxu0 0.0
        %2415 = vmatpush.msra.mxu0 0.0
        %2416 = vmatpush.msra.mxu0 0.0
        %2417 = vmatpush.msra.mxu0 0.0
        %2418 = vmatpush.msra.mxu0 0.0
        %2419 = vmatpush.msra.mxu0 0.0
        %2420 = vmatpush.msra.mxu0 0.0
        %2421 = vmatpush.msra.mxu0 0.0
        %2422 = vmatpush.msra.mxu0 0.0
        %2423 = vmatpush.msra.mxu0 0.0
        %2424 = vmatpush.msra.mxu0 %v2336
        %2425 = vmatpush.msra.mxu0 %v2335
        %2426 = vmatmul.f32.gmra.mxu0 %v2406
        %v2427 = vpop.f32.mrf.mxu0
        %v2428 = vadd.f32 0.0, %v2427
        %2429 = vmatmul.f32.gmra.mxu0 %v2408
        %v2430 = vpop.f32.mrf.mxu0
        %v2431 = vadd.f32 0.0, %v2430
        %2432 = vdwg.mxu0
        %2433 = vst [vmem:[#allocation1] ss:$9 sm:$0xff] %v2186
        %s2434 = scalar_lea.vmem [#allocation1], 1
        %2435 = vst [vmem:[%s2434] ss:$9 sm:$0xff] %v2317
        %s2436 = scalar_lea.vmem [#allocation1], 2
        %2437 = vst [vmem:[%s2436] ss:$9 sm:$0xff] %v2318
        %s2438 = scalar_lea.vmem [#allocation1], 3
        %2439 = vst [vmem:[%s2438] ss:$9 sm:$0xff] %v2319
        %s2440 = scalar_lea.vmem [#allocation1], 4
        %2441 = vst [vmem:[%s2440] ss:$9 sm:$0xff] %v2320
        %s2442 = scalar_lea.vmem [#allocation1], 5
        %2443 = vst [vmem:[%s2442] ss:$9 sm:$0xff] %v2221
        %s2444 = scalar_lea.vmem [#allocation1], 6
        %2445 = vst [vmem:[%s2444] ss:$9 sm:$0xff] %v2321
        %s2446 = scalar_lea.vmem [#allocation1], 7
        %2447 = vst [vmem:[%s2446] ss:$9 sm:$0xff] %v2322
        %v2448 = vld [vmem:[#allocation1] sm:$0xff]
        %2449 = vst [vmem:[#allocation1] ss:$9 sm:$0xff] %v2323
        %2450 = vst [vmem:[%s2434] ss:$9 sm:$0xff] %v2324
        %v2451 = vld [vmem:[#allocation1] sm:$0xff]
        %v2452 = vsel %vm1589, %v2448, 0
        %v2454 = vsel %vm1589, %v2451, 0
        %2456 = vmatpush.msra.mxu0 0.0
        %2457 = vmatpush.msra.mxu0 0.0
        %2458 = vmatpush.msra.mxu0 0.0
        %2459 = vmatpush.msra.mxu0 0.0
        %2460 = vmatpush.msra.mxu0 0.0
        %2461 = vmatpush.msra.mxu0 0.0
        %2462 = vmatpush.msra.mxu0 0.0
        %2463 = vmatpush.msra.mxu0 0.0
        %2464 = vmatpush.msra.mxu0 0.0
        %2465 = vmatpush.msra.mxu0 0.0
        %2466 = vmatpush.msra.mxu0 0.0
        %2467 = vmatpush.msra.mxu0 0.0
        %2468 = vmatpush.msra.mxu0 0.0
        %2469 = vmatpush.msra.mxu0 0.0
        %2470 = vmatpush.msra.mxu0 %v2338
        %2471 = vmatpush.msra.mxu0 %v2337
        %2472 = vmatmul.f32.gmra.mxu0 %v2452
        %v2473 = vpop.f32.mrf.mxu0
        %v2474 = vadd.f32 0.0, %v2473
        %2475 = vmatmul.f32.gmra.mxu0 %v2454
        %v2476 = vpop.f32.mrf.mxu0
        %v2477 = vadd.f32 0.0, %v2476
        %2478 = vdwg.mxu0
        %2479 = vst [vmem:[#allocation1] ss:$9 sm:$0xff] %v2256
        %s2480 = scalar_lea.vmem [#allocation1], 1
        %2481 = vst [vmem:[%s2480] ss:$9 sm:$0xff] %v2325
        %s2482 = scalar_lea.vmem [#allocation1], 2
        %2483 = vst [vmem:[%s2482] ss:$9 sm:$0xff] %v2326
        %s2484 = scalar_lea.vmem [#allocation1], 3
        %2485 = vst [vmem:[%s2484] ss:$9 sm:$0xff] %v2327
        %s2486 = scalar_lea.vmem [#allocation1], 4
        %2487 = vst [vmem:[%s2486] ss:$9 sm:$0xff] %v2328
        %s2488 = scalar_lea.vmem [#allocation1], 5
        %2489 = vst [vmem:[%s2488] ss:$9 sm:$0xff] %v2291
        %s2490 = scalar_lea.vmem [#allocation1], 6
        %2491 = vst [vmem:[%s2490] ss:$9 sm:$0xff] %v2329
        %s2492 = scalar_lea.vmem [#allocation1], 7
        %2493 = vst [vmem:[%s2492] ss:$9 sm:$0xff] %v2330
        %v2494 = vld [vmem:[#allocation1] sm:$0xff]
        %2495 = vst [vmem:[#allocation1] ss:$9 sm:$0xff] %v2331
        %2496 = vst [vmem:[%s2480] ss:$9 sm:$0xff] %v2332
        %v2497 = vld [vmem:[#allocation1] sm:$0xff]
        %v2498 = vsel %vm1589, %v2494, 0
        %v2500 = vsel %vm1589, %v2497, 0
        %2502 = vmatpush.msra.mxu0 0.0
        %2503 = vmatpush.msra.mxu0 0.0
        %2504 = vmatpush.msra.mxu0 0.0
        %2505 = vmatpush.msra.mxu0 0.0
        %2506 = vmatpush.msra.mxu0 0.0
        %2507 = vmatpush.msra.mxu0 0.0
        %2508 = vmatpush.msra.mxu0 0.0
        %2509 = vmatpush.msra.mxu0 0.0
        %2510 = vmatpush.msra.mxu0 0.0
        %2511 = vmatpush.msra.mxu0 0.0
        %2512 = vmatpush.msra.mxu0 0.0
        %2513 = vmatpush.msra.mxu0 0.0
        %2514 = vmatpush.msra.mxu0 0.0
        %2515 = vmatpush.msra.mxu0 0.0
        %2516 = vmatpush.msra.mxu0 %v2340
        %2517 = vmatpush.msra.mxu0 %v2339
        %2518 = vmatmul.f32.gmra.mxu0 %v2498
        %v2519 = vpop.f32.mrf.mxu0
        %v2520 = vadd.f32 0.0, %v2519
        %2521 = vmatmul.f32.gmra.mxu0 %v2500
        %v2522 = vpop.f32.mrf.mxu0
        %v2523 = vadd.f32 0.0, %v2522
        %2524 = vdwg.mxu0
        %v2525 = vsel %vm1008, %v2382, 0.0
        %v2526 = vsel %vm1008, %v2428, 0.0
        %v2527 = vadd.f32 %v2525, %v2526
        %v2528 = vsel %vm1008, %v2474, 0.0
        %v2529 = vadd.f32 %v2527, %v2528
        %v2530 = vsel %vm1008, %v2520, 0.0
        %v2531 = vadd.f32 %v2529, %v2530
        %v2532 = vsel %vm1012, %v2385, 0.0
        %v2533 = vsel %vm1012, %v2431, 0.0
        %v2534 = vadd.f32 %v2532, %v2533
        %v2535 = vsel %vm1012, %v2477, 0.0
        %v2536 = vadd.f32 %v2534, %v2535
        %v2537 = vsel %vm1012, %v2523, 0.0
        %v2538 = vadd.f32 %v2536, %v2537
        %v2539 = vadd.f32 %v1004, %v2531
        %v2540 = vadd.f32 %v1005, %v2538
        %v2541 = vld [vmem:[%s880] sm:$0x1]
        %v2543 = vperm.slane %v2541, 0
        %v2545 = vadd.f32 %v2539, %v2543
        %v2546 = vadd.f32 %v2540, %v2543
        %v2547 = vld [vmem:[%s883] sm:$0x1]
        %v2548 = vld [vmem:[%s886] sm:$0x1]
        %v2549 = vsel %vm1008, %v2545, 0.0
        %2550 = vadd.xlane.f32.xlu0 %v2549
        %v2551 = vpop.xlane.xlu0 %2550
        %v2552 = vsel %vm1012, %v2546, 0.0
        %2553 = vadd.xlane.f32.xlu0 %v2552
        %v2554 = vpop.xlane.xlu0 %2553
        %v2555 = vmul.f32 %v2551, %v1022
        %v2556 = vmul.f32 %v2554, %v1022
        %v2557 = vsub.f32 %v2545, %v2555
        %v2558 = vsub.f32 %v2546, %v2556
        %v2559 = vmul.f32 %v2557, %v2557
        %v2560 = vmul.f32 %v2558, %v2558
        %v2561 = vsel %vm1008, %v2559, 0.0
        %2562 = vadd.xlane.f32.xlu0 %v2561
        %v2563 = vpop.xlane.xlu0 %2562
        %v2564 = vsel %vm1012, %v2560, 0.0
        %2565 = vadd.xlane.f32.xlu0 %v2564
        %v2566 = vpop.xlane.xlu0 %2565
        %v2567 = vmul.f32 %v2563, %v1022
        %v2568 = vmul.f32 %v2566, %v1022
        %v2569 = vadd.f32 %v2567, 1e-05
        %v2570 = vadd.f32 %v2568, 1e-05
        %v2571 = vrsqrt.pop %v2569
        %v2572 = vmul.f32 %v2571, %v2569
        %v2573 = vmul.f32 %v2572, %v2571
        %v2574 = vmul.f32 0.5, %v2573
        %v2575 = vsub.f32 1.5, %v2574
        %v2576 = vmul.f32 %v2571, %v2575
        %vm2577 = vweird.f32 %v2569
        %vm2578 = vweird.f32 %v2571
        %vm2579 = vmor %vm2577, %vm2578
        %v2580 = vsel %vm2579, %v2571, %v2576
        %v2581 = vrsqrt.pop %v2570
        %v2582 = vmul.f32 %v2581, %v2570
        %v2583 = vmul.f32 %v2582, %v2581
        %v2584 = vmul.f32 0.5, %v2583
        %v2585 = vsub.f32 1.5, %v2584
        %v2586 = vmul.f32 %v2581, %v2585
        %vm2587 = vweird.f32 %v2570
        %vm2588 = vweird.f32 %v2581
        %vm2589 = vmor %vm2587, %vm2588
        %v2590 = vsel %vm2589, %v2581, %v2586
        %v2591 = vmul.f32 %v2557, %v2580
        %v2592 = vmul.f32 %v2558, %v2590
        %v2594 = vperm.slane %v2547, 0
        %v2596 = vmul.f32 %v2591, %v2594
        %v2597 = vmul.f32 %v2592, %v2594
        %v2599 = vperm.slane %v2548, 0
        %v2601 = vadd.f32 %v2596, %v2599
        %v2602 = vadd.f32 %v2597, %v2599
        %v2603 = vld [vmem:[%s891] sm:$0xff]
        %v2604 = vld [vmem:[%s891 + $0x8] sm:$0xff]
        %v2605 = vld [vmem:[%s891 + $0x10] sm:$0xff]
        %v2606 = vld [vmem:[%s891 + $0x18] sm:$0xff]
        %v2607 = vld [vmem:[%s891 + $0x20] sm:$0xff]
        %v2608 = vld [vmem:[%s891 + $0x28] sm:$0xff]
        %v2609 = vld [vmem:[%s891 + $0x30] sm:$0xff]
        %v2610 = vld [vmem:[%s891 + $0x38] sm:$0xff]
        %v2611 = vld [vmem:[%s894] sm:$0x1]
        %v2613 = vperm.slane %v2611, 0
        %v2616 = vsel %vm1008, %v2601, 0
        %v2619 = vsel %vm1008, %v2602, 0
        %2621 = vmatpush.msra.mxu0 0.0
        %2622 = vmatpush.msra.mxu0 0.0
        %2623 = vmatpush.msra.mxu0 0.0
        %2624 = vmatpush.msra.mxu0 0.0
        %2625 = vmatpush.msra.mxu0 0.0
        %2626 = vmatpush.msra.mxu0 0.0
        %2627 = vmatpush.msra.mxu0 0.0
        %2628 = vmatpush.msra.mxu0 0.0
        %2629 = vmatpush.msra.mxu0 %v2610
        %2630 = vmatpush.msra.mxu0 %v2609
        %2631 = vmatpush.msra.mxu0 %v2608
        %2632 = vmatpush.msra.mxu0 %v2607
        %2633 = vmatpush.msra.mxu0 %v2606
        %2634 = vmatpush.msra.mxu0 %v2605
        %2635 = vmatpush.msra.mxu0 %v2604
        %2636 = vmatpush.msra.mxu0 %v2603
        %2637 = vmatmul.f32.gmra.mxu0 %v2616
        %v2638 = vpop.f32.mrf.mxu0
        %v2639 = vadd.f32 %v2613, %v2638
        %2640 = vmatmul.f32.gmra.mxu0 %v2619
        %v2641 = vpop.f32.mrf.mxu0
        %v2642 = vadd.f32 %v2613, %v2641
        %2643 = vdwg.mxu0
        %v2644 = vmul.f32 %v2639, 0.5
        %v2645 = vmul.f32 %v2642, 0.5
        %v2646 = vmul.f32 %v2639, %v2639
        %v2647 = vmul.f32 %v2642, %v2642
        %v2648 = vmul.f32 %v2646, %v2639
        %v2649 = vmul.f32 %v2647, %v2642
        %v2650 = vmul.f32 %v2648, 0.044715
        %v2651 = vmul.f32 %v2649, 0.044715
        %v2652 = vadd.f32 %v2639, %v2650
        %v2653 = vadd.f32 %v2642, %v2651
        %v2654 = vmul.f32 %v2652, 0.7978846
        %v2655 = vmul.f32 %v2653, 0.7978846
        %v2656 = vtanh.pop %v2654
        %v2657 = vtanh.pop %v2655
        %v2658 = vadd.f32 %v2656, 1.0
        %v2659 = vadd.f32 %v2657, 1.0
        %v2660 = vmul.f32 %v2644, %v2658
        %v2661 = vmul.f32 %v2645, %v2659
        %v2662 = vld [vmem:[%s899] sm:$0xff]
        %v2663 = vld [vmem:[%s899 + $0x8] sm:$0xff]
        %v2664 = vld [vmem:[%s899 + $0x10] sm:$0xff]
        %v2665 = vld [vmem:[%s899 + $0x18] sm:$0xff]
        %v2666 = vld [vmem:[%s899 + $0x20] sm:$0xff]
        %v2667 = vld [vmem:[%s899 + $0x28] sm:$0xff]
        %v2668 = vld [vmem:[%s899 + $0x30] sm:$0xff]
        %v2669 = vld [vmem:[%s899 + $0x38] sm:$0xff]
        %v2670 = vld [vmem:[%s899 + $0x40] sm:$0xff]
        %v2671 = vld [vmem:[%s899 + $0x48] sm:$0xff]
        %v2672 = vld [vmem:[%s899 + $0x50] sm:$0xff]
        %v2673 = vld [vmem:[%s899 + $0x58] sm:$0xff]
        %v2674 = vld [vmem:[%s899 + $0x60] sm:$0xff]
        %v2675 = vld [vmem:[%s899 + $0x68] sm:$0xff]
        %v2676 = vld [vmem:[%s899 + $0x70] sm:$0xff]
        %v2677 = vld [vmem:[%s899 + $0x78] sm:$0xff]
        %v2678 = vld [vmem:[%s902] sm:$0x1]
        %v2680 = vperm.slane %v2678, 0
        %2682 = vmatpush.msra.mxu0 %v2677
        %2683 = vmatpush.msra.mxu0 %v2676
        %2684 = vmatpush.msra.mxu0 %v2675
        %2685 = vmatpush.msra.mxu0 %v2674
        %2686 = vmatpush.msra.mxu0 %v2673
        %2687 = vmatpush.msra.mxu0 %v2672
        %2688 = vmatpush.msra.mxu0 %v2671
        %2689 = vmatpush.msra.mxu0 %v2670
        %2690 = vmatpush.msra.mxu0 %v2669
        %2691 = vmatpush.msra.mxu0 %v2668
        %2692 = vmatpush.msra.mxu0 %v2667
        %2693 = vmatpush.msra.mxu0 %v2666
        %2694 = vmatpush.msra.mxu0 %v2665
        %2695 = vmatpush.msra.mxu0 %v2664
        %2696 = vmatpush.msra.mxu0 %v2663
        %2697 = vmatpush.msra.mxu0 %v2662
        %2698 = vmatmul.f32.gmra.mxu0 %v2660
        %v2699 = vpop.f32.mrf.mxu0
        %v2700 = vadd.f32 %v2680, %v2699
        %2701 = vmatmul.f32.gmra.mxu0 %v2661
        %v2702 = vpop.f32.mrf.mxu0
        %v2703 = vadd.f32 %v2680, %v2702
        %2704 = vdwg.mxu0
        %v2705 = vadd.f32 %v2545, %v2700
        %v2706 = vadd.f32 %v2546, %v2703
        %2707 = vst.msk [vmem:[#allocation2] sm:$0xff] %vm1008, %v2705
        %2708 = vst.msk [vmem:[#allocation2 + $0x8] sm:$0x3] %vm1012, %v2706
        %2709 = vst.msk [vmem:[%s907] sm:$0xff] %vm1008, %v2705
        %2710 = vst.msk [vmem:[%s907 + $0x8] sm:$0x3] %vm1012, %v2706
        %p2711 = scmp.eq.s32.totalorder %s36, 1
        // Predicated region
        $region113: #{tpu_custom_call.1} parent=107 // pred_check
          %p2712 = pneg %p2711
        $region114: #{tpu_custom_call.1} parent=107 // pred_check_branch
          %2714 = sbr.rel (%p2712) target = $region116
        $region115: #{tpu_custom_call.1} parent=107 // pred_region
          %v2716 = vrot.slane %v2705, 5
          %v2718 = vld [vmem:[%s18] sm:$0x1]
          %v2719 = vld [vmem:[%s19] sm:$0x1]
          %2720 = vst [vmem:[#allocation1] ss:$9 sm:$0xff] %v2705
          %s2721 = scalar_lea.vmem [#allocation1], 1
          %2722 = vst [vmem:[%s2721] ss:$9 sm:$0xff] %v2716
          %v2723 = vld [vmem:[#allocation1] sm:$0xff]
          %v2725 = vsel %vm1012, %v2723, 0.0
          %2726 = vadd.xlane.f32.xlu0 %v2725
          %v2727 = vpop.xlane.xlu0 %2726
          %v2728 = vmul.f32 %v2727, %v1022
          %v2730 = vperm.slane %v2728, 0
          %v2731 = vperm.slane %v2728, 1
          %v2734 = vsub.f32 %v2705, %v2730
          %v2735 = vsub.f32 %v2716, %v2731
          %v2736 = vmul.f32 %v2734, %v2734
          %v2737 = vmul.f32 %v2735, %v2735
          %2740 = vst [vmem:[#allocation1] ss:$9 sm:$0xff] %v2736
          %s2741 = scalar_lea.vmem [#allocation1], 1
          %2742 = vst [vmem:[%s2741] ss:$9 sm:$0xff] %v2737
          %v2743 = vld [vmem:[#allocation1] sm:$0xff]
          %v2745 = vsel %vm1012, %v2743, 0.0
          %2746 = vadd.xlane.f32.xlu0 %v2745
          %v2747 = vpop.xlane.xlu0 %2746
          %v2748 = vmul.f32 %v2747, %v1022
          %v2749 = vadd.f32 %v2748, 1e-05
          %v2750 = vrsqrt.pop %v2749
          %v2751 = vmul.f32 %v2750, %v2749
          %v2752 = vmul.f32 %v2751, %v2750
          %v2753 = vmul.f32 0.5, %v2752
          %v2754 = vsub.f32 1.5, %v2753
          %v2755 = vmul.f32 %v2750, %v2754
          %vm2756 = vweird.f32 %v2749
          %vm2757 = vweird.f32 %v2750
          %vm2758 = vmor %vm2756, %vm2757
          %v2759 = vsel %vm2758, %v2750, %v2755
          %v2761 = vperm.slane %v2759, 0
          %v2762 = vperm.slane %v2759, 1
          %v2765 = vmul.f32 %v2734, %v2761
          %v2766 = vmul.f32 %v2735, %v2762
          %v2768 = vperm.slane %v2718, 0
          %v2770 = vrot.slane %v2768, 1
          %v2772 = vmul.f32 %v2765, %v2768
          %v2773 = vmul.f32 %v2766, %v2770
          %v2775 = vperm.slane %v2719, 0
          %v2777 = vrot.slane %v2775, 1
          %v2779 = vadd.f32 %v2772, %v2775
          %v2780 = vadd.f32 %v2773, %v2777
          %v2781 = vld [vmem:[%s20] sm:$0xff]
          %v2782 = vld [vmem:[%s20 + $0x8] sm:$0xff]
          %v2783 = vld [vmem:[%s20 + $0x10] sm:$0xff]
          %v2784 = vld [vmem:[%s20 + $0x18] sm:$0xff]
          %v2785 = vld [vmem:[%s20 + $0x20] sm:$0xff]
          %v2786 = vld [vmem:[%s20 + $0x28] sm:$0xff]
          %v2787 = vld [vmem:[%s20 + $0x30] sm:$0xff]
          %v2788 = vld [vmem:[%s20 + $0x38] sm:$0xff]
          %v2789 = vld [vmem:[%s21] sm:$0x1]
          %v2791 = vperm.slane %v2789, 0
          %2795 = vst [vmem:[#allocation1] ss:$9 sm:$0xff] %v2779
          %s2796 = scalar_lea.vmem [#allocation1], 1
          %2797 = vst [vmem:[%s2796] ss:$9 sm:$0xff] %v2780
          %v2798 = vld [vmem:[#allocation1] sm:$0xff]
          %v2799 = vsel %vm1008, %v2798, 0
          %2801 = vmatpush.msra.mxu0 0.0
          %2802 = vmatpush.msra.mxu0 0.0
          %2803 = vmatpush.msra.mxu0 0.0
          %2804 = vmatpush.msra.mxu0 0.0
          %2805 = vmatpush.msra.mxu0 0.0
          %2806 = vmatpush.msra.mxu0 0.0
          %2807 = vmatpush.msra.mxu0 0.0
          %2808 = vmatpush.msra.mxu0 0.0
          %2809 = vmatpush.msra.mxu0 %v2788
          %2810 = vmatpush.msra.mxu0 %v2787
          %2811 = vmatpush.msra.mxu0 %v2786
          %2812 = vmatpush.msra.mxu0 %v2785
          %2813 = vmatpush.msra.mxu0 %v2784
          %2814 = vmatpush.msra.mxu0 %v2783
          %2815 = vmatpush.msra.mxu0 %v2782
          %2816 = vmatpush.msra.mxu0 %v2781
          %2817 = vmatmul.f32.gmra.mxu0 %v2799
          %v2818 = vpop.f32.mrf.mxu0
          %v2819 = vadd.f32 %v2791, %v2818
          %2820 = vdwg.mxu0
          %v2821 = vxor.u32 %v2819, 2147483648
          %v2822 = vmul.f32 %v2821, 1.442695
          %v2823 = vpow.pop %v2822
          %v2824 = vadd.f32 %v2823, 1.0
          %v2825 = vrcp.pop %v2824
          %v2826 = vmul.f32 %v2824, %v2825
          %v2827 = vsub.f32 1.0, %v2826
          %v2828 = vmul.f32 %v2825, %v2827
          %v2829 = vadd.f32 %v2825, %v2828
          %vm2830 = vweird.f32 %v2824
          %vm2831 = vweird.f32 %v2825
          %vm2832 = vmor %vm2830, %vm2831
          %v2833 = vsel %vm2832, %v2825, %v2829
          %v2834 = vand.u32 2147483647, %v2824
          %vm2835 = vcmp.eq.f32.partialorder %v2834, 8.507059e+37
          %v2836 = vand.u32 %v2824, 2147483648
          %v2837 = vor.u32 1.1754944e-38, %v2836
          %v2838 = vsel %vm2835, %v2837, %v2833
          %v2839 = vmul.f32 1.0, %v2838
          %vm2840 = vcmask 9216
          %2841 = vst.msk [vmem:[#allocation3] sm:$0x3] %vm2840, %v2839
        $region116: #{tpu_custom_call.1} parent=107 // pred_fallthru
          _
        %p2842 = scmp.lt.s32.totalorder %s36, 1
        %s2843 = scalar_select %p2842, %s36, 1
        %s2844 = smul.addr %s2843, 2
        %s2845 = smul.addr %s2844, 8
        %s2846 = scalar_lea.vmem %s22, %s2845
        // Predicated region
        $region117: #{tpu_custom_call.1} parent=107 // pred_check
          %p2847 = pneg %p581
        $region118: #{tpu_custom_call.1} parent=107 // pred_check_branch
          %2849 = sbr.rel (%p2847) target = $region120
        $region119: #{tpu_custom_call.1} parent=107 // pred_region
          _
        $region120: #{tpu_custom_call.1} parent=107 // pred_fallthru
          _
        // Predicated region
        $region121: #{tpu_custom_call.1} parent=107 // pred_check
          %p2850 = pneg %p602
        $region122: #{tpu_custom_call.1} parent=107 // pred_check_branch
          %2852 = sbr.rel (%p2850) target = $region124
        $region123: #{tpu_custom_call.1} parent=107 // pred_region
          %2854 = vsyncadd [#allocation4], 0
          %s2856 = sshll.u32 [#allocation3], 4
          %s2857 = int_to_ptr.vmem [resolvable:$true] %s2856
          %s2858 = sshll.u32 %s23, 4
          %s2859 = int_to_ptr.hbm [resolvable:$true] %s2858
          %2861 = dma.vmem_to_hbm [thread:$0]  %s2857, 32, %s2859, [#allocation4]
        $region124: #{tpu_custom_call.1} parent=107 // pred_fallthru
          _
        // Predicated region
        $region125: #{tpu_custom_call.1} parent=107 // pred_check
          %p2862 = pneg %p602
        $region126: #{tpu_custom_call.1} parent=107 // pred_check_branch
          %2864 = sbr.rel (%p2862) target = $region128
        $region127: #{tpu_custom_call.1} parent=107 // pred_region
          %2866 = dma.done [#allocation4], 32
        $region128: #{tpu_custom_call.1} parent=107 // pred_fallthru
          _
      $region108: #{tpu_custom_call.1} parent=5 // pred_fallthru
        _
      %p2867 = scmp.le.s32.totalorder 2, %s31
      // Predicated region
      $region129: #{tpu_custom_call.1} parent=5 // pred_check
        %p2868 = pneg %p2867
      $region130: #{tpu_custom_call.1} parent=5 // pred_check_branch
        %2870 = sbr.rel (%p2868) target = $region132
      $region131: #{tpu_custom_call.1} parent=5 // pred_region
        %s2871 = ssub.s32 %s31, 2
        // Predicated region
        $region133: #{tpu_custom_call.1} parent=131 // pred_check
          %p2872 = pneg %p587
        $region134: #{tpu_custom_call.1} parent=131 // pred_check_branch
          %2874 = sbr.rel (%p2872) target = $region136
        $region135: #{tpu_custom_call.1} parent=131 // pred_region
          %p2875 = scmp.lt.s32.totalorder %s37, 1
          %s2876 = scalar_select %p2875, %s37, 1
          %s2877 = smul.addr %s2876, 2
          %s2878 = smul.addr %s2877, 8
          %s2879 = scalar_lea.vmem %s22, %s2878
        $region136: #{tpu_custom_call.1} parent=131 // pred_fallthru
          _
      $region132: #{tpu_custom_call.1} parent=5 // pred_fallthru
        _
    $region6: #{tpu_custom_call.1} parent=1 // loop_footer
      %s35 = sadd.s32 1, %s31
    $region7: #{tpu_custom_call.1} parent=1 // loop_footer_branch
      %30 = sbr.rel target = $region3
    $region8: #{tpu_custom_call.1} parent=1 // loop_exit
      _
    %2880 = vsyncpa [#allocation4], 1
    %s2881 = scalar_lea.sflag [#allocation4], 1
    %2882 = vsyncpa %s2881, 1

</llo_original>
